<compile_context>
chip_gen: v7x
topology: tpu7x:2x2x1
jax: 0.10.0
libtpu: 0.0.40
codegen_flags: <defaults>
</compile_context>

<pallas_src>
import functools
import math

import jax
import jax.numpy as jnp
from jax.experimental import pallas as pl
from jax.experimental.pallas import tpu as pltpu

LANE = 128


def _round_up(n, m):
    return ((n + m - 1) // m) * m


def kal_net_kernel(*refs, layer_dims, order):
    """Fused KAL_Net forward (all layers in one kernel invocation).

    refs = (x_ref, [w_ref, gb_ref] * L, out_ref)

    x_ref:     (B, Fin0_pad)                     f32  (flattened, zero-padded to lanes)
    w_ref[l]:  ((order+2)*Finl_pad, Foutl_pad)   bf16 packed [base; P0; ..; P_order],
                                                      zeros in padded rows/cols
    gb_ref[l]: (2, Foutl_pad)                    f32  row0=gamma, row1=beta, zero-padded
    out_ref:   (B, FoutL_pad)                    f32
    """
    x_ref = refs[0]
    out_ref = refs[-1]
    wrefs = refs[1:-1]

    h = x_ref[...]  # f32; padded feature columns (if any) are exactly zero

    for li, (fin_real, fout_real) in enumerate(layer_dims):
        w_ref = wrefs[2 * li]
        gb_ref = wrefs[2 * li + 1]
        fin_pad = h.shape[-1]
        fout_pad = w_ref.shape[-1]

        # ---- SiLU base branch: its MXU dot goes FIRST (independent of min/max), so
        #      the MXU overlaps the cross-lane min/max reduce and the Legendre chain.
        base_act = (h * jax.nn.sigmoid(h)).astype(jnp.bfloat16)
        y = jnp.dot(base_act, w_ref[0:fin_pad, :],
                    preferred_element_type=jnp.float32)

        # ---- global min/max over the *real* features (matches torch .min()/.max()) ----
        if fin_real != fin_pad:
            in_mask = jax.lax.broadcasted_iota(jnp.int32, h.shape, 1) < fin_real
            xmin = jnp.min(jnp.where(in_mask, h, jnp.inf), keepdims=True)
            xmax = jnp.max(jnp.where(in_mask, h, -jnp.inf), keepdims=True)
        else:
            xmin = jnp.min(h, keepdims=True)
            xmax = jnp.max(h, keepdims=True)
        # NOTE: no eps guard when xmax == xmin -- same (NaN/Inf) behavior as PyTorch.
        inv_range = pl.reciprocal(xmax - xmin)          # (1,1) scalar reciprocal
        xn = (h - xmin) * (2.0 * inv_range) - 1.0       # broadcast multiply, no divide

        # ---- Legendre recursion; each block's dot is issued as soon as it is ready ----
        p_prev = jnp.ones_like(xn)                      # P0
        y = y + jnp.dot(p_prev.astype(jnp.bfloat16),
                        w_ref[fin_pad:2 * fin_pad, :],
                        preferred_element_type=jnp.float32)
        if order >= 1:
            p_cur = xn                                  # P1
            y = y + jnp.dot(p_cur.astype(jnp.bfloat16),
                            w_ref[2 * fin_pad:3 * fin_pad, :],
                            preferred_element_type=jnp.float32)
            for n in range(1, order):
                p_next = ((2.0 * n + 1.0) * xn * p_cur - float(n) * p_prev) \
                    * (1.0 / (n + 1.0))
                p_prev, p_cur = p_cur, p_next
                y = y + jnp.dot(p_cur.astype(jnp.bfloat16),
                                w_ref[(n + 2) * fin_pad:(n + 3) * fin_pad, :],
                                preferred_element_type=jnp.float32)
        # padded output columns of y are exactly zero (zero bf16 weight columns)

        # ---- LayerNorm over the real fout columns only (padded cols contribute 0) ----
        inv_n = 1.0 / float(fout_real)
        mean = jnp.sum(y, axis=-1, keepdims=True) * inv_n
        if fout_real != fout_pad:
            out_mask = jax.lax.broadcasted_iota(jnp.int32, y.shape, 1) < fout_real
            diff = jnp.where(out_mask, y - mean, 0.0)
        else:
            diff = y - mean
        var = jnp.sum(diff * diff, axis=-1, keepdims=True) * inv_n
        y_norm = (y - mean) * jax.lax.rsqrt(var + 1e-5)
        y_norm = y_norm * gb_ref[0:1, :] + gb_ref[1:2, :]  # padded gamma/beta = 0

        # ---- final SiLU; padded columns stay exactly zero for the next layer ----
        h = y_norm * jax.nn.sigmoid(y_norm)

    out_ref[...] = h


def pack_params(params, order):
    """One-time host-side weight packing (call once; NOT inside the forward).

    Per layer produces:
      w_packed: ((order+2)*fin_pad, fout_pad) bf16
                rows = [base_w^T ; poly_w_p^T for p=0..order], zero-padded to lane width
      gb:       (2, fout_pad) f32  (row0 = gamma, row1 = beta), zero-padded
    """
    packed = []
    for base_w, poly_w, gamma, beta in params:
        fout, fin = base_w.shape
        fin_pad = _round_up(fin, LANE)
        fout_pad = _round_up(fout, LANE)
        bw_t = jnp.transpose(base_w)                                          # (fin, fout)
        pw = jnp.transpose(poly_w.reshape(fout, fin, order + 1), (2, 1, 0))   # (P, fin, fout)
        blocks = [bw_t] + [pw[p] for p in range(order + 1)]
        blocks = [jnp.pad(blk, ((0, fin_pad - fin), (0, fout_pad - fout)))
                  for blk in blocks]
        w_packed = jnp.concatenate(blocks, axis=0).astype(jnp.bfloat16)
        g = jnp.pad(gamma, (0, fout_pad - fout))
        bt = jnp.pad(beta, (0, fout_pad - fout))
        gb = jnp.stack([g, bt], axis=0).astype(jnp.float32)                   # (2, fout_pad)
        packed.append((w_packed, gb, fin, fout))
    return packed


def kal_net_forward(x, packed_params, order):
    """x: NCHW input, flattened to (B, C*H*W) exactly like torch x.flatten(1)."""
    b = x.shape[0]
    h = x.reshape(b, -1).astype(jnp.float32)
    fin0 = h.shape[1]
    fin0_pad = _round_up(fin0, LANE)
    if fin0_pad != fin0:
        h = jnp.pad(h, ((0, 0), (0, fin0_pad - fin0)))

    layer_dims = tuple((fin, fout) for (_, _, fin, fout) in packed_params)
    fout_last = packed_params[-1][3]
    fout_last_pad = packed_params[-1][0].shape[1]

    args = [h]
    for (w, gb, _, _) in packed_params:
        args.extend([w, gb])

    kernel = functools.partial(kal_net_kernel, layer_dims=layer_dims, order=order)
    vmem = pl.BlockSpec(memory_space=pltpu.MemorySpace.VMEM)
    out = pl.pallas_call(
        kernel,
        out_shape=jax.ShapeDtypeStruct((b, fout_last_pad), jnp.float32),
        in_specs=[vmem] * len(args),
        out_specs=vmem,
    )(*args)
    return out[:, :fout_last]


def init_params(key, layers_hidden, order):
    """Deterministic init mimicking kaiming_uniform_(nonlinearity='linear')."""
    params = []
    for fin, fout in zip(layers_hidden, layers_hidden[1:]):
        key, k_base, k_poly = jax.random.split(key, 3)
        bound_b = math.sqrt(3.0 / fin)
        base_w = jax.random.uniform(k_base, (fout, fin), jnp.float32, -bound_b, bound_b)
        fan_p = fin * (order + 1)
        bound_p = math.sqrt(3.0 / fan_p)
        poly_w = jax.random.uniform(k_poly, (fout, fan_p), jnp.float32, -bound_p, bound_p)
        gamma = jnp.ones((fout,), jnp.float32)
        beta = jnp.zeros((fout,), jnp.float32)
        params.append((base_w, poly_w, gamma, beta))
    return params


def kal_net_reference(x, params, order):
    """Pure-JAX, full-f32 (HIGHEST-precision) reference matching the PyTorch forward."""
    hp = jax.lax.Precision.HIGHEST
    b = x.shape[0]
    h = x.reshape(b, -1).astype(jnp.float32)
    for base_w, poly_w, gamma, beta in params:
        base_out = jnp.dot(jax.nn.silu(h), base_w.T, precision=hp)
        xn = 2.0 * (h - jnp.min(h)) / (jnp.max(h) - jnp.min(h)) - 1.0
        polys = [jnp.ones_like(xn), xn]
        for n in range(1, order):
            polys.append(((2.0 * n + 1.0) * xn * polys[-1] - n * polys[-2]) / (n + 1.0))
        basis = jnp.stack(polys[: order + 1], axis=-1).reshape(b, -1)
        poly_out = jnp.dot(basis, poly_w.T, precision=hp)
        y = base_out + poly_out
        mean = jnp.mean(y, axis=-1, keepdims=True)
        var = jnp.mean(jnp.square(y - mean), axis=-1, keepdims=True)
        y = (y - mean) / jnp.sqrt(var + 1e-5) * gamma + beta
        h = jax.nn.silu(y)
    return h


if __name__ == "__main__":
    polynomial_order = 3
    # NCHW input (2, 4, 16, 16) -> flatten(1) gives 1024 input features.
    B, C, H, W = 2, 4, 16, 16
    layers_hidden = [C * H * W, 64, 32]

    key = jax.random.PRNGKey(0)
    key, k_x = jax.random.split(key)
    x = jax.random.normal(k_x, (B, C, H, W), jnp.float32)
    params = init_params(key, layers_hidden, polynomial_order)

    # Pack weights exactly once (outside the forward path).
    packed = pack_params(params, polynomial_order)

    out = jax.block_until_ready(kal_net_forward(x, packed, polynomial_order))
    ref = jax.block_until_ready(kal_net_reference(x, params, polynomial_order))

    assert out.shape == (B, layers_hidden[-1])
    max_err = float(jnp.max(jnp.abs(out - ref)))
    # bf16 MXU operands vs f32-HIGHEST reference -> ~1e-2-level diffs are expected.
    assert jnp.allclose(out, ref, rtol=3e-2, atol=3e-2), f"max abs err {max_err}"

    print("KERNEL_OK")
</pallas_src>

<mosaic_0001>
module attributes {stable_mosaic.version = 11 : i64} {
  func.func @kal_net_kernel(%arg0: memref<2x1024xf32, #tpu.memory_space<vmem>>, %arg1: memref<5120x128xbf16, #tpu.memory_space<vmem>>, %arg2: memref<2x128xf32, #tpu.memory_space<vmem>>, %arg3: memref<640x128xbf16, #tpu.memory_space<vmem>>, %arg4: memref<2x128xf32, #tpu.memory_space<vmem>>, %arg5: memref<2x128xf32, #tpu.memory_space<vmem>>) attributes {dimension_semantics = [], scalar_prefetch = 0 : i64, scratch_operands = 0 : i64, tpu.core_type = #tpu.core_type<tc>} {
    %c0 = arith.constant 0 : index
    %c0_0 = arith.constant 0 : index
    %0 = vector.load %arg0[%c0, %c0_0] : memref<2x1024xf32, #tpu.memory_space<vmem>>, vector<2x1024xf32>
    %1 = arith.negf %0 : vector<2x1024xf32>
    %2 = math.exp %1 : vector<2x1024xf32>
    %cst = arith.constant 1.000000e+00 : f32
    %3 = vector.broadcast %cst : f32 to vector<2x1024xf32>
    %4 = arith.addf %3, %2 : vector<2x1024xf32>
    %5 = arith.divf %3, %4 : vector<2x1024xf32>
    %6 = arith.mulf %0, %5 : vector<2x1024xf32>
    %7 = arith.truncf %6 : vector<2x1024xf32> to vector<2x1024xbf16>
    %c0_1 = arith.constant 0 : index
    %c0_2 = arith.constant 0 : index
    %8 = vector.load %arg1[%c0_1, %c0_2] : memref<5120x128xbf16, #tpu.memory_space<vmem>>, vector<1024x128xbf16>
    %cst_3 = arith.constant dense<0.000000e+00> : vector<2x128xf32>
    %9 = tpu.matmul %7, %8, %cst_3 {dimension_numbers = #tpu.dot_dimension_numbers<[1], [0], [0], [1], [0, 0, 1, 1], [], []>} : vector<2x1024xbf16>, vector<1024x128xbf16>, vector<2x128xf32> -> vector<2x128xf32>
    %10 = vector.shape_cast %0 : vector<2x1024xf32> to vector<1x2x1024xf32>
    %cst_4 = arith.constant dense<0x7F800000> : vector<1xf32>
    %11 = vector.multi_reduction <minimumf>, %10, %cst_4 [1, 2] : vector<1x2x1024xf32> to vector<1xf32>
    %12 = vector.shape_cast %11 : vector<1xf32> to vector<1x1x1xf32>
    %13 = vector.extract %12[0, 0, 0] : f32 from vector<1x1x1xf32>
    %14 = vector.broadcast %13 : f32 to vector<1x1xf32>
    %15 = vector.shape_cast %0 : vector<2x1024xf32> to vector<1x2x1024xf32>
    %cst_5 = arith.constant dense<0xFF800000> : vector<1xf32>
    %16 = vector.multi_reduction <maximumf>, %15, %cst_5 [1, 2] : vector<1x2x1024xf32> to vector<1xf32>
    %17 = vector.shape_cast %16 : vector<1xf32> to vector<1x1x1xf32>
    %18 = vector.extract %17[0, 0, 0] : f32 from vector<1x1x1xf32>
    %19 = vector.broadcast %18 : f32 to vector<1x1xf32>
    %20 = arith.subf %19, %14 : vector<1x1xf32>
    %21 = tpu.reciprocal %20 : vector<1x1xf32> -> vector<1x1xf32>
    %22 = vector.broadcast %14 : vector<1x1xf32> to vector<2x1024xf32>
    %23 = arith.subf %0, %22 : vector<2x1024xf32>
    %cst_6 = arith.constant 2.000000e+00 : f32
    %24 = vector.broadcast %cst_6 : f32 to vector<1x1xf32>
    %25 = arith.mulf %24, %21 : vector<1x1xf32>
    %26 = vector.broadcast %25 : vector<1x1xf32> to vector<2x1024xf32>
    %27 = arith.mulf %23, %26 : vector<2x1024xf32>
    %cst_7 = arith.constant 1.000000e+00 : f32
    %28 = vector.broadcast %cst_7 : f32 to vector<2x1024xf32>
    %29 = arith.subf %27, %28 : vector<2x1024xf32>
    %cst_8 = arith.constant 1.000000e+00 : f32
    %30 = vector.broadcast %cst_8 : f32 to vector<2x1024xf32>
    %31 = arith.truncf %30 : vector<2x1024xf32> to vector<2x1024xbf16>
    %c1024 = arith.constant 1024 : index
    %c0_9 = arith.constant 0 : index
    %32 = vector.load %arg1[%c1024, %c0_9] : memref<5120x128xbf16, #tpu.memory_space<vmem>>, vector<1024x128xbf16>
    %cst_10 = arith.constant dense<0.000000e+00> : vector<2x128xf32>
    %33 = tpu.matmul %31, %32, %cst_10 {dimension_numbers = #tpu.dot_dimension_numbers<[1], [0], [0], [1], [0, 0, 1, 1], [], []>} : vector<2x1024xbf16>, vector<1024x128xbf16>, vector<2x128xf32> -> vector<2x128xf32>
    %34 = arith.addf %9, %33 : vector<2x128xf32>
    %35 = arith.truncf %29 : vector<2x1024xf32> to vector<2x1024xbf16>
    %c2048 = arith.constant 2048 : index
    %c0_11 = arith.constant 0 : index
    %36 = vector.load %arg1[%c2048, %c0_11] : memref<5120x128xbf16, #tpu.memory_space<vmem>>, vector<1024x128xbf16>
    %cst_12 = arith.constant dense<0.000000e+00> : vector<2x128xf32>
    %37 = tpu.matmul %35, %36, %cst_12 {dimension_numbers = #tpu.dot_dimension_numbers<[1], [0], [0], [1], [0, 0, 1, 1], [], []>} : vector<2x1024xbf16>, vector<1024x128xbf16>, vector<2x128xf32> -> vector<2x128xf32>
    %38 = arith.addf %34, %37 : vector<2x128xf32>
    %cst_13 = arith.constant 3.000000e+00 : f32
    %39 = vector.broadcast %cst_13 : f32 to vector<2x1024xf32>
    %40 = arith.mulf %39, %29 : vector<2x1024xf32>
    %41 = arith.mulf %40, %29 : vector<2x1024xf32>
    %cst_14 = arith.constant 1.000000e+00 : f32
    %42 = vector.broadcast %cst_14 : f32 to vector<2x1024xf32>
    %43 = arith.mulf %42, %30 : vector<2x1024xf32>
    %44 = arith.subf %41, %43 : vector<2x1024xf32>
    %cst_15 = arith.constant 5.000000e-01 : f32
    %45 = vector.broadcast %cst_15 : f32 to vector<2x1024xf32>
    %46 = arith.mulf %44, %45 : vector<2x1024xf32>
    %47 = arith.truncf %46 : vector<2x1024xf32> to vector<2x1024xbf16>
    %c3072 = arith.constant 3072 : index
    %c0_16 = arith.constant 0 : index
    %48 = vector.load %arg1[%c3072, %c0_16] : memref<5120x128xbf16, #tpu.memory_space<vmem>>, vector<1024x128xbf16>
    %cst_17 = arith.constant dense<0.000000e+00> : vector<2x128xf32>
    %49 = tpu.matmul %47, %48, %cst_17 {dimension_numbers = #tpu.dot_dimension_numbers<[1], [0], [0], [1], [0, 0, 1, 1], [], []>} : vector<2x1024xbf16>, vector<1024x128xbf16>, vector<2x128xf32> -> vector<2x128xf32>
    %50 = arith.addf %38, %49 : vector<2x128xf32>
    %cst_18 = arith.constant 5.000000e+00 : f32
    %51 = vector.broadcast %cst_18 : f32 to vector<2x1024xf32>
    %52 = arith.mulf %51, %29 : vector<2x1024xf32>
    %53 = arith.mulf %52, %46 : vector<2x1024xf32>
    %cst_19 = arith.constant 2.000000e+00 : f32
    %54 = vector.broadcast %cst_19 : f32 to vector<2x1024xf32>
    %55 = arith.mulf %54, %29 : vector<2x1024xf32>
    %56 = arith.subf %53, %55 : vector<2x1024xf32>
    %cst_20 = arith.constant 0.333333343 : f32
    %57 = vector.broadcast %cst_20 : f32 to vector<2x1024xf32>
    %58 = arith.mulf %56, %57 : vector<2x1024xf32>
    %59 = arith.truncf %58 : vector<2x1024xf32> to vector<2x1024xbf16>
    %c4096 = arith.constant 4096 : index
    %c0_21 = arith.constant 0 : index
    %60 = vector.load %arg1[%c4096, %c0_21] : memref<5120x128xbf16, #tpu.memory_space<vmem>>, vector<1024x128xbf16>
    %cst_22 = arith.constant dense<0.000000e+00> : vector<2x128xf32>
    %61 = tpu.matmul %59, %60, %cst_22 {dimension_numbers = #tpu.dot_dimension_numbers<[1], [0], [0], [1], [0, 0, 1, 1], [], []>} : vector<2x1024xbf16>, vector<1024x128xbf16>, vector<2x128xf32> -> vector<2x128xf32>
    %62 = arith.addf %50, %61 : vector<2x128xf32>
    %cst_23 = arith.constant dense<0.000000e+00> : vector<2xf32>
    %63 = vector.multi_reduction <add>, %62, %cst_23 [1] : vector<2x128xf32> to vector<2xf32>
    %64 = vector.shape_cast %63 : vector<2xf32> to vector<2x1xf32>
    %cst_24 = arith.constant 1.562500e-02 : f32
    %65 = vector.broadcast %cst_24 : f32 to vector<2x1xf32>
    %66 = arith.mulf %64, %65 : vector<2x1xf32>
    %67 = tpu.iota {dimensions = array<i32: 1>} : vector<2x128xi32>
    %c64_i32 = arith.constant 64 : i32
    %68 = vector.broadcast %c64_i32 : i32 to vector<2x128xi32>
    %69 = arith.cmpi slt, %67, %68 : vector<2x128xi32>
    %70 = vector.broadcast %66 : vector<2x1xf32> to vector<2x128xf32>
    %71 = arith.subf %62, %70 : vector<2x128xf32>
    %cst_25 = arith.constant 0.000000e+00 : f32
    %72 = vector.broadcast %cst_25 : f32 to vector<2x128xf32>
    %73 = arith.select %69, %71, %72 : vector<2x128xi1>, vector<2x128xf32>
    %74 = arith.mulf %73, %73 : vector<2x128xf32>
    %cst_26 = arith.constant dense<0.000000e+00> : vector<2xf32>
    %75 = vector.multi_reduction <add>, %74, %cst_26 [1] : vector<2x128xf32> to vector<2xf32>
    %76 = vector.shape_cast %75 : vector<2xf32> to vector<2x1xf32>
    %cst_27 = arith.constant 1.562500e-02 : f32
    %77 = vector.broadcast %cst_27 : f32 to vector<2x1xf32>
    %78 = arith.mulf %76, %77 : vector<2x1xf32>
    %79 = vector.broadcast %66 : vector<2x1xf32> to vector<2x128xf32>
    %80 = arith.subf %62, %79 : vector<2x128xf32>
    %cst_28 = arith.constant 9.99999974E-6 : f32
    %81 = vector.broadcast %cst_28 : f32 to vector<2x1xf32>
    %82 = arith.addf %78, %81 : vector<2x1xf32>
    %83 = math.rsqrt %82 : vector<2x1xf32>
    %84 = vector.broadcast %83 : vector<2x1xf32> to vector<2x128xf32>
    %85 = arith.mulf %80, %84 : vector<2x128xf32>
    %c0_29 = arith.constant 0 : index
    %c0_30 = arith.constant 0 : index
    %86 = vector.load %arg2[%c0_29, %c0_30] : memref<2x128xf32, #tpu.memory_space<vmem>>, vector<1x128xf32>
    %87 = vector.broadcast %86 : vector<1x128xf32> to vector<2x128xf32>
    %88 = arith.mulf %85, %87 : vector<2x128xf32>
    %c1 = arith.constant 1 : index
    %c0_31 = arith.constant 0 : index
    %89 = vector.load %arg2[%c1, %c0_31] : memref<2x128xf32, #tpu.memory_space<vmem>>, vector<1x128xf32>
    %90 = vector.broadcast %89 : vector<1x128xf32> to vector<2x128xf32>
    %91 = arith.addf %88, %90 : vector<2x128xf32>
    %92 = arith.negf %91 : vector<2x128xf32>
    %93 = math.exp %92 : vector<2x128xf32>
    %cst_32 = arith.constant 1.000000e+00 : f32
    %94 = vector.broadcast %cst_32 : f32 to vector<2x128xf32>
    %95 = arith.addf %94, %93 : vector<2x128xf32>
    %96 = arith.divf %94, %95 : vector<2x128xf32>
    %97 = arith.mulf %91, %96 : vector<2x128xf32>
    %98 = arith.negf %97 : vector<2x128xf32>
    %99 = math.exp %98 : vector<2x128xf32>
    %cst_33 = arith.constant 1.000000e+00 : f32
    %100 = vector.broadcast %cst_33 : f32 to vector<2x128xf32>
    %101 = arith.addf %100, %99 : vector<2x128xf32>
    %102 = arith.divf %100, %101 : vector<2x128xf32>
    %103 = arith.mulf %97, %102 : vector<2x128xf32>
    %104 = arith.truncf %103 : vector<2x128xf32> to vector<2x128xbf16>
    %c0_34 = arith.constant 0 : index
    %c0_35 = arith.constant 0 : index
    %105 = vector.load %arg3[%c0_34, %c0_35] : memref<640x128xbf16, #tpu.memory_space<vmem>>, vector<128x128xbf16>
    %cst_36 = arith.constant dense<0.000000e+00> : vector<2x128xf32>
    %106 = tpu.matmul %104, %105, %cst_36 {dimension_numbers = #tpu.dot_dimension_numbers<[1], [0], [0], [1], [0, 0, 1, 1], [], []>} : vector<2x128xbf16>, vector<128x128xbf16>, vector<2x128xf32> -> vector<2x128xf32>
    %107 = tpu.iota {dimensions = array<i32: 1>} : vector<2x128xi32>
    %c64_i32_37 = arith.constant 64 : i32
    %108 = vector.broadcast %c64_i32_37 : i32 to vector<2x128xi32>
    %109 = arith.cmpi slt, %107, %108 : vector<2x128xi32>
    %cst_38 = arith.constant 0x7F800000 : f32
    %110 = vector.broadcast %cst_38 : f32 to vector<2x128xf32>
    %111 = arith.select %109, %97, %110 : vector<2x128xi1>, vector<2x128xf32>
    %112 = vector.shape_cast %111 : vector<2x128xf32> to vector<1x2x128xf32>
    %cst_39 = arith.constant dense<0x7F800000> : vector<1xf32>
    %113 = vector.multi_reduction <minimumf>, %112, %cst_39 [1, 2] : vector<1x2x128xf32> to vector<1xf32>
    %114 = vector.shape_cast %113 : vector<1xf32> to vector<1x1x1xf32>
    %115 = vector.extract %114[0, 0, 0] : f32 from vector<1x1x1xf32>
    %116 = vector.broadcast %115 : f32 to vector<1x1xf32>
    %cst_40 = arith.constant 0xFF800000 : f32
    %117 = vector.broadcast %cst_40 : f32 to vector<2x128xf32>
    %118 = arith.select %109, %97, %117 : vector<2x128xi1>, vector<2x128xf32>
    %119 = vector.shape_cast %118 : vector<2x128xf32> to vector<1x2x128xf32>
    %cst_41 = arith.constant dense<0xFF800000> : vector<1xf32>
    %120 = vector.multi_reduction <maximumf>, %119, %cst_41 [1, 2] : vector<1x2x128xf32> to vector<1xf32>
    %121 = vector.shape_cast %120 : vector<1xf32> to vector<1x1x1xf32>
    %122 = vector.extract %121[0, 0, 0] : f32 from vector<1x1x1xf32>
    %123 = vector.broadcast %122 : f32 to vector<1x1xf32>
    %124 = arith.subf %123, %116 : vector<1x1xf32>
    %125 = tpu.reciprocal %124 : vector<1x1xf32> -> vector<1x1xf32>
    %126 = vector.broadcast %116 : vector<1x1xf32> to vector<2x128xf32>
    %127 = arith.subf %97, %126 : vector<2x128xf32>
    %cst_42 = arith.constant 2.000000e+00 : f32
    %128 = vector.broadcast %cst_42 : f32 to vector<1x1xf32>
    %129 = arith.mulf %128, %125 : vector<1x1xf32>
    %130 = vector.broadcast %129 : vector<1x1xf32> to vector<2x128xf32>
    %131 = arith.mulf %127, %130 : vector<2x128xf32>
    %cst_43 = arith.constant 1.000000e+00 : f32
    %132 = vector.broadcast %cst_43 : f32 to vector<2x128xf32>
    %133 = arith.subf %131, %132 : vector<2x128xf32>
    %cst_44 = arith.constant 1.000000e+00 : f32
    %134 = vector.broadcast %cst_44 : f32 to vector<2x128xf32>
    %135 = arith.truncf %134 : vector<2x128xf32> to vector<2x128xbf16>
    %c128 = arith.constant 128 : index
    %c0_45 = arith.constant 0 : index
    %136 = vector.load %arg3[%c128, %c0_45] : memref<640x128xbf16, #tpu.memory_space<vmem>>, vector<128x128xbf16>
    %cst_46 = arith.constant dense<0.000000e+00> : vector<2x128xf32>
    %137 = tpu.matmul %135, %136, %cst_46 {dimension_numbers = #tpu.dot_dimension_numbers<[1], [0], [0], [1], [0, 0, 1, 1], [], []>} : vector<2x128xbf16>, vector<128x128xbf16>, vector<2x128xf32> -> vector<2x128xf32>
    %138 = arith.addf %106, %137 : vector<2x128xf32>
    %139 = arith.truncf %133 : vector<2x128xf32> to vector<2x128xbf16>
    %c256 = arith.constant 256 : index
    %c0_47 = arith.constant 0 : index
    %140 = vector.load %arg3[%c256, %c0_47] : memref<640x128xbf16, #tpu.memory_space<vmem>>, vector<128x128xbf16>
    %cst_48 = arith.constant dense<0.000000e+00> : vector<2x128xf32>
    %141 = tpu.matmul %139, %140, %cst_48 {dimension_numbers = #tpu.dot_dimension_numbers<[1], [0], [0], [1], [0, 0, 1, 1], [], []>} : vector<2x128xbf16>, vector<128x128xbf16>, vector<2x128xf32> -> vector<2x128xf32>
    %142 = arith.addf %138, %141 : vector<2x128xf32>
    %cst_49 = arith.constant 3.000000e+00 : f32
    %143 = vector.broadcast %cst_49 : f32 to vector<2x128xf32>
    %144 = arith.mulf %143, %133 : vector<2x128xf32>
    %145 = arith.mulf %144, %133 : vector<2x128xf32>
    %cst_50 = arith.constant 1.000000e+00 : f32
    %146 = vector.broadcast %cst_50 : f32 to vector<2x128xf32>
    %147 = arith.mulf %146, %134 : vector<2x128xf32>
    %148 = arith.subf %145, %147 : vector<2x128xf32>
    %cst_51 = arith.constant 5.000000e-01 : f32
    %149 = vector.broadcast %cst_51 : f32 to vector<2x128xf32>
    %150 = arith.mulf %148, %149 : vector<2x128xf32>
    %151 = arith.truncf %150 : vector<2x128xf32> to vector<2x128xbf16>
    %c384 = arith.constant 384 : index
    %c0_52 = arith.constant 0 : index
    %152 = vector.load %arg3[%c384, %c0_52] : memref<640x128xbf16, #tpu.memory_space<vmem>>, vector<128x128xbf16>
    %cst_53 = arith.constant dense<0.000000e+00> : vector<2x128xf32>
    %153 = tpu.matmul %151, %152, %cst_53 {dimension_numbers = #tpu.dot_dimension_numbers<[1], [0], [0], [1], [0, 0, 1, 1], [], []>} : vector<2x128xbf16>, vector<128x128xbf16>, vector<2x128xf32> -> vector<2x128xf32>
    %154 = arith.addf %142, %153 : vector<2x128xf32>
    %cst_54 = arith.constant 5.000000e+00 : f32
    %155 = vector.broadcast %cst_54 : f32 to vector<2x128xf32>
    %156 = arith.mulf %155, %133 : vector<2x128xf32>
    %157 = arith.mulf %156, %150 : vector<2x128xf32>
    %cst_55 = arith.constant 2.000000e+00 : f32
    %158 = vector.broadcast %cst_55 : f32 to vector<2x128xf32>
    %159 = arith.mulf %158, %133 : vector<2x128xf32>
    %160 = arith.subf %157, %159 : vector<2x128xf32>
    %cst_56 = arith.constant 0.333333343 : f32
    %161 = vector.broadcast %cst_56 : f32 to vector<2x128xf32>
    %162 = arith.mulf %160, %161 : vector<2x128xf32>
    %163 = arith.truncf %162 : vector<2x128xf32> to vector<2x128xbf16>
    %c512 = arith.constant 512 : index
    %c0_57 = arith.constant 0 : index
    %164 = vector.load %arg3[%c512, %c0_57] : memref<640x128xbf16, #tpu.memory_space<vmem>>, vector<128x128xbf16>
    %cst_58 = arith.constant dense<0.000000e+00> : vector<2x128xf32>
    %165 = tpu.matmul %163, %164, %cst_58 {dimension_numbers = #tpu.dot_dimension_numbers<[1], [0], [0], [1], [0, 0, 1, 1], [], []>} : vector<2x128xbf16>, vector<128x128xbf16>, vector<2x128xf32> -> vector<2x128xf32>
    %166 = arith.addf %154, %165 : vector<2x128xf32>
    %cst_59 = arith.constant dense<0.000000e+00> : vector<2xf32>
    %167 = vector.multi_reduction <add>, %166, %cst_59 [1] : vector<2x128xf32> to vector<2xf32>
    %168 = vector.shape_cast %167 : vector<2xf32> to vector<2x1xf32>
    %cst_60 = arith.constant 3.125000e-02 : f32
    %169 = vector.broadcast %cst_60 : f32 to vector<2x1xf32>
    %170 = arith.mulf %168, %169 : vector<2x1xf32>
    %171 = tpu.iota {dimensions = array<i32: 1>} : vector<2x128xi32>
    %c32_i32 = arith.constant 32 : i32
    %172 = vector.broadcast %c32_i32 : i32 to vector<2x128xi32>
    %173 = arith.cmpi slt, %171, %172 : vector<2x128xi32>
    %174 = vector.broadcast %170 : vector<2x1xf32> to vector<2x128xf32>
    %175 = arith.subf %166, %174 : vector<2x128xf32>
    %cst_61 = arith.constant 0.000000e+00 : f32
    %176 = vector.broadcast %cst_61 : f32 to vector<2x128xf32>
    %177 = arith.select %173, %175, %176 : vector<2x128xi1>, vector<2x128xf32>
    %178 = arith.mulf %177, %177 : vector<2x128xf32>
    %cst_62 = arith.constant dense<0.000000e+00> : vector<2xf32>
    %179 = vector.multi_reduction <add>, %178, %cst_62 [1] : vector<2x128xf32> to vector<2xf32>
    %180 = vector.shape_cast %179 : vector<2xf32> to vector<2x1xf32>
    %cst_63 = arith.constant 3.125000e-02 : f32
    %181 = vector.broadcast %cst_63 : f32 to vector<2x1xf32>
    %182 = arith.mulf %180, %181 : vector<2x1xf32>
    %183 = vector.broadcast %170 : vector<2x1xf32> to vector<2x128xf32>
    %184 = arith.subf %166, %183 : vector<2x128xf32>
    %cst_64 = arith.constant 9.99999974E-6 : f32
    %185 = vector.broadcast %cst_64 : f32 to vector<2x1xf32>
    %186 = arith.addf %182, %185 : vector<2x1xf32>
    %187 = math.rsqrt %186 : vector<2x1xf32>
    %188 = vector.broadcast %187 : vector<2x1xf32> to vector<2x128xf32>
    %189 = arith.mulf %184, %188 : vector<2x128xf32>
    %c0_65 = arith.constant 0 : index
    %c0_66 = arith.constant 0 : index
    %190 = vector.load %arg4[%c0_65, %c0_66] : memref<2x128xf32, #tpu.memory_space<vmem>>, vector<1x128xf32>
    %191 = vector.broadcast %190 : vector<1x128xf32> to vector<2x128xf32>
    %192 = arith.mulf %189, %191 : vector<2x128xf32>
    %c1_67 = arith.constant 1 : index
    %c0_68 = arith.constant 0 : index
    %193 = vector.load %arg4[%c1_67, %c0_68] : memref<2x128xf32, #tpu.memory_space<vmem>>, vector<1x128xf32>
    %194 = vector.broadcast %193 : vector<1x128xf32> to vector<2x128xf32>
    %195 = arith.addf %192, %194 : vector<2x128xf32>
    %196 = arith.negf %195 : vector<2x128xf32>
    %197 = math.exp %196 : vector<2x128xf32>
    %cst_69 = arith.constant 1.000000e+00 : f32
    %198 = vector.broadcast %cst_69 : f32 to vector<2x128xf32>
    %199 = arith.addf %198, %197 : vector<2x128xf32>
    %200 = arith.divf %198, %199 : vector<2x128xf32>
    %201 = arith.mulf %195, %200 : vector<2x128xf32>
    %c0_70 = arith.constant 0 : index
    %c0_71 = arith.constant 0 : index
    %202 = vector.load %arg5[%c0_70, %c0_71] : memref<2x128xf32, #tpu.memory_space<vmem>>, vector<2x128xf32>
    tpu.vector_store %arg5[%c0_70, %c0_71], %201 {strides = array<i32>} : memref<2x128xf32, #tpu.memory_space<vmem>>, vector<2x128xf32>,
    return
  }
}

</mosaic_0001>

<llo_original>
// kernel: tpu_custom_call.1
$region0: #{tpu_custom_call.1}
  #allocation0 [shape = 'u32[]', space=smem, size = 0x4, offset = 0x4, fixed_abs, tag = 'smem constant byte address 0x4 - core index']
  #allocation1 [shape = 'u32[144,128]{1,0:T(1,128)}', space=vmem, size = 0x12000, scoped, tag = 'internal scratch']
  %s0 = inlined_call_operand.hbm [shape: f32[2,1024], index: 0, kind: input, shape index: {}]
  %s1 = inlined_call_operand.hbm [shape: bf16[5120,128], index: 1, kind: input, shape index: {}]
  %s2 = inlined_call_operand.hbm [shape: f32[2,128], index: 2, kind: input, shape index: {}]
  %s3 = inlined_call_operand.hbm [shape: bf16[640,128], index: 3, kind: input, shape index: {}]
  %s4 = inlined_call_operand.hbm [shape: f32[2,128], index: 4, kind: input, shape index: {}]
  %s5 = inlined_call_operand.hbm [shape: f32[2,128], index: 5, kind: output, shape index: {}]
  %s6 = sld [smem:[#allocation0]]
  $region50: #{tpu_custom_call.1} parent=0
    _
  %s8 = ssub.s32 1, %s6
  %s9 = scalar_select 0, %s8, %s6
  $region1: #{tpu_custom_call.1} parent=0
    #allocation2 [shape = 'u8[8192]{0}', space=vmem, size = 0x2000, scoped, tag = 'input window, operand 0, single buffered']
    #allocation3 [shape = 's32[1]{0}', space=sflag, size = 0x4, scoped, tag = 'scoped memory for tpu_custom_call.1']
    #allocation4 [shape = 's32[1]{0}', space=sflag, size = 0x4, scoped, tag = 'scoped memory for tpu_custom_call.1']
    #allocation5 [shape = 'u8[1310720]{0}', space=vmem, size = 0x140000, scoped, tag = 'input window, operand 1, single buffered']
    #allocation6 [shape = 's32[1]{0}', space=sflag, size = 0x4, scoped, tag = 'scoped memory for tpu_custom_call.1']
    #allocation7 [shape = 'u8[1024]{0}', space=vmem, size = 0x400, scoped, tag = 'input window, operand 2, single buffered']
    #allocation8 [shape = 'u8[163840]{0}', space=vmem, size = 0x28000, scoped, tag = 'input window, operand 3, single buffered']
    #allocation9 [shape = 's32[1]{0}', space=sflag, size = 0x4, scoped, tag = 'scoped memory for tpu_custom_call.1']
    #allocation10 [shape = 'u8[1024]{0}', space=vmem, size = 0x400, scoped, tag = 'input window, operand 4, single buffered']
    #allocation11 [shape = 'u8[1024]{0}', space=vmem, size = 0x400, scoped, tag = 'output window, operand 0, single buffered']
    %10 = vsyncpa [#allocation3], 0
    %11 = vsyncpa [#allocation6], 0
    %12 = vsyncpa [#allocation9], 0
    %13 = vsyncpa [#allocation4], 0
    // Predicated region
    $region2: #{tpu_custom_call.1} parent=1 // pred_check
      _
    $region3: #{tpu_custom_call.1} parent=1 // pred_check_branch
      %15 = sbr.rel (0) target = $region5
    $region4: #{tpu_custom_call.1} parent=1 // pred_region
      %s17 = ssub.s32 256, 256
      %18 = vsyncadd [#allocation3], %s17
      %s20 = sshll.u32 [#allocation2], 4
      %s21 = int_to_ptr.vmem [resolvable:$true] %s20
      %23 = dma.hbm_to_vmem [thread:$0]  %s0, 256, %s21, [#allocation3]
    $region5: #{tpu_custom_call.1} parent=1 // pred_fallthru
      _
    // Predicated region
    $region6: #{tpu_custom_call.1} parent=1 // pred_check
      _
    $region7: #{tpu_custom_call.1} parent=1 // pred_check_branch
      %25 = sbr.rel (0) target = $region9
    $region8: #{tpu_custom_call.1} parent=1 // pred_region
      %s27 = ssub.s32 40960, 40960
      %28 = vsyncadd [#allocation6], %s27
      %s29 = sshll.u32 [#allocation5], 4
      %s30 = int_to_ptr.vmem [resolvable:$true] %s29
      %35 = dma.hbm_to_vmem [thread:$0]  %s1, 40960, %s30, [#allocation6], 64, 64, 4
    $region9: #{tpu_custom_call.1} parent=1 // pred_fallthru
      _
    // Predicated region
    $region10: #{tpu_custom_call.1} parent=1 // pred_check
      _
    $region11: #{tpu_custom_call.1} parent=1 // pred_check_branch
      %37 = sbr.rel (0) target = $region13
    $region12: #{tpu_custom_call.1} parent=1 // pred_region
      %s39 = ssub.s32 32, 32
      %40 = vsyncadd [#allocation6], %s39
      %s42 = sshll.u32 [#allocation7], 4
      %s43 = int_to_ptr.vmem [resolvable:$true] %s42
      %45 = dma.hbm_to_vmem [thread:$0]  %s2, 32, %s43, [#allocation6]
    $region13: #{tpu_custom_call.1} parent=1 // pred_fallthru
      _
    // Predicated region
    $region14: #{tpu_custom_call.1} parent=1 // pred_check
      _
    $region15: #{tpu_custom_call.1} parent=1 // pred_check_branch
      %47 = sbr.rel (0) target = $region17
    $region16: #{tpu_custom_call.1} parent=1 // pred_region
      %s49 = ssub.s32 5120, 5120
      %50 = vsyncadd [#allocation9], %s49
      %s51 = sshll.u32 [#allocation8], 4
      %s52 = int_to_ptr.vmem [resolvable:$true] %s51
      %57 = dma.hbm_to_vmem [thread:$0]  %s3, 5120, %s52, [#allocation9], 64, 64, 4
    $region17: #{tpu_custom_call.1} parent=1 // pred_fallthru
      _
    // Predicated region
    $region18: #{tpu_custom_call.1} parent=1 // pred_check
      _
    $region19: #{tpu_custom_call.1} parent=1 // pred_check_branch
      %59 = sbr.rel (0) target = $region21
    $region20: #{tpu_custom_call.1} parent=1 // pred_region
      %s61 = ssub.s32 32, 32
      %62 = vsyncadd [#allocation9], %s61
      %s64 = sshll.u32 [#allocation10], 4
      %s65 = int_to_ptr.vmem [resolvable:$true] %s64
      %67 = dma.hbm_to_vmem [thread:$0]  %s4, 32, %s65, [#allocation9]
    $region21: #{tpu_custom_call.1} parent=1 // pred_fallthru
      _
    // Predicated region
    $region22: #{tpu_custom_call.1} parent=1 // pred_check
      _
    $region23: #{tpu_custom_call.1} parent=1 // pred_check_branch
      %69 = sbr.rel (0) target = $region25
    $region24: #{tpu_custom_call.1} parent=1 // pred_region
      %70 = dma.done [#allocation3], 256
    $region25: #{tpu_custom_call.1} parent=1 // pred_fallthru
      _
    // Predicated region
    $region26: #{tpu_custom_call.1} parent=1 // pred_check
      _
    $region27: #{tpu_custom_call.1} parent=1 // pred_check_branch
      %72 = sbr.rel (0) target = $region29
    $region28: #{tpu_custom_call.1} parent=1 // pred_region
      %73 = dma.done [#allocation6], 40960
    $region29: #{tpu_custom_call.1} parent=1 // pred_fallthru
      _
    // Predicated region
    $region30: #{tpu_custom_call.1} parent=1 // pred_check
      _
    $region31: #{tpu_custom_call.1} parent=1 // pred_check_branch
      %75 = sbr.rel (0) target = $region33
    $region32: #{tpu_custom_call.1} parent=1 // pred_region
      %76 = dma.done [#allocation6], 32
    $region33: #{tpu_custom_call.1} parent=1 // pred_fallthru
      _
    // Predicated region
    $region34: #{tpu_custom_call.1} parent=1 // pred_check
      _
    $region35: #{tpu_custom_call.1} parent=1 // pred_check_branch
      %78 = sbr.rel (0) target = $region37
    $region36: #{tpu_custom_call.1} parent=1 // pred_region
      %79 = dma.done [#allocation9], 5120
    $region37: #{tpu_custom_call.1} parent=1 // pred_fallthru
      _
    // Predicated region
    $region38: #{tpu_custom_call.1} parent=1 // pred_check
      _
    $region39: #{tpu_custom_call.1} parent=1 // pred_check_branch
      %81 = sbr.rel (0) target = $region41
    $region40: #{tpu_custom_call.1} parent=1 // pred_region
      %82 = dma.done [#allocation9], 32
    $region41: #{tpu_custom_call.1} parent=1 // pred_fallthru
      _
    %v85 = vld [vmem:[#allocation2] sm:$0xff]
    %v86 = vld [vmem:[#allocation2 + $0x8] sm:$0xff]
    %v87 = vxor.u32 %v85, 2147483648
    %v88 = vxor.u32 %v86, 2147483648
    %v89 = vmul.f32 %v87, 1.442695
    %v90 = vpow.pop %v89
    %v91 = vmul.f32 %v88, 1.442695
    %v92 = vpow.pop %v91
    %v93 = vadd.f32 %v90, 1.0
    %v94 = vadd.f32 %v92, 1.0
    %v95 = vrcp.pop %v93
    %v96 = vmul.f32 1.0, %v95
    %v97 = vrcp.pop %v94
    %v98 = vmul.f32 1.0, %v97
    %v99 = vmul.f32 %v85, %v96
    %v100 = vmul.f32 %v86, %v98
    %v103 = vcombine.high %v99, %v99
    %v105 = vunpack.c.l.s4 1983009808
    %v106 = vunpack.c.0.s8 %v105
    %v107 = vlaneseq
    %v108 = vshrl.u32 %v107, 7
    %v109 = vsub.s32 %v106, %v108
    %v110 = vrot.slane %v99, %v109
    %v112 = vunpack.c.l.s4 1983009808
    %v113 = vunpack.c.0.s8 %v112
    %v114 = vlaneseq
    %v115 = vshrl.u32 %v114, 7
    %v116 = vsub.s32 %v113, %v115
    %v117 = vrot.slane %v103, %v116
    %v118 = vcombine.high %v110, %v110
    %v119 = vcombine.high %v117, %v117
    %v120 = vcombine.high %v100, %v100
    %v122 = vunpack.c.l.s4 1983009808
    %v123 = vunpack.c.0.s8 %v122
    %v124 = vlaneseq
    %v125 = vshrl.u32 %v124, 7
    %v126 = vsub.s32 %v123, %v125
    %v127 = vrot.slane %v100, %v126
    %v129 = vunpack.c.l.s4 1983009808
    %v130 = vunpack.c.0.s8 %v129
    %v131 = vlaneseq
    %v132 = vshrl.u32 %v131, 7
    %v133 = vsub.s32 %v130, %v132
    %v134 = vrot.slane %v120, %v133
    %v135 = vcombine.high %v127, %v127
    %v136 = vcombine.high %v134, %v134
    %v145 = vpack.c.bf16 %v110, %v110
    %v146 = vpack.c.bf16 %v118, %v118
    %v147 = vpack.c.bf16 %v117, %v117
    %v148 = vpack.c.bf16 %v119, %v119
    %v149 = vpack.c.bf16 %v127, %v127
    %v150 = vpack.c.bf16 %v135, %v135
    %v151 = vpack.c.bf16 %v134, %v134
    %v152 = vpack.c.bf16 %v136, %v136
    %v153 = vld [vmem:[#allocation5] sm:$0xf]
    %v154 = vld [vmem:[#allocation5 + $0x4] sm:$0xf]
    %v155 = vld [vmem:[#allocation5 + $0x8] sm:$0xf]
    %v156 = vld [vmem:[#allocation5 + $0xc] sm:$0xf]
    %v157 = vld [vmem:[#allocation5 + $0x10] sm:$0xf]
    %v158 = vld [vmem:[#allocation5 + $0x14] sm:$0xf]
    %v159 = vld [vmem:[#allocation5 + $0x18] sm:$0xf]
    %v160 = vld [vmem:[#allocation5 + $0x1c] sm:$0xf]
    %v161 = vld [vmem:[#allocation5 + $0x20] sm:$0xf]
    %v162 = vld [vmem:[#allocation5 + $0x24] sm:$0xf]
    %v163 = vld [vmem:[#allocation5 + $0x28] sm:$0xf]
    %v164 = vld [vmem:[#allocation5 + $0x2c] sm:$0xf]
    %v165 = vld [vmem:[#allocation5 + $0x30] sm:$0xf]
    %v166 = vld [vmem:[#allocation5 + $0x34] sm:$0xf]
    %v167 = vld [vmem:[#allocation5 + $0x38] sm:$0xf]
    %v168 = vld [vmem:[#allocation5 + $0x3c] sm:$0xf]
    %v169 = vld [vmem:[#allocation5 + $0x40] sm:$0xf]
    %v170 = vld [vmem:[#allocation5 + $0x44] sm:$0xf]
    %v171 = vld [vmem:[#allocation5 + $0x48] sm:$0xf]
    %v172 = vld [vmem:[#allocation5 + $0x4c] sm:$0xf]
    %v173 = vld [vmem:[#allocation5 + $0x50] sm:$0xf]
    %v174 = vld [vmem:[#allocation5 + $0x54] sm:$0xf]
    %v175 = vld [vmem:[#allocation5 + $0x58] sm:$0xf]
    %v176 = vld [vmem:[#allocation5 + $0x5c] sm:$0xf]
    %v177 = vld [vmem:[#allocation5 + $0x60] sm:$0xf]
    %v178 = vld [vmem:[#allocation5 + $0x64] sm:$0xf]
    %v179 = vld [vmem:[#allocation5 + $0x68] sm:$0xf]
    %v180 = vld [vmem:[#allocation5 + $0x6c] sm:$0xf]
    %v181 = vld [vmem:[#allocation5 + $0x70] sm:$0xf]
    %v182 = vld [vmem:[#allocation5 + $0x74] sm:$0xf]
    %v183 = vld [vmem:[#allocation5 + $0x78] sm:$0xf]
    %v184 = vld [vmem:[#allocation5 + $0x7c] sm:$0xf]
    %v185 = vld [vmem:[#allocation5 + $0x80] sm:$0xf]
    %v186 = vld [vmem:[#allocation5 + $0x84] sm:$0xf]
    %v187 = vld [vmem:[#allocation5 + $0x88] sm:$0xf]
    %v188 = vld [vmem:[#allocation5 + $0x8c] sm:$0xf]
    %v189 = vld [vmem:[#allocation5 + $0x90] sm:$0xf]
    %v190 = vld [vmem:[#allocation5 + $0x94] sm:$0xf]
    %v191 = vld [vmem:[#allocation5 + $0x98] sm:$0xf]
    %v192 = vld [vmem:[#allocation5 + $0x9c] sm:$0xf]
    %v193 = vld [vmem:[#allocation5 + $0xa0] sm:$0xf]
    %v194 = vld [vmem:[#allocation5 + $0xa4] sm:$0xf]
    %v195 = vld [vmem:[#allocation5 + $0xa8] sm:$0xf]
    %v196 = vld [vmem:[#allocation5 + $0xac] sm:$0xf]
    %v197 = vld [vmem:[#allocation5 + $0xb0] sm:$0xf]
    %v198 = vld [vmem:[#allocation5 + $0xb4] sm:$0xf]
    %v199 = vld [vmem:[#allocation5 + $0xb8] sm:$0xf]
    %v200 = vld [vmem:[#allocation5 + $0xbc] sm:$0xf]
    %v201 = vld [vmem:[#allocation5 + $0xc0] sm:$0xf]
    %v202 = vld [vmem:[#allocation5 + $0xc4] sm:$0xf]
    %v203 = vld [vmem:[#allocation5 + $0xc8] sm:$0xf]
    %v204 = vld [vmem:[#allocation5 + $0xcc] sm:$0xf]
    %v205 = vld [vmem:[#allocation5 + $0xd0] sm:$0xf]
    %v206 = vld [vmem:[#allocation5 + $0xd4] sm:$0xf]
    %v207 = vld [vmem:[#allocation5 + $0xd8] sm:$0xf]
    %v208 = vld [vmem:[#allocation5 + $0xdc] sm:$0xf]
    %v209 = vld [vmem:[#allocation5 + $0xe0] sm:$0xf]
    %v210 = vld [vmem:[#allocation5 + $0xe4] sm:$0xf]
    %v211 = vld [vmem:[#allocation5 + $0xe8] sm:$0xf]
    %v212 = vld [vmem:[#allocation5 + $0xec] sm:$0xf]
    %v213 = vld [vmem:[#allocation5 + $0xf0] sm:$0xf]
    %v214 = vld [vmem:[#allocation5 + $0xf4] sm:$0xf]
    %v215 = vld [vmem:[#allocation5 + $0xf8] sm:$0xf]
    %v216 = vld [vmem:[#allocation5 + $0xfc] sm:$0xf]
    %v217 = vld [vmem:[#allocation5 + $0x100] sm:$0xf]
    %v218 = vld [vmem:[#allocation5 + $0x104] sm:$0xf]
    %v219 = vld [vmem:[#allocation5 + $0x108] sm:$0xf]
    %v220 = vld [vmem:[#allocation5 + $0x10c] sm:$0xf]
    %v221 = vld [vmem:[#allocation5 + $0x110] sm:$0xf]
    %v222 = vld [vmem:[#allocation5 + $0x114] sm:$0xf]
    %v223 = vld [vmem:[#allocation5 + $0x118] sm:$0xf]
    %v224 = vld [vmem:[#allocation5 + $0x11c] sm:$0xf]
    %v225 = vld [vmem:[#allocation5 + $0x120] sm:$0xf]
    %v226 = vld [vmem:[#allocation5 + $0x124] sm:$0xf]
    %v227 = vld [vmem:[#allocation5 + $0x128] sm:$0xf]
    %v228 = vld [vmem:[#allocation5 + $0x12c] sm:$0xf]
    %v229 = vld [vmem:[#allocation5 + $0x130] sm:$0xf]
    %v230 = vld [vmem:[#allocation5 + $0x134] sm:$0xf]
    %v231 = vld [vmem:[#allocation5 + $0x138] sm:$0xf]
    %v232 = vld [vmem:[#allocation5 + $0x13c] sm:$0xf]
    %v233 = vld [vmem:[#allocation5 + $0x140] sm:$0xf]
    %v234 = vld [vmem:[#allocation5 + $0x144] sm:$0xf]
    %v235 = vld [vmem:[#allocation5 + $0x148] sm:$0xf]
    %v236 = vld [vmem:[#allocation5 + $0x14c] sm:$0xf]
    %v237 = vld [vmem:[#allocation5 + $0x150] sm:$0xf]
    %v238 = vld [vmem:[#allocation5 + $0x154] sm:$0xf]
    %v239 = vld [vmem:[#allocation5 + $0x158] sm:$0xf]
    %v240 = vld [vmem:[#allocation5 + $0x15c] sm:$0xf]
    %v241 = vld [vmem:[#allocation5 + $0x160] sm:$0xf]
    %v242 = vld [vmem:[#allocation5 + $0x164] sm:$0xf]
    %v243 = vld [vmem:[#allocation5 + $0x168] sm:$0xf]
    %v244 = vld [vmem:[#allocation5 + $0x16c] sm:$0xf]
    %v245 = vld [vmem:[#allocation5 + $0x170] sm:$0xf]
    %v246 = vld [vmem:[#allocation5 + $0x174] sm:$0xf]
    %v247 = vld [vmem:[#allocation5 + $0x178] sm:$0xf]
    %v248 = vld [vmem:[#allocation5 + $0x17c] sm:$0xf]
    %v249 = vld [vmem:[#allocation5 + $0x180] sm:$0xf]
    %v250 = vld [vmem:[#allocation5 + $0x184] sm:$0xf]
    %v251 = vld [vmem:[#allocation5 + $0x188] sm:$0xf]
    %v252 = vld [vmem:[#allocation5 + $0x18c] sm:$0xf]
    %v253 = vld [vmem:[#allocation5 + $0x190] sm:$0xf]
    %v254 = vld [vmem:[#allocation5 + $0x194] sm:$0xf]
    %v255 = vld [vmem:[#allocation5 + $0x198] sm:$0xf]
    %v256 = vld [vmem:[#allocation5 + $0x19c] sm:$0xf]
    %v257 = vld [vmem:[#allocation5 + $0x1a0] sm:$0xf]
    %v258 = vld [vmem:[#allocation5 + $0x1a4] sm:$0xf]
    %v259 = vld [vmem:[#allocation5 + $0x1a8] sm:$0xf]
    %v260 = vld [vmem:[#allocation5 + $0x1ac] sm:$0xf]
    %v261 = vld [vmem:[#allocation5 + $0x1b0] sm:$0xf]
    %v262 = vld [vmem:[#allocation5 + $0x1b4] sm:$0xf]
    %v263 = vld [vmem:[#allocation5 + $0x1b8] sm:$0xf]
    %v264 = vld [vmem:[#allocation5 + $0x1bc] sm:$0xf]
    %v265 = vld [vmem:[#allocation5 + $0x1c0] sm:$0xf]
    %v266 = vld [vmem:[#allocation5 + $0x1c4] sm:$0xf]
    %v267 = vld [vmem:[#allocation5 + $0x1c8] sm:$0xf]
    %v268 = vld [vmem:[#allocation5 + $0x1cc] sm:$0xf]
    %v269 = vld [vmem:[#allocation5 + $0x1d0] sm:$0xf]
    %v270 = vld [vmem:[#allocation5 + $0x1d4] sm:$0xf]
    %v271 = vld [vmem:[#allocation5 + $0x1d8] sm:$0xf]
    %v272 = vld [vmem:[#allocation5 + $0x1dc] sm:$0xf]
    %v273 = vld [vmem:[#allocation5 + $0x1e0] sm:$0xf]
    %v274 = vld [vmem:[#allocation5 + $0x1e4] sm:$0xf]
    %v275 = vld [vmem:[#allocation5 + $0x1e8] sm:$0xf]
    %v276 = vld [vmem:[#allocation5 + $0x1ec] sm:$0xf]
    %v277 = vld [vmem:[#allocation5 + $0x1f0] sm:$0xf]
    %v278 = vld [vmem:[#allocation5 + $0x1f4] sm:$0xf]
    %v279 = vld [vmem:[#allocation5 + $0x1f8] sm:$0xf]
    %v280 = vld [vmem:[#allocation5 + $0x1fc] sm:$0xf]
    %v283 = vcombine.high %v85, %v85
    %v285 = vunpack.c.l.s4 1983009808
    %v286 = vunpack.c.0.s8 %v285
    %v287 = vlaneseq
    %v288 = vshrl.u32 %v287, 7
    %v289 = vsub.s32 %v286, %v288
    %v290 = vrot.slane %v85, %v289
    %v292 = vunpack.c.l.s4 1983009808
    %v293 = vunpack.c.0.s8 %v292
    %v294 = vlaneseq
    %v295 = vshrl.u32 %v294, 7
    %v296 = vsub.s32 %v293, %v295
    %v297 = vrot.slane %v283, %v296
    %v298 = vcombine.high %v290, %v290
    %v299 = vcombine.high %v297, %v297
    %v300 = vcombine.high %v86, %v86
    %v302 = vunpack.c.l.s4 1983009808
    %v303 = vunpack.c.0.s8 %v302
    %v304 = vlaneseq
    %v305 = vshrl.u32 %v304, 7
    %v306 = vsub.s32 %v303, %v305
    %v307 = vrot.slane %v86, %v306
    %v309 = vunpack.c.l.s4 1983009808
    %v310 = vunpack.c.0.s8 %v309
    %v311 = vlaneseq
    %v312 = vshrl.u32 %v311, 7
    %v313 = vsub.s32 %v310, %v312
    %v314 = vrot.slane %v300, %v313
    %v315 = vcombine.high %v307, %v307
    %v316 = vcombine.high %v314, %v314
    %vm325 = vcmask 1041408
    %v326 = vsel %vm325, %v290, inf
    %v327 = vsel %vm325, %v298, inf
    %v328 = vsel %vm325, %v297, inf
    %v329 = vsel %vm325, %v299, inf
    %v330 = vsel %vm325, %v307, inf
    %v331 = vmin.f32 %v326, %v330
    %v332 = vsel %vm325, %v315, inf
    %v333 = vmin.f32 %v327, %v332
    %v334 = vsel %vm325, %v314, inf
    %v335 = vmin.f32 %v328, %v334
    %v336 = vsel %vm325, %v316, inf
    %v337 = vmin.f32 %v329, %v336
    %v338 = vmin.f32 %v331, %v333
    %v339 = vmin.f32 %v335, %v337
    %v340 = vmin.f32 %v338, %v339
    %341 = vmin.xlane.f32.xlu0 %v340
    %v342 = vpop.xlane.xlu0 %341
    %v343 = vrot.slane %v342, 4
    %v344 = vmin.f32 %v342, %v343
    %v345 = vrot.slane %v344, 2
    %v346 = vmin.f32 %v344, %v345
    %v347 = vrot.slane %v346, 1
    %v348 = vmin.f32 %v346, %v347
    %s349 = vtos %v348
    %v350 = vstv %s349
    %v351 = vsel %vm325, %v290, -inf
    %v352 = vsel %vm325, %v298, -inf
    %v353 = vsel %vm325, %v297, -inf
    %v354 = vsel %vm325, %v299, -inf
    %v355 = vsel %vm325, %v307, -inf
    %v356 = vmax.f32 %v351, %v355
    %v357 = vsel %vm325, %v315, -inf
    %v358 = vmax.f32 %v352, %v357
    %v359 = vsel %vm325, %v314, -inf
    %v360 = vmax.f32 %v353, %v359
    %v361 = vsel %vm325, %v316, -inf
    %v362 = vmax.f32 %v354, %v361
    %v363 = vmax.f32 %v356, %v358
    %v364 = vmax.f32 %v360, %v362
    %v365 = vmax.f32 %v363, %v364
    %366 = vmax.xlane.f32.xlu0 %v365
    %v367 = vpop.xlane.xlu0 %366
    %v368 = vrot.slane %v367, 4
    %v369 = vmax.f32 %v367, %v368
    %v370 = vrot.slane %v369, 2
    %v371 = vmax.f32 %v369, %v370
    %v372 = vrot.slane %v371, 1
    %v373 = vmax.f32 %v371, %v372
    %s374 = vtos %v373
    %v375 = vstv %s374
    %v376 = vsub.f32 %v375, %v350
    %v377 = vrcp.pop %v376
    %v378 = vsub.f32 %v85, %v350
    %v379 = vsub.f32 %v86, %v350
    %v380 = vmul.f32 %v377, 2.0
    %v381 = vmul.f32 %v378, %v380
    %v382 = vmul.f32 %v379, %v380
    %v383 = vsub.f32 %v381, 1.0
    %v384 = vsub.f32 %v382, 1.0
    %v385 = vld [vmem:[#allocation5 + $0x200] sm:$0xf]
    %v386 = vld [vmem:[#allocation5 + $0x204] sm:$0xf]
    %v387 = vld [vmem:[#allocation5 + $0x208] sm:$0xf]
    %v388 = vld [vmem:[#allocation5 + $0x20c] sm:$0xf]
    %v389 = vld [vmem:[#allocation5 + $0x210] sm:$0xf]
    %v390 = vld [vmem:[#allocation5 + $0x214] sm:$0xf]
    %v391 = vld [vmem:[#allocation5 + $0x218] sm:$0xf]
    %v392 = vld [vmem:[#allocation5 + $0x21c] sm:$0xf]
    %v393 = vld [vmem:[#allocation5 + $0x220] sm:$0xf]
    %v394 = vld [vmem:[#allocation5 + $0x224] sm:$0xf]
    %v395 = vld [vmem:[#allocation5 + $0x228] sm:$0xf]
    %v396 = vld [vmem:[#allocation5 + $0x22c] sm:$0xf]
    %v397 = vld [vmem:[#allocation5 + $0x230] sm:$0xf]
    %v398 = vld [vmem:[#allocation5 + $0x234] sm:$0xf]
    %v399 = vld [vmem:[#allocation5 + $0x238] sm:$0xf]
    %v400 = vld [vmem:[#allocation5 + $0x23c] sm:$0xf]
    %v401 = vld [vmem:[#allocation5 + $0x240] sm:$0xf]
    %v402 = vld [vmem:[#allocation5 + $0x244] sm:$0xf]
    %v403 = vld [vmem:[#allocation5 + $0x248] sm:$0xf]
    %v404 = vld [vmem:[#allocation5 + $0x24c] sm:$0xf]
    %v405 = vld [vmem:[#allocation5 + $0x250] sm:$0xf]
    %v406 = vld [vmem:[#allocation5 + $0x254] sm:$0xf]
    %v407 = vld [vmem:[#allocation5 + $0x258] sm:$0xf]
    %v408 = vld [vmem:[#allocation5 + $0x25c] sm:$0xf]
    %v409 = vld [vmem:[#allocation5 + $0x260] sm:$0xf]
    %v410 = vld [vmem:[#allocation5 + $0x264] sm:$0xf]
    %v411 = vld [vmem:[#allocation5 + $0x268] sm:$0xf]
    %v412 = vld [vmem:[#allocation5 + $0x26c] sm:$0xf]
    %v413 = vld [vmem:[#allocation5 + $0x270] sm:$0xf]
    %v414 = vld [vmem:[#allocation5 + $0x274] sm:$0xf]
    %v415 = vld [vmem:[#allocation5 + $0x278] sm:$0xf]
    %v416 = vld [vmem:[#allocation5 + $0x27c] sm:$0xf]
    %v417 = vld [vmem:[#allocation5 + $0x280] sm:$0xf]
    %v418 = vld [vmem:[#allocation5 + $0x284] sm:$0xf]
    %v419 = vld [vmem:[#allocation5 + $0x288] sm:$0xf]
    %v420 = vld [vmem:[#allocation5 + $0x28c] sm:$0xf]
    %v421 = vld [vmem:[#allocation5 + $0x290] sm:$0xf]
    %v422 = vld [vmem:[#allocation5 + $0x294] sm:$0xf]
    %v423 = vld [vmem:[#allocation5 + $0x298] sm:$0xf]
    %v424 = vld [vmem:[#allocation5 + $0x29c] sm:$0xf]
    %v425 = vld [vmem:[#allocation5 + $0x2a0] sm:$0xf]
    %v426 = vld [vmem:[#allocation5 + $0x2a4] sm:$0xf]
    %v427 = vld [vmem:[#allocation5 + $0x2a8] sm:$0xf]
    %v428 = vld [vmem:[#allocation5 + $0x2ac] sm:$0xf]
    %v429 = vld [vmem:[#allocation5 + $0x2b0] sm:$0xf]
    %v430 = vld [vmem:[#allocation5 + $0x2b4] sm:$0xf]
    %v431 = vld [vmem:[#allocation5 + $0x2b8] sm:$0xf]
    %v432 = vld [vmem:[#allocation5 + $0x2bc] sm:$0xf]
    %v433 = vld [vmem:[#allocation5 + $0x2c0] sm:$0xf]
    %v434 = vld [vmem:[#allocation5 + $0x2c4] sm:$0xf]
    %v435 = vld [vmem:[#allocation5 + $0x2c8] sm:$0xf]
    %v436 = vld [vmem:[#allocation5 + $0x2cc] sm:$0xf]
    %v437 = vld [vmem:[#allocation5 + $0x2d0] sm:$0xf]
    %v438 = vld [vmem:[#allocation5 + $0x2d4] sm:$0xf]
    %v439 = vld [vmem:[#allocation5 + $0x2d8] sm:$0xf]
    %v440 = vld [vmem:[#allocation5 + $0x2dc] sm:$0xf]
    %v441 = vld [vmem:[#allocation5 + $0x2e0] sm:$0xf]
    %v442 = vld [vmem:[#allocation5 + $0x2e4] sm:$0xf]
    %v443 = vld [vmem:[#allocation5 + $0x2e8] sm:$0xf]
    %v444 = vld [vmem:[#allocation5 + $0x2ec] sm:$0xf]
    %v445 = vld [vmem:[#allocation5 + $0x2f0] sm:$0xf]
    %v446 = vld [vmem:[#allocation5 + $0x2f4] sm:$0xf]
    %v447 = vld [vmem:[#allocation5 + $0x2f8] sm:$0xf]
    %v448 = vld [vmem:[#allocation5 + $0x2fc] sm:$0xf]
    %v449 = vld [vmem:[#allocation5 + $0x300] sm:$0xf]
    %v450 = vld [vmem:[#allocation5 + $0x304] sm:$0xf]
    %v451 = vld [vmem:[#allocation5 + $0x308] sm:$0xf]
    %v452 = vld [vmem:[#allocation5 + $0x30c] sm:$0xf]
    %v453 = vld [vmem:[#allocation5 + $0x310] sm:$0xf]
    %v454 = vld [vmem:[#allocation5 + $0x314] sm:$0xf]
    %v455 = vld [vmem:[#allocation5 + $0x318] sm:$0xf]
    %v456 = vld [vmem:[#allocation5 + $0x31c] sm:$0xf]
    %v457 = vld [vmem:[#allocation5 + $0x320] sm:$0xf]
    %v458 = vld [vmem:[#allocation5 + $0x324] sm:$0xf]
    %v459 = vld [vmem:[#allocation5 + $0x328] sm:$0xf]
    %v460 = vld [vmem:[#allocation5 + $0x32c] sm:$0xf]
    %v461 = vld [vmem:[#allocation5 + $0x330] sm:$0xf]
    %v462 = vld [vmem:[#allocation5 + $0x334] sm:$0xf]
    %v463 = vld [vmem:[#allocation5 + $0x338] sm:$0xf]
    %v464 = vld [vmem:[#allocation5 + $0x33c] sm:$0xf]
    %v465 = vld [vmem:[#allocation5 + $0x340] sm:$0xf]
    %v466 = vld [vmem:[#allocation5 + $0x344] sm:$0xf]
    %v467 = vld [vmem:[#allocation5 + $0x348] sm:$0xf]
    %v468 = vld [vmem:[#allocation5 + $0x34c] sm:$0xf]
    %v469 = vld [vmem:[#allocation5 + $0x350] sm:$0xf]
    %v470 = vld [vmem:[#allocation5 + $0x354] sm:$0xf]
    %v471 = vld [vmem:[#allocation5 + $0x358] sm:$0xf]
    %v472 = vld [vmem:[#allocation5 + $0x35c] sm:$0xf]
    %v473 = vld [vmem:[#allocation5 + $0x360] sm:$0xf]
    %v474 = vld [vmem:[#allocation5 + $0x364] sm:$0xf]
    %v475 = vld [vmem:[#allocation5 + $0x368] sm:$0xf]
    %v476 = vld [vmem:[#allocation5 + $0x36c] sm:$0xf]
    %v477 = vld [vmem:[#allocation5 + $0x370] sm:$0xf]
    %v478 = vld [vmem:[#allocation5 + $0x374] sm:$0xf]
    %v479 = vld [vmem:[#allocation5 + $0x378] sm:$0xf]
    %v480 = vld [vmem:[#allocation5 + $0x37c] sm:$0xf]
    %v481 = vld [vmem:[#allocation5 + $0x380] sm:$0xf]
    %v482 = vld [vmem:[#allocation5 + $0x384] sm:$0xf]
    %v483 = vld [vmem:[#allocation5 + $0x388] sm:$0xf]
    %v484 = vld [vmem:[#allocation5 + $0x38c] sm:$0xf]
    %v485 = vld [vmem:[#allocation5 + $0x390] sm:$0xf]
    %v486 = vld [vmem:[#allocation5 + $0x394] sm:$0xf]
    %v487 = vld [vmem:[#allocation5 + $0x398] sm:$0xf]
    %v488 = vld [vmem:[#allocation5 + $0x39c] sm:$0xf]
    %v489 = vld [vmem:[#allocation5 + $0x3a0] sm:$0xf]
    %v490 = vld [vmem:[#allocation5 + $0x3a4] sm:$0xf]
    %v491 = vld [vmem:[#allocation5 + $0x3a8] sm:$0xf]
    %v492 = vld [vmem:[#allocation5 + $0x3ac] sm:$0xf]
    %v493 = vld [vmem:[#allocation5 + $0x3b0] sm:$0xf]
    %v494 = vld [vmem:[#allocation5 + $0x3b4] sm:$0xf]
    %v495 = vld [vmem:[#allocation5 + $0x3b8] sm:$0xf]
    %v496 = vld [vmem:[#allocation5 + $0x3bc] sm:$0xf]
    %v497 = vld [vmem:[#allocation5 + $0x3c0] sm:$0xf]
    %v498 = vld [vmem:[#allocation5 + $0x3c4] sm:$0xf]
    %v499 = vld [vmem:[#allocation5 + $0x3c8] sm:$0xf]
    %v500 = vld [vmem:[#allocation5 + $0x3cc] sm:$0xf]
    %v501 = vld [vmem:[#allocation5 + $0x3d0] sm:$0xf]
    %v502 = vld [vmem:[#allocation5 + $0x3d4] sm:$0xf]
    %v503 = vld [vmem:[#allocation5 + $0x3d8] sm:$0xf]
    %v504 = vld [vmem:[#allocation5 + $0x3dc] sm:$0xf]
    %v505 = vld [vmem:[#allocation5 + $0x3e0] sm:$0xf]
    %v506 = vld [vmem:[#allocation5 + $0x3e4] sm:$0xf]
    %v507 = vld [vmem:[#allocation5 + $0x3e8] sm:$0xf]
    %v508 = vld [vmem:[#allocation5 + $0x3ec] sm:$0xf]
    %v509 = vld [vmem:[#allocation5 + $0x3f0] sm:$0xf]
    %v510 = vld [vmem:[#allocation5 + $0x3f4] sm:$0xf]
    %v511 = vld [vmem:[#allocation5 + $0x3f8] sm:$0xf]
    %v512 = vld [vmem:[#allocation5 + $0x3fc] sm:$0xf]
    %v641 = vunpack.c.l.b16 %v385
    %v642 = vunpack.c.l.b16 %v386
    %v643 = vunpack.c.l.b16 %v387
    %v644 = vunpack.c.l.b16 %v388
    %v645 = vunpack.c.l.b16 %v389
    %v646 = vunpack.c.l.b16 %v390
    %v647 = vunpack.c.l.b16 %v391
    %v648 = vunpack.c.l.b16 %v392
    %v649 = vunpack.c.l.b16 %v393
    %v650 = vunpack.c.l.b16 %v394
    %v651 = vunpack.c.l.b16 %v395
    %v652 = vunpack.c.l.b16 %v396
    %v653 = vunpack.c.l.b16 %v397
    %v654 = vunpack.c.l.b16 %v398
    %v655 = vunpack.c.l.b16 %v399
    %v656 = vunpack.c.l.b16 %v400
    %v657 = vunpack.c.l.b16 %v401
    %v658 = vunpack.c.l.b16 %v402
    %v659 = vunpack.c.l.b16 %v403
    %v660 = vunpack.c.l.b16 %v404
    %v661 = vunpack.c.l.b16 %v405
    %v662 = vunpack.c.l.b16 %v406
    %v663 = vunpack.c.l.b16 %v407
    %v664 = vunpack.c.l.b16 %v408
    %v665 = vunpack.c.l.b16 %v409
    %v666 = vunpack.c.l.b16 %v410
    %v667 = vunpack.c.l.b16 %v411
    %v668 = vunpack.c.l.b16 %v412
    %v669 = vunpack.c.l.b16 %v413
    %v670 = vunpack.c.l.b16 %v414
    %v671 = vunpack.c.l.b16 %v415
    %v672 = vunpack.c.l.b16 %v416
    %v673 = vunpack.c.l.b16 %v417
    %v674 = vunpack.c.l.b16 %v418
    %v675 = vunpack.c.l.b16 %v419
    %v676 = vunpack.c.l.b16 %v420
    %v677 = vunpack.c.l.b16 %v421
    %v678 = vunpack.c.l.b16 %v422
    %v679 = vunpack.c.l.b16 %v423
    %v680 = vunpack.c.l.b16 %v424
    %v681 = vunpack.c.l.b16 %v425
    %v682 = vunpack.c.l.b16 %v426
    %v683 = vunpack.c.l.b16 %v427
    %v684 = vunpack.c.l.b16 %v428
    %v685 = vunpack.c.l.b16 %v429
    %v686 = vunpack.c.l.b16 %v430
    %v687 = vunpack.c.l.b16 %v431
    %v688 = vunpack.c.l.b16 %v432
    %v689 = vunpack.c.l.b16 %v433
    %v690 = vunpack.c.l.b16 %v434
    %v691 = vunpack.c.l.b16 %v435
    %v692 = vunpack.c.l.b16 %v436
    %v693 = vunpack.c.l.b16 %v437
    %v694 = vunpack.c.l.b16 %v438
    %v695 = vunpack.c.l.b16 %v439
    %v696 = vunpack.c.l.b16 %v440
    %v697 = vunpack.c.l.b16 %v441
    %v698 = vunpack.c.l.b16 %v442
    %v699 = vunpack.c.l.b16 %v443
    %v700 = vunpack.c.l.b16 %v444
    %v701 = vunpack.c.l.b16 %v445
    %v702 = vunpack.c.l.b16 %v446
    %v703 = vunpack.c.l.b16 %v447
    %v704 = vunpack.c.l.b16 %v448
    %v705 = vunpack.c.l.b16 %v449
    %v706 = vunpack.c.l.b16 %v450
    %v707 = vunpack.c.l.b16 %v451
    %v708 = vunpack.c.l.b16 %v452
    %v709 = vunpack.c.l.b16 %v453
    %v710 = vunpack.c.l.b16 %v454
    %v711 = vunpack.c.l.b16 %v455
    %v712 = vunpack.c.l.b16 %v456
    %v713 = vunpack.c.l.b16 %v457
    %v714 = vunpack.c.l.b16 %v458
    %v715 = vunpack.c.l.b16 %v459
    %v716 = vunpack.c.l.b16 %v460
    %v717 = vunpack.c.l.b16 %v461
    %v718 = vunpack.c.l.b16 %v462
    %v719 = vunpack.c.l.b16 %v463
    %v720 = vunpack.c.l.b16 %v464
    %v721 = vunpack.c.l.b16 %v465
    %v722 = vunpack.c.l.b16 %v466
    %v723 = vunpack.c.l.b16 %v467
    %v724 = vunpack.c.l.b16 %v468
    %v725 = vunpack.c.l.b16 %v469
    %v726 = vunpack.c.l.b16 %v470
    %v727 = vunpack.c.l.b16 %v471
    %v728 = vunpack.c.l.b16 %v472
    %v729 = vunpack.c.l.b16 %v473
    %v730 = vunpack.c.l.b16 %v474
    %v731 = vunpack.c.l.b16 %v475
    %v732 = vunpack.c.l.b16 %v476
    %v733 = vunpack.c.l.b16 %v477
    %v734 = vunpack.c.l.b16 %v478
    %v735 = vunpack.c.l.b16 %v479
    %v736 = vunpack.c.l.b16 %v480
    %v737 = vunpack.c.l.b16 %v481
    %v738 = vunpack.c.l.b16 %v482
    %v739 = vunpack.c.l.b16 %v483
    %v740 = vunpack.c.l.b16 %v484
    %v741 = vunpack.c.l.b16 %v485
    %v742 = vunpack.c.l.b16 %v486
    %v743 = vunpack.c.l.b16 %v487
    %v744 = vunpack.c.l.b16 %v488
    %v745 = vunpack.c.l.b16 %v489
    %v746 = vunpack.c.l.b16 %v490
    %v747 = vunpack.c.l.b16 %v491
    %v748 = vunpack.c.l.b16 %v492
    %v749 = vunpack.c.l.b16 %v493
    %v750 = vunpack.c.l.b16 %v494
    %v751 = vunpack.c.l.b16 %v495
    %v752 = vunpack.c.l.b16 %v496
    %v753 = vunpack.c.l.b16 %v497
    %v754 = vunpack.c.l.b16 %v498
    %v755 = vunpack.c.l.b16 %v499
    %v756 = vunpack.c.l.b16 %v500
    %v757 = vunpack.c.l.b16 %v501
    %v758 = vunpack.c.l.b16 %v502
    %v759 = vunpack.c.l.b16 %v503
    %v760 = vunpack.c.l.b16 %v504
    %v761 = vunpack.c.l.b16 %v505
    %v762 = vunpack.c.l.b16 %v506
    %v763 = vunpack.c.l.b16 %v507
    %v764 = vunpack.c.l.b16 %v508
    %v765 = vunpack.c.l.b16 %v509
    %v766 = vunpack.c.l.b16 %v510
    %v767 = vunpack.c.l.b16 %v511
    %v768 = vunpack.c.l.b16 %v512
    %v769 = vpack.c.b16 %v642, %v641
    %v770 = vpack.c.b16 %v644, %v643
    %v771 = vpack.c.b16 %v646, %v645
    %v772 = vpack.c.b16 %v648, %v647
    %v773 = vpack.c.b16 %v650, %v649
    %v774 = vpack.c.b16 %v652, %v651
    %v775 = vpack.c.b16 %v654, %v653
    %v776 = vpack.c.b16 %v656, %v655
    %v777 = vpack.c.b16 %v658, %v657
    %v778 = vpack.c.b16 %v660, %v659
    %v779 = vpack.c.b16 %v662, %v661
    %v780 = vpack.c.b16 %v664, %v663
    %v781 = vpack.c.b16 %v666, %v665
    %v782 = vpack.c.b16 %v668, %v667
    %v783 = vpack.c.b16 %v670, %v669
    %v784 = vpack.c.b16 %v672, %v671
    %v785 = vpack.c.b16 %v674, %v673
    %v786 = vpack.c.b16 %v676, %v675
    %v787 = vpack.c.b16 %v678, %v677
    %v788 = vpack.c.b16 %v680, %v679
    %v789 = vpack.c.b16 %v682, %v681
    %v790 = vpack.c.b16 %v684, %v683
    %v791 = vpack.c.b16 %v686, %v685
    %v792 = vpack.c.b16 %v688, %v687
    %v793 = vpack.c.b16 %v690, %v689
    %v794 = vpack.c.b16 %v692, %v691
    %v795 = vpack.c.b16 %v694, %v693
    %v796 = vpack.c.b16 %v696, %v695
    %v797 = vpack.c.b16 %v698, %v697
    %v798 = vpack.c.b16 %v700, %v699
    %v799 = vpack.c.b16 %v702, %v701
    %v800 = vpack.c.b16 %v704, %v703
    %v801 = vpack.c.b16 %v706, %v705
    %v802 = vpack.c.b16 %v708, %v707
    %v803 = vpack.c.b16 %v710, %v709
    %v804 = vpack.c.b16 %v712, %v711
    %v805 = vpack.c.b16 %v714, %v713
    %v806 = vpack.c.b16 %v716, %v715
    %v807 = vpack.c.b16 %v718, %v717
    %v808 = vpack.c.b16 %v720, %v719
    %v809 = vpack.c.b16 %v722, %v721
    %v810 = vpack.c.b16 %v724, %v723
    %v811 = vpack.c.b16 %v726, %v725
    %v812 = vpack.c.b16 %v728, %v727
    %v813 = vpack.c.b16 %v730, %v729
    %v814 = vpack.c.b16 %v732, %v731
    %v815 = vpack.c.b16 %v734, %v733
    %v816 = vpack.c.b16 %v736, %v735
    %v817 = vpack.c.b16 %v738, %v737
    %v818 = vpack.c.b16 %v740, %v739
    %v819 = vpack.c.b16 %v742, %v741
    %v820 = vpack.c.b16 %v744, %v743
    %v821 = vpack.c.b16 %v746, %v745
    %v822 = vpack.c.b16 %v748, %v747
    %v823 = vpack.c.b16 %v750, %v749
    %v824 = vpack.c.b16 %v752, %v751
    %v825 = vpack.c.b16 %v754, %v753
    %v826 = vpack.c.b16 %v756, %v755
    %v827 = vpack.c.b16 %v758, %v757
    %v828 = vpack.c.b16 %v760, %v759
    %v829 = vpack.c.b16 %v762, %v761
    %v830 = vpack.c.b16 %v764, %v763
    %v831 = vpack.c.b16 %v766, %v765
    %v832 = vpack.c.b16 %v768, %v767
    %897 = vmatprep.subr.bf16.mxu0 0
    %898 = vmatpush1.bf16.msra.mxu0 %v769
    %899 = vmatprep.subr.bf16.mxu0 0
    %900 = vmatpush1.bf16.msra.mxu0 %v770
    %901 = vmatprep.subr.bf16.mxu0 0
    %902 = vmatpush1.bf16.msra.mxu0 %v771
    %903 = vmatprep.subr.bf16.mxu0 0
    %904 = vmatpush1.bf16.msra.mxu0 %v772
    %905 = vmatprep.subr.bf16.mxu0 0
    %906 = vmatpush1.bf16.msra.mxu0 %v773
    %907 = vmatprep.subr.bf16.mxu0 0
    %908 = vmatpush1.bf16.msra.mxu0 %v774
    %909 = vmatprep.subr.bf16.mxu0 0
    %910 = vmatpush1.bf16.msra.mxu0 %v775
    %911 = vmatprep.subr.bf16.mxu0 0
    %912 = vmatpush1.bf16.msra.mxu0 %v776
    %913 = vmatprep.subr.bf16.mxu0 0
    %914 = vmatpush1.bf16.msra.mxu0 %v777
    %915 = vmatprep.subr.bf16.mxu0 0
    %916 = vmatpush1.bf16.msra.mxu0 %v778
    %917 = vmatprep.subr.bf16.mxu0 0
    %918 = vmatpush1.bf16.msra.mxu0 %v779
    %919 = vmatprep.subr.bf16.mxu0 0
    %920 = vmatpush1.bf16.msra.mxu0 %v780
    %921 = vmatprep.subr.bf16.mxu0 0
    %922 = vmatpush1.bf16.msra.mxu0 %v781
    %923 = vmatprep.subr.bf16.mxu0 0
    %924 = vmatpush1.bf16.msra.mxu0 %v782
    %925 = vmatprep.subr.bf16.mxu0 0
    %926 = vmatpush1.bf16.msra.mxu0 %v783
    %927 = vmatprep.subr.bf16.mxu0 0
    %928 = vmatpush1.bf16.msra.mxu0 %v784
    %929 = vmatprep.mubr.bf16.mxu0 1065369472
    %930 = vmatmul.mubr.bf16.gmra.mrb[0].mxu0 1065369472
    %v931 = vpop.f32.mrb[0].mxu0
    %v932 = vadd.f32 0.0, %v931
    %v933 = vpop.f32.mrb[0].mxu0
    %v934 = vpop.f32.mrb[0].mxu0
    %v935 = vpop.f32.mrb[0].mxu0
    %936 = vdwg.mxu0
    %937 = vmatprep.subr.bf16.mxu0 0
    %938 = vmatpush1.bf16.msra.mxu0 %v785
    %939 = vmatprep.subr.bf16.mxu0 0
    %940 = vmatpush1.bf16.msra.mxu0 %v786
    %941 = vmatprep.subr.bf16.mxu0 0
    %942 = vmatpush1.bf16.msra.mxu0 %v787
    %943 = vmatprep.subr.bf16.mxu0 0
    %944 = vmatpush1.bf16.msra.mxu0 %v788
    %945 = vmatprep.subr.bf16.mxu0 0
    %946 = vmatpush1.bf16.msra.mxu0 %v789
    %947 = vmatprep.subr.bf16.mxu0 0
    %948 = vmatpush1.bf16.msra.mxu0 %v790
    %949 = vmatprep.subr.bf16.mxu0 0
    %950 = vmatpush1.bf16.msra.mxu0 %v791
    %951 = vmatprep.subr.bf16.mxu0 0
    %952 = vmatpush1.bf16.msra.mxu0 %v792
    %953 = vmatprep.subr.bf16.mxu0 0
    %954 = vmatpush1.bf16.msra.mxu0 %v793
    %955 = vmatprep.subr.bf16.mxu0 0
    %956 = vmatpush1.bf16.msra.mxu0 %v794
    %957 = vmatprep.subr.bf16.mxu0 0
    %958 = vmatpush1.bf16.msra.mxu0 %v795
    %959 = vmatprep.subr.bf16.mxu0 0
    %960 = vmatpush1.bf16.msra.mxu0 %v796
    %961 = vmatprep.subr.bf16.mxu0 0
    %962 = vmatpush1.bf16.msra.mxu0 %v797
    %963 = vmatprep.subr.bf16.mxu0 0
    %964 = vmatpush1.bf16.msra.mxu0 %v798
    %965 = vmatprep.subr.bf16.mxu0 0
    %966 = vmatpush1.bf16.msra.mxu0 %v799
    %967 = vmatprep.subr.bf16.mxu0 0
    %968 = vmatpush1.bf16.msra.mxu0 %v800
    %969 = vmatprep.mubr.bf16.mxu0 1065369472
    %970 = vmatmul.mubr.bf16.gmra.mrb[0].mxu0 1065369472
    %v971 = vpop.f32.mrb[0].mxu0
    %v972 = vadd.f32 %v932, %v971
    %v973 = vpop.f32.mrb[0].mxu0
    %v974 = vpop.f32.mrb[0].mxu0
    %v975 = vpop.f32.mrb[0].mxu0
    %976 = vdwg.mxu0
    %977 = vmatprep.subr.bf16.mxu0 0
    %978 = vmatpush1.bf16.msra.mxu0 %v801
    %979 = vmatprep.subr.bf16.mxu0 0
    %980 = vmatpush1.bf16.msra.mxu0 %v802
    %981 = vmatprep.subr.bf16.mxu0 0
    %982 = vmatpush1.bf16.msra.mxu0 %v803
    %983 = vmatprep.subr.bf16.mxu0 0
    %984 = vmatpush1.bf16.msra.mxu0 %v804
    %985 = vmatprep.subr.bf16.mxu0 0
    %986 = vmatpush1.bf16.msra.mxu0 %v805
    %987 = vmatprep.subr.bf16.mxu0 0
    %988 = vmatpush1.bf16.msra.mxu0 %v806
    %989 = vmatprep.subr.bf16.mxu0 0
    %990 = vmatpush1.bf16.msra.mxu0 %v807
    %991 = vmatprep.subr.bf16.mxu0 0
    %992 = vmatpush1.bf16.msra.mxu0 %v808
    %993 = vmatprep.subr.bf16.mxu0 0
    %994 = vmatpush1.bf16.msra.mxu0 %v809
    %995 = vmatprep.subr.bf16.mxu0 0
    %996 = vmatpush1.bf16.msra.mxu0 %v810
    %997 = vmatprep.subr.bf16.mxu0 0
    %998 = vmatpush1.bf16.msra.mxu0 %v811
    %999 = vmatprep.subr.bf16.mxu0 0
    %1000 = vmatpush1.bf16.msra.mxu0 %v812
    %1001 = vmatprep.subr.bf16.mxu0 0
    %1002 = vmatpush1.bf16.msra.mxu0 %v813
    %1003 = vmatprep.subr.bf16.mxu0 0
    %1004 = vmatpush1.bf16.msra.mxu0 %v814
    %1005 = vmatprep.subr.bf16.mxu0 0
    %1006 = vmatpush1.bf16.msra.mxu0 %v815
    %1007 = vmatprep.subr.bf16.mxu0 0
    %1008 = vmatpush1.bf16.msra.mxu0 %v816
    %1009 = vmatprep.mubr.bf16.mxu0 1065369472
    %1010 = vmatmul.mubr.bf16.gmra.mrb[0].mxu0 1065369472
    %v1011 = vpop.f32.mrb[0].mxu0
    %v1012 = vadd.f32 %v972, %v1011
    %v1013 = vpop.f32.mrb[0].mxu0
    %v1014 = vpop.f32.mrb[0].mxu0
    %v1015 = vpop.f32.mrb[0].mxu0
    %1016 = vdwg.mxu0
    %1017 = vmatprep.subr.bf16.mxu0 0
    %1018 = vmatpush1.bf16.msra.mxu0 %v817
    %1019 = vmatprep.subr.bf16.mxu0 0
    %1020 = vmatpush1.bf16.msra.mxu0 %v818
    %1021 = vmatprep.subr.bf16.mxu0 0
    %1022 = vmatpush1.bf16.msra.mxu0 %v819
    %1023 = vmatprep.subr.bf16.mxu0 0
    %1024 = vmatpush1.bf16.msra.mxu0 %v820
    %1025 = vmatprep.subr.bf16.mxu0 0
    %1026 = vmatpush1.bf16.msra.mxu0 %v821
    %1027 = vmatprep.subr.bf16.mxu0 0
    %1028 = vmatpush1.bf16.msra.mxu0 %v822
    %1029 = vmatprep.subr.bf16.mxu0 0
    %1030 = vmatpush1.bf16.msra.mxu0 %v823
    %1031 = vmatprep.subr.bf16.mxu0 0
    %1032 = vmatpush1.bf16.msra.mxu0 %v824
    %1033 = vmatprep.subr.bf16.mxu0 0
    %1034 = vmatpush1.bf16.msra.mxu0 %v825
    %1035 = vmatprep.subr.bf16.mxu0 0
    %1036 = vmatpush1.bf16.msra.mxu0 %v826
    %1037 = vmatprep.subr.bf16.mxu0 0
    %1038 = vmatpush1.bf16.msra.mxu0 %v827
    %1039 = vmatprep.subr.bf16.mxu0 0
    %1040 = vmatpush1.bf16.msra.mxu0 %v828
    %1041 = vmatprep.subr.bf16.mxu0 0
    %1042 = vmatpush1.bf16.msra.mxu0 %v829
    %1043 = vmatprep.subr.bf16.mxu0 0
    %1044 = vmatpush1.bf16.msra.mxu0 %v830
    %1045 = vmatprep.subr.bf16.mxu0 0
    %1046 = vmatpush1.bf16.msra.mxu0 %v831
    %1047 = vmatprep.subr.bf16.mxu0 0
    %1048 = vmatpush1.bf16.msra.mxu0 %v832
    %1049 = vmatprep.mubr.bf16.mxu0 1065369472
    %1050 = vmatmul.mubr.bf16.gmra.mrb[0].mxu0 1065369472
    %v1051 = vpop.f32.mrb[0].mxu0
    %v1052 = vadd.f32 %v1012, %v1051
    %v1053 = vpop.f32.mrb[0].mxu0
    %v1054 = vpop.f32.mrb[0].mxu0
    %v1055 = vpop.f32.mrb[0].mxu0
    %1056 = vdwg.mxu0
    %v1185 = vunpack.c.l.b16 %v153
    %v1186 = vunpack.c.l.b16 %v154
    %v1187 = vunpack.c.l.b16 %v155
    %v1188 = vunpack.c.l.b16 %v156
    %v1189 = vunpack.c.l.b16 %v157
    %v1190 = vunpack.c.l.b16 %v158
    %v1191 = vunpack.c.l.b16 %v159
    %v1192 = vunpack.c.l.b16 %v160
    %v1193 = vunpack.c.l.b16 %v161
    %v1194 = vunpack.c.l.b16 %v162
    %v1195 = vunpack.c.l.b16 %v163
    %v1196 = vunpack.c.l.b16 %v164
    %v1197 = vunpack.c.l.b16 %v165
    %v1198 = vunpack.c.l.b16 %v166
    %v1199 = vunpack.c.l.b16 %v167
    %v1200 = vunpack.c.l.b16 %v168
    %v1201 = vunpack.c.l.b16 %v169
    %v1202 = vunpack.c.l.b16 %v170
    %v1203 = vunpack.c.l.b16 %v171
    %v1204 = vunpack.c.l.b16 %v172
    %v1205 = vunpack.c.l.b16 %v173
    %v1206 = vunpack.c.l.b16 %v174
    %v1207 = vunpack.c.l.b16 %v175
    %v1208 = vunpack.c.l.b16 %v176
    %v1209 = vunpack.c.l.b16 %v177
    %v1210 = vunpack.c.l.b16 %v178
    %v1211 = vunpack.c.l.b16 %v179
    %v1212 = vunpack.c.l.b16 %v180
    %v1213 = vunpack.c.l.b16 %v181
    %v1214 = vunpack.c.l.b16 %v182
    %v1215 = vunpack.c.l.b16 %v183
    %v1216 = vunpack.c.l.b16 %v184
    %v1217 = vunpack.c.l.b16 %v185
    %v1218 = vunpack.c.l.b16 %v186
    %v1219 = vunpack.c.l.b16 %v187
    %v1220 = vunpack.c.l.b16 %v188
    %v1221 = vunpack.c.l.b16 %v189
    %v1222 = vunpack.c.l.b16 %v190
    %v1223 = vunpack.c.l.b16 %v191
    %v1224 = vunpack.c.l.b16 %v192
    %v1225 = vunpack.c.l.b16 %v193
    %v1226 = vunpack.c.l.b16 %v194
    %v1227 = vunpack.c.l.b16 %v195
    %v1228 = vunpack.c.l.b16 %v196
    %v1229 = vunpack.c.l.b16 %v197
    %v1230 = vunpack.c.l.b16 %v198
    %v1231 = vunpack.c.l.b16 %v199
    %v1232 = vunpack.c.l.b16 %v200
    %v1233 = vunpack.c.l.b16 %v201
    %v1234 = vunpack.c.l.b16 %v202
    %v1235 = vunpack.c.l.b16 %v203
    %v1236 = vunpack.c.l.b16 %v204
    %v1237 = vunpack.c.l.b16 %v205
    %v1238 = vunpack.c.l.b16 %v206
    %v1239 = vunpack.c.l.b16 %v207
    %v1240 = vunpack.c.l.b16 %v208
    %v1241 = vunpack.c.l.b16 %v209
    %v1242 = vunpack.c.l.b16 %v210
    %v1243 = vunpack.c.l.b16 %v211
    %v1244 = vunpack.c.l.b16 %v212
    %v1245 = vunpack.c.l.b16 %v213
    %v1246 = vunpack.c.l.b16 %v214
    %v1247 = vunpack.c.l.b16 %v215
    %v1248 = vunpack.c.l.b16 %v216
    %v1249 = vunpack.c.l.b16 %v217
    %v1250 = vunpack.c.l.b16 %v218
    %v1251 = vunpack.c.l.b16 %v219
    %v1252 = vunpack.c.l.b16 %v220
    %v1253 = vunpack.c.l.b16 %v221
    %v1254 = vunpack.c.l.b16 %v222
    %v1255 = vunpack.c.l.b16 %v223
    %v1256 = vunpack.c.l.b16 %v224
    %v1257 = vunpack.c.l.b16 %v225
    %v1258 = vunpack.c.l.b16 %v226
    %v1259 = vunpack.c.l.b16 %v227
    %v1260 = vunpack.c.l.b16 %v228
    %v1261 = vunpack.c.l.b16 %v229
    %v1262 = vunpack.c.l.b16 %v230
    %v1263 = vunpack.c.l.b16 %v231
    %v1264 = vunpack.c.l.b16 %v232
    %v1265 = vunpack.c.l.b16 %v233
    %v1266 = vunpack.c.l.b16 %v234
    %v1267 = vunpack.c.l.b16 %v235
    %v1268 = vunpack.c.l.b16 %v236
    %v1269 = vunpack.c.l.b16 %v237
    %v1270 = vunpack.c.l.b16 %v238
    %v1271 = vunpack.c.l.b16 %v239
    %v1272 = vunpack.c.l.b16 %v240
    %v1273 = vunpack.c.l.b16 %v241
    %v1274 = vunpack.c.l.b16 %v242
    %v1275 = vunpack.c.l.b16 %v243
    %v1276 = vunpack.c.l.b16 %v244
    %v1277 = vunpack.c.l.b16 %v245
    %v1278 = vunpack.c.l.b16 %v246
    %v1279 = vunpack.c.l.b16 %v247
    %v1280 = vunpack.c.l.b16 %v248
    %v1281 = vunpack.c.l.b16 %v249
    %v1282 = vunpack.c.l.b16 %v250
    %v1283 = vunpack.c.l.b16 %v251
    %v1284 = vunpack.c.l.b16 %v252
    %v1285 = vunpack.c.l.b16 %v253
    %v1286 = vunpack.c.l.b16 %v254
    %v1287 = vunpack.c.l.b16 %v255
    %v1288 = vunpack.c.l.b16 %v256
    %v1289 = vunpack.c.l.b16 %v257
    %v1290 = vunpack.c.l.b16 %v258
    %v1291 = vunpack.c.l.b16 %v259
    %v1292 = vunpack.c.l.b16 %v260
    %v1293 = vunpack.c.l.b16 %v261
    %v1294 = vunpack.c.l.b16 %v262
    %v1295 = vunpack.c.l.b16 %v263
    %v1296 = vunpack.c.l.b16 %v264
    %v1297 = vunpack.c.l.b16 %v265
    %v1298 = vunpack.c.l.b16 %v266
    %v1299 = vunpack.c.l.b16 %v267
    %v1300 = vunpack.c.l.b16 %v268
    %v1301 = vunpack.c.l.b16 %v269
    %v1302 = vunpack.c.l.b16 %v270
    %v1303 = vunpack.c.l.b16 %v271
    %v1304 = vunpack.c.l.b16 %v272
    %v1305 = vunpack.c.l.b16 %v273
    %v1306 = vunpack.c.l.b16 %v274
    %v1307 = vunpack.c.l.b16 %v275
    %v1308 = vunpack.c.l.b16 %v276
    %v1309 = vunpack.c.l.b16 %v277
    %v1310 = vunpack.c.l.b16 %v278
    %v1311 = vunpack.c.l.b16 %v279
    %v1312 = vunpack.c.l.b16 %v280
    %v1313 = vpack.c.b16 %v1186, %v1185
    %v1314 = vpack.c.b16 %v1188, %v1187
    %v1315 = vpack.c.b16 %v1190, %v1189
    %v1316 = vpack.c.b16 %v1192, %v1191
    %v1317 = vpack.c.b16 %v1194, %v1193
    %v1318 = vpack.c.b16 %v1196, %v1195
    %v1319 = vpack.c.b16 %v1198, %v1197
    %v1320 = vpack.c.b16 %v1200, %v1199
    %v1321 = vpack.c.b16 %v1202, %v1201
    %v1322 = vpack.c.b16 %v1204, %v1203
    %v1323 = vpack.c.b16 %v1206, %v1205
    %v1324 = vpack.c.b16 %v1208, %v1207
    %v1325 = vpack.c.b16 %v1210, %v1209
    %v1326 = vpack.c.b16 %v1212, %v1211
    %v1327 = vpack.c.b16 %v1214, %v1213
    %v1328 = vpack.c.b16 %v1216, %v1215
    %v1329 = vpack.c.b16 %v1218, %v1217
    %v1330 = vpack.c.b16 %v1220, %v1219
    %v1331 = vpack.c.b16 %v1222, %v1221
    %v1332 = vpack.c.b16 %v1224, %v1223
    %v1333 = vpack.c.b16 %v1226, %v1225
    %v1334 = vpack.c.b16 %v1228, %v1227
    %v1335 = vpack.c.b16 %v1230, %v1229
    %v1336 = vpack.c.b16 %v1232, %v1231
    %v1337 = vpack.c.b16 %v1234, %v1233
    %v1338 = vpack.c.b16 %v1236, %v1235
    %v1339 = vpack.c.b16 %v1238, %v1237
    %v1340 = vpack.c.b16 %v1240, %v1239
    %v1341 = vpack.c.b16 %v1242, %v1241
    %v1342 = vpack.c.b16 %v1244, %v1243
    %v1343 = vpack.c.b16 %v1246, %v1245
    %v1344 = vpack.c.b16 %v1248, %v1247
    %v1345 = vpack.c.b16 %v1250, %v1249
    %v1346 = vpack.c.b16 %v1252, %v1251
    %v1347 = vpack.c.b16 %v1254, %v1253
    %v1348 = vpack.c.b16 %v1256, %v1255
    %v1349 = vpack.c.b16 %v1258, %v1257
    %v1350 = vpack.c.b16 %v1260, %v1259
    %v1351 = vpack.c.b16 %v1262, %v1261
    %v1352 = vpack.c.b16 %v1264, %v1263
    %v1353 = vpack.c.b16 %v1266, %v1265
    %v1354 = vpack.c.b16 %v1268, %v1267
    %v1355 = vpack.c.b16 %v1270, %v1269
    %v1356 = vpack.c.b16 %v1272, %v1271
    %v1357 = vpack.c.b16 %v1274, %v1273
    %v1358 = vpack.c.b16 %v1276, %v1275
    %v1359 = vpack.c.b16 %v1278, %v1277
    %v1360 = vpack.c.b16 %v1280, %v1279
    %v1361 = vpack.c.b16 %v1282, %v1281
    %v1362 = vpack.c.b16 %v1284, %v1283
    %v1363 = vpack.c.b16 %v1286, %v1285
    %v1364 = vpack.c.b16 %v1288, %v1287
    %v1365 = vpack.c.b16 %v1290, %v1289
    %v1366 = vpack.c.b16 %v1292, %v1291
    %v1367 = vpack.c.b16 %v1294, %v1293
    %v1368 = vpack.c.b16 %v1296, %v1295
    %v1369 = vpack.c.b16 %v1298, %v1297
    %v1370 = vpack.c.b16 %v1300, %v1299
    %v1371 = vpack.c.b16 %v1302, %v1301
    %v1372 = vpack.c.b16 %v1304, %v1303
    %v1373 = vpack.c.b16 %v1306, %v1305
    %v1374 = vpack.c.b16 %v1308, %v1307
    %v1375 = vpack.c.b16 %v1310, %v1309
    %v1376 = vpack.c.b16 %v1312, %v1311
    %1441 = vmatprep.subr.bf16.mxu0 0
    %1442 = vmatpush1.bf16.msra.mxu0 %v1313
    %1443 = vmatprep.subr.bf16.mxu0 0
    %1444 = vmatpush1.bf16.msra.mxu0 %v1314
    %1445 = vmatprep.subr.bf16.mxu0 0
    %1446 = vmatpush1.bf16.msra.mxu0 %v1315
    %1447 = vmatprep.subr.bf16.mxu0 0
    %1448 = vmatpush1.bf16.msra.mxu0 %v1316
    %1449 = vmatprep.subr.bf16.mxu0 0
    %1450 = vmatpush1.bf16.msra.mxu0 %v1317
    %1451 = vmatprep.subr.bf16.mxu0 0
    %1452 = vmatpush1.bf16.msra.mxu0 %v1318
    %1453 = vmatprep.subr.bf16.mxu0 0
    %1454 = vmatpush1.bf16.msra.mxu0 %v1319
    %1455 = vmatprep.subr.bf16.mxu0 0
    %1456 = vmatpush1.bf16.msra.mxu0 %v1320
    %1457 = vmatprep.subr.bf16.mxu0 0
    %1458 = vmatpush1.bf16.msra.mxu0 %v1321
    %1459 = vmatprep.subr.bf16.mxu0 0
    %1460 = vmatpush1.bf16.msra.mxu0 %v1322
    %1461 = vmatprep.subr.bf16.mxu0 0
    %1462 = vmatpush1.bf16.msra.mxu0 %v1323
    %1463 = vmatprep.subr.bf16.mxu0 0
    %1464 = vmatpush1.bf16.msra.mxu0 %v1324
    %1465 = vmatprep.subr.bf16.mxu0 0
    %1466 = vmatpush1.bf16.msra.mxu0 %v1325
    %1467 = vmatprep.subr.bf16.mxu0 0
    %1468 = vmatpush1.bf16.msra.mxu0 %v1326
    %1469 = vmatprep.subr.bf16.mxu0 0
    %1470 = vmatpush1.bf16.msra.mxu0 %v1327
    %1471 = vmatprep.subr.bf16.mxu0 0
    %1472 = vmatpush1.bf16.msra.mxu0 %v1328
    %1473 = vmatprep.mubr.bf16.mxu0 %v146
    %1474 = vmatmul.mubr.bf16.gmra.mrb[0].mxu0 %v145
    %v1475 = vpop.f32.mrb[0].mxu0
    %v1476 = vadd.f32 %v1052, %v1475
    %v1477 = vpop.f32.mrb[0].mxu0
    %v1478 = vpop.f32.mrb[0].mxu0
    %v1479 = vpop.f32.mrb[0].mxu0
    %1480 = vdwg.mxu0
    %1481 = vmatprep.subr.bf16.mxu0 0
    %1482 = vmatpush1.bf16.msra.mxu0 %v1329
    %1483 = vmatprep.subr.bf16.mxu0 0
    %1484 = vmatpush1.bf16.msra.mxu0 %v1330
    %1485 = vmatprep.subr.bf16.mxu0 0
    %1486 = vmatpush1.bf16.msra.mxu0 %v1331
    %1487 = vmatprep.subr.bf16.mxu0 0
    %1488 = vmatpush1.bf16.msra.mxu0 %v1332
    %1489 = vmatprep.subr.bf16.mxu0 0
    %1490 = vmatpush1.bf16.msra.mxu0 %v1333
    %1491 = vmatprep.subr.bf16.mxu0 0
    %1492 = vmatpush1.bf16.msra.mxu0 %v1334
    %1493 = vmatprep.subr.bf16.mxu0 0
    %1494 = vmatpush1.bf16.msra.mxu0 %v1335
    %1495 = vmatprep.subr.bf16.mxu0 0
    %1496 = vmatpush1.bf16.msra.mxu0 %v1336
    %1497 = vmatprep.subr.bf16.mxu0 0
    %1498 = vmatpush1.bf16.msra.mxu0 %v1337
    %1499 = vmatprep.subr.bf16.mxu0 0
    %1500 = vmatpush1.bf16.msra.mxu0 %v1338
    %1501 = vmatprep.subr.bf16.mxu0 0
    %1502 = vmatpush1.bf16.msra.mxu0 %v1339
    %1503 = vmatprep.subr.bf16.mxu0 0
    %1504 = vmatpush1.bf16.msra.mxu0 %v1340
    %1505 = vmatprep.subr.bf16.mxu0 0
    %1506 = vmatpush1.bf16.msra.mxu0 %v1341
    %1507 = vmatprep.subr.bf16.mxu0 0
    %1508 = vmatpush1.bf16.msra.mxu0 %v1342
    %1509 = vmatprep.subr.bf16.mxu0 0
    %1510 = vmatpush1.bf16.msra.mxu0 %v1343
    %1511 = vmatprep.subr.bf16.mxu0 0
    %1512 = vmatpush1.bf16.msra.mxu0 %v1344
    %1513 = vmatprep.mubr.bf16.mxu0 %v148
    %1514 = vmatmul.mubr.bf16.gmra.mrb[0].mxu0 %v147
    %v1515 = vpop.f32.mrb[0].mxu0
    %v1516 = vadd.f32 %v1476, %v1515
    %v1517 = vpop.f32.mrb[0].mxu0
    %v1518 = vpop.f32.mrb[0].mxu0
    %v1519 = vpop.f32.mrb[0].mxu0
    %1520 = vdwg.mxu0
    %1521 = vmatprep.subr.bf16.mxu0 0
    %1522 = vmatpush1.bf16.msra.mxu0 %v1345
    %1523 = vmatprep.subr.bf16.mxu0 0
    %1524 = vmatpush1.bf16.msra.mxu0 %v1346
    %1525 = vmatprep.subr.bf16.mxu0 0
    %1526 = vmatpush1.bf16.msra.mxu0 %v1347
    %1527 = vmatprep.subr.bf16.mxu0 0
    %1528 = vmatpush1.bf16.msra.mxu0 %v1348
    %1529 = vmatprep.subr.bf16.mxu0 0
    %1530 = vmatpush1.bf16.msra.mxu0 %v1349
    %1531 = vmatprep.subr.bf16.mxu0 0
    %1532 = vmatpush1.bf16.msra.mxu0 %v1350
    %1533 = vmatprep.subr.bf16.mxu0 0
    %1534 = vmatpush1.bf16.msra.mxu0 %v1351
    %1535 = vmatprep.subr.bf16.mxu0 0
    %1536 = vmatpush1.bf16.msra.mxu0 %v1352
    %1537 = vmatprep.subr.bf16.mxu0 0
    %1538 = vmatpush1.bf16.msra.mxu0 %v1353
    %1539 = vmatprep.subr.bf16.mxu0 0
    %1540 = vmatpush1.bf16.msra.mxu0 %v1354
    %1541 = vmatprep.subr.bf16.mxu0 0
    %1542 = vmatpush1.bf16.msra.mxu0 %v1355
    %1543 = vmatprep.subr.bf16.mxu0 0
    %1544 = vmatpush1.bf16.msra.mxu0 %v1356
    %1545 = vmatprep.subr.bf16.mxu0 0
    %1546 = vmatpush1.bf16.msra.mxu0 %v1357
    %1547 = vmatprep.subr.bf16.mxu0 0
    %1548 = vmatpush1.bf16.msra.mxu0 %v1358
    %1549 = vmatprep.subr.bf16.mxu0 0
    %1550 = vmatpush1.bf16.msra.mxu0 %v1359
    %1551 = vmatprep.subr.bf16.mxu0 0
    %1552 = vmatpush1.bf16.msra.mxu0 %v1360
    %1553 = vmatprep.mubr.bf16.mxu0 %v150
    %1554 = vmatmul.mubr.bf16.gmra.mrb[0].mxu0 %v149
    %v1555 = vpop.f32.mrb[0].mxu0
    %v1556 = vadd.f32 %v1516, %v1555
    %v1557 = vpop.f32.mrb[0].mxu0
    %v1558 = vpop.f32.mrb[0].mxu0
    %v1559 = vpop.f32.mrb[0].mxu0
    %1560 = vdwg.mxu0
    %1561 = vmatprep.subr.bf16.mxu0 0
    %1562 = vmatpush1.bf16.msra.mxu0 %v1361
    %1563 = vmatprep.subr.bf16.mxu0 0
    %1564 = vmatpush1.bf16.msra.mxu0 %v1362
    %1565 = vmatprep.subr.bf16.mxu0 0
    %1566 = vmatpush1.bf16.msra.mxu0 %v1363
    %1567 = vmatprep.subr.bf16.mxu0 0
    %1568 = vmatpush1.bf16.msra.mxu0 %v1364
    %1569 = vmatprep.subr.bf16.mxu0 0
    %1570 = vmatpush1.bf16.msra.mxu0 %v1365
    %1571 = vmatprep.subr.bf16.mxu0 0
    %1572 = vmatpush1.bf16.msra.mxu0 %v1366
    %1573 = vmatprep.subr.bf16.mxu0 0
    %1574 = vmatpush1.bf16.msra.mxu0 %v1367
    %1575 = vmatprep.subr.bf16.mxu0 0
    %1576 = vmatpush1.bf16.msra.mxu0 %v1368
    %1577 = vmatprep.subr.bf16.mxu0 0
    %1578 = vmatpush1.bf16.msra.mxu0 %v1369
    %1579 = vmatprep.subr.bf16.mxu0 0
    %1580 = vmatpush1.bf16.msra.mxu0 %v1370
    %1581 = vmatprep.subr.bf16.mxu0 0
    %1582 = vmatpush1.bf16.msra.mxu0 %v1371
    %1583 = vmatprep.subr.bf16.mxu0 0
    %1584 = vmatpush1.bf16.msra.mxu0 %v1372
    %1585 = vmatprep.subr.bf16.mxu0 0
    %1586 = vmatpush1.bf16.msra.mxu0 %v1373
    %1587 = vmatprep.subr.bf16.mxu0 0
    %1588 = vmatpush1.bf16.msra.mxu0 %v1374
    %1589 = vmatprep.subr.bf16.mxu0 0
    %1590 = vmatpush1.bf16.msra.mxu0 %v1375
    %1591 = vmatprep.subr.bf16.mxu0 0
    %1592 = vmatpush1.bf16.msra.mxu0 %v1376
    %1593 = vmatprep.mubr.bf16.mxu0 %v152
    %1594 = vmatmul.mubr.bf16.gmra.mrb[0].mxu0 %v151
    %v1595 = vpop.f32.mrb[0].mxu0
    %v1596 = vadd.f32 %v1556, %v1595
    %v1597 = vpop.f32.mrb[0].mxu0
    %v1598 = vpop.f32.mrb[0].mxu0
    %v1599 = vpop.f32.mrb[0].mxu0
    %1600 = vdwg.mxu0
    %v1603 = vcombine.high %v383, %v383
    %v1605 = vunpack.c.l.s4 1983009808
    %v1606 = vunpack.c.0.s8 %v1605
    %v1607 = vlaneseq
    %v1608 = vshrl.u32 %v1607, 7
    %v1609 = vsub.s32 %v1606, %v1608
    %v1610 = vrot.slane %v383, %v1609
    %v1612 = vunpack.c.l.s4 1983009808
    %v1613 = vunpack.c.0.s8 %v1612
    %v1614 = vlaneseq
    %v1615 = vshrl.u32 %v1614, 7
    %v1616 = vsub.s32 %v1613, %v1615
    %v1617 = vrot.slane %v1603, %v1616
    %v1618 = vcombine.high %v1610, %v1610
    %v1619 = vcombine.high %v1617, %v1617
    %v1620 = vcombine.high %v384, %v384
    %v1622 = vunpack.c.l.s4 1983009808
    %v1623 = vunpack.c.0.s8 %v1622
    %v1624 = vlaneseq
    %v1625 = vshrl.u32 %v1624, 7
    %v1626 = vsub.s32 %v1623, %v1625
    %v1627 = vrot.slane %v384, %v1626
    %v1629 = vunpack.c.l.s4 1983009808
    %v1630 = vunpack.c.0.s8 %v1629
    %v1631 = vlaneseq
    %v1632 = vshrl.u32 %v1631, 7
    %v1633 = vsub.s32 %v1630, %v1632
    %v1634 = vrot.slane %v1620, %v1633
    %v1635 = vcombine.high %v1627, %v1627
    %v1636 = vcombine.high %v1634, %v1634
    %v1645 = vpack.c.bf16 %v1610, %v1610
    %v1646 = vpack.c.bf16 %v1618, %v1618
    %v1647 = vpack.c.bf16 %v1617, %v1617
    %v1648 = vpack.c.bf16 %v1619, %v1619
    %v1649 = vpack.c.bf16 %v1627, %v1627
    %v1650 = vpack.c.bf16 %v1635, %v1635
    %v1651 = vpack.c.bf16 %v1634, %v1634
    %v1652 = vpack.c.bf16 %v1636, %v1636
    %v1653 = vld [vmem:[#allocation5 + $0x400] sm:$0xf]
    %v1654 = vld [vmem:[#allocation5 + $0x404] sm:$0xf]
    %v1655 = vld [vmem:[#allocation5 + $0x408] sm:$0xf]
    %v1656 = vld [vmem:[#allocation5 + $0x40c] sm:$0xf]
    %v1657 = vld [vmem:[#allocation5 + $0x410] sm:$0xf]
    %v1658 = vld [vmem:[#allocation5 + $0x414] sm:$0xf]
    %v1659 = vld [vmem:[#allocation5 + $0x418] sm:$0xf]
    %v1660 = vld [vmem:[#allocation5 + $0x41c] sm:$0xf]
    %v1661 = vld [vmem:[#allocation5 + $0x420] sm:$0xf]
    %v1662 = vld [vmem:[#allocation5 + $0x424] sm:$0xf]
    %v1663 = vld [vmem:[#allocation5 + $0x428] sm:$0xf]
    %v1664 = vld [vmem:[#allocation5 + $0x42c] sm:$0xf]
    %v1665 = vld [vmem:[#allocation5 + $0x430] sm:$0xf]
    %v1666 = vld [vmem:[#allocation5 + $0x434] sm:$0xf]
    %v1667 = vld [vmem:[#allocation5 + $0x438] sm:$0xf]
    %v1668 = vld [vmem:[#allocation5 + $0x43c] sm:$0xf]
    %v1669 = vld [vmem:[#allocation5 + $0x440] sm:$0xf]
    %v1670 = vld [vmem:[#allocation5 + $0x444] sm:$0xf]
    %v1671 = vld [vmem:[#allocation5 + $0x448] sm:$0xf]
    %v1672 = vld [vmem:[#allocation5 + $0x44c] sm:$0xf]
    %v1673 = vld [vmem:[#allocation5 + $0x450] sm:$0xf]
    %v1674 = vld [vmem:[#allocation5 + $0x454] sm:$0xf]
    %v1675 = vld [vmem:[#allocation5 + $0x458] sm:$0xf]
    %v1676 = vld [vmem:[#allocation5 + $0x45c] sm:$0xf]
    %v1677 = vld [vmem:[#allocation5 + $0x460] sm:$0xf]
    %v1678 = vld [vmem:[#allocation5 + $0x464] sm:$0xf]
    %v1679 = vld [vmem:[#allocation5 + $0x468] sm:$0xf]
    %v1680 = vld [vmem:[#allocation5 + $0x46c] sm:$0xf]
    %v1681 = vld [vmem:[#allocation5 + $0x470] sm:$0xf]
    %v1682 = vld [vmem:[#allocation5 + $0x474] sm:$0xf]
    %v1683 = vld [vmem:[#allocation5 + $0x478] sm:$0xf]
    %v1684 = vld [vmem:[#allocation5 + $0x47c] sm:$0xf]
    %v1685 = vld [vmem:[#allocation5 + $0x480] sm:$0xf]
    %v1686 = vld [vmem:[#allocation5 + $0x484] sm:$0xf]
    %v1687 = vld [vmem:[#allocation5 + $0x488] sm:$0xf]
    %v1688 = vld [vmem:[#allocation5 + $0x48c] sm:$0xf]
    %v1689 = vld [vmem:[#allocation5 + $0x490] sm:$0xf]
    %v1690 = vld [vmem:[#allocation5 + $0x494] sm:$0xf]
    %v1691 = vld [vmem:[#allocation5 + $0x498] sm:$0xf]
    %v1692 = vld [vmem:[#allocation5 + $0x49c] sm:$0xf]
    %v1693 = vld [vmem:[#allocation5 + $0x4a0] sm:$0xf]
    %v1694 = vld [vmem:[#allocation5 + $0x4a4] sm:$0xf]
    %v1695 = vld [vmem:[#allocation5 + $0x4a8] sm:$0xf]
    %v1696 = vld [vmem:[#allocation5 + $0x4ac] sm:$0xf]
    %v1697 = vld [vmem:[#allocation5 + $0x4b0] sm:$0xf]
    %v1698 = vld [vmem:[#allocation5 + $0x4b4] sm:$0xf]
    %v1699 = vld [vmem:[#allocation5 + $0x4b8] sm:$0xf]
    %v1700 = vld [vmem:[#allocation5 + $0x4bc] sm:$0xf]
    %v1701 = vld [vmem:[#allocation5 + $0x4c0] sm:$0xf]
    %v1702 = vld [vmem:[#allocation5 + $0x4c4] sm:$0xf]
    %v1703 = vld [vmem:[#allocation5 + $0x4c8] sm:$0xf]
    %v1704 = vld [vmem:[#allocation5 + $0x4cc] sm:$0xf]
    %v1705 = vld [vmem:[#allocation5 + $0x4d0] sm:$0xf]
    %v1706 = vld [vmem:[#allocation5 + $0x4d4] sm:$0xf]
    %v1707 = vld [vmem:[#allocation5 + $0x4d8] sm:$0xf]
    %v1708 = vld [vmem:[#allocation5 + $0x4dc] sm:$0xf]
    %v1709 = vld [vmem:[#allocation5 + $0x4e0] sm:$0xf]
    %v1710 = vld [vmem:[#allocation5 + $0x4e4] sm:$0xf]
    %v1711 = vld [vmem:[#allocation5 + $0x4e8] sm:$0xf]
    %v1712 = vld [vmem:[#allocation5 + $0x4ec] sm:$0xf]
    %v1713 = vld [vmem:[#allocation5 + $0x4f0] sm:$0xf]
    %v1714 = vld [vmem:[#allocation5 + $0x4f4] sm:$0xf]
    %v1715 = vld [vmem:[#allocation5 + $0x4f8] sm:$0xf]
    %v1716 = vld [vmem:[#allocation5 + $0x4fc] sm:$0xf]
    %v1717 = vld [vmem:[#allocation5 + $0x500] sm:$0xf]
    %v1718 = vld [vmem:[#allocation5 + $0x504] sm:$0xf]
    %v1719 = vld [vmem:[#allocation5 + $0x508] sm:$0xf]
    %v1720 = vld [vmem:[#allocation5 + $0x50c] sm:$0xf]
    %v1721 = vld [vmem:[#allocation5 + $0x510] sm:$0xf]
    %v1722 = vld [vmem:[#allocation5 + $0x514] sm:$0xf]
    %v1723 = vld [vmem:[#allocation5 + $0x518] sm:$0xf]
    %v1724 = vld [vmem:[#allocation5 + $0x51c] sm:$0xf]
    %v1725 = vld [vmem:[#allocation5 + $0x520] sm:$0xf]
    %v1726 = vld [vmem:[#allocation5 + $0x524] sm:$0xf]
    %v1727 = vld [vmem:[#allocation5 + $0x528] sm:$0xf]
    %v1728 = vld [vmem:[#allocation5 + $0x52c] sm:$0xf]
    %v1729 = vld [vmem:[#allocation5 + $0x530] sm:$0xf]
    %v1730 = vld [vmem:[#allocation5 + $0x534] sm:$0xf]
    %v1731 = vld [vmem:[#allocation5 + $0x538] sm:$0xf]
    %v1732 = vld [vmem:[#allocation5 + $0x53c] sm:$0xf]
    %v1733 = vld [vmem:[#allocation5 + $0x540] sm:$0xf]
    %v1734 = vld [vmem:[#allocation5 + $0x544] sm:$0xf]
    %v1735 = vld [vmem:[#allocation5 + $0x548] sm:$0xf]
    %v1736 = vld [vmem:[#allocation5 + $0x54c] sm:$0xf]
    %v1737 = vld [vmem:[#allocation5 + $0x550] sm:$0xf]
    %v1738 = vld [vmem:[#allocation5 + $0x554] sm:$0xf]
    %v1739 = vld [vmem:[#allocation5 + $0x558] sm:$0xf]
    %v1740 = vld [vmem:[#allocation5 + $0x55c] sm:$0xf]
    %v1741 = vld [vmem:[#allocation5 + $0x560] sm:$0xf]
    %v1742 = vld [vmem:[#allocation5 + $0x564] sm:$0xf]
    %v1743 = vld [vmem:[#allocation5 + $0x568] sm:$0xf]
    %v1744 = vld [vmem:[#allocation5 + $0x56c] sm:$0xf]
    %v1745 = vld [vmem:[#allocation5 + $0x570] sm:$0xf]
    %v1746 = vld [vmem:[#allocation5 + $0x574] sm:$0xf]
    %v1747 = vld [vmem:[#allocation5 + $0x578] sm:$0xf]
    %v1748 = vld [vmem:[#allocation5 + $0x57c] sm:$0xf]
    %v1749 = vld [vmem:[#allocation5 + $0x580] sm:$0xf]
    %v1750 = vld [vmem:[#allocation5 + $0x584] sm:$0xf]
    %v1751 = vld [vmem:[#allocation5 + $0x588] sm:$0xf]
    %v1752 = vld [vmem:[#allocation5 + $0x58c] sm:$0xf]
    %v1753 = vld [vmem:[#allocation5 + $0x590] sm:$0xf]
    %v1754 = vld [vmem:[#allocation5 + $0x594] sm:$0xf]
    %v1755 = vld [vmem:[#allocation5 + $0x598] sm:$0xf]
    %v1756 = vld [vmem:[#allocation5 + $0x59c] sm:$0xf]
    %v1757 = vld [vmem:[#allocation5 + $0x5a0] sm:$0xf]
    %v1758 = vld [vmem:[#allocation5 + $0x5a4] sm:$0xf]
    %v1759 = vld [vmem:[#allocation5 + $0x5a8] sm:$0xf]
    %v1760 = vld [vmem:[#allocation5 + $0x5ac] sm:$0xf]
    %v1761 = vld [vmem:[#allocation5 + $0x5b0] sm:$0xf]
    %v1762 = vld [vmem:[#allocation5 + $0x5b4] sm:$0xf]
    %v1763 = vld [vmem:[#allocation5 + $0x5b8] sm:$0xf]
    %v1764 = vld [vmem:[#allocation5 + $0x5bc] sm:$0xf]
    %v1765 = vld [vmem:[#allocation5 + $0x5c0] sm:$0xf]
    %v1766 = vld [vmem:[#allocation5 + $0x5c4] sm:$0xf]
    %v1767 = vld [vmem:[#allocation5 + $0x5c8] sm:$0xf]
    %v1768 = vld [vmem:[#allocation5 + $0x5cc] sm:$0xf]
    %v1769 = vld [vmem:[#allocation5 + $0x5d0] sm:$0xf]
    %v1770 = vld [vmem:[#allocation5 + $0x5d4] sm:$0xf]
    %v1771 = vld [vmem:[#allocation5 + $0x5d8] sm:$0xf]
    %v1772 = vld [vmem:[#allocation5 + $0x5dc] sm:$0xf]
    %v1773 = vld [vmem:[#allocation5 + $0x5e0] sm:$0xf]
    %v1774 = vld [vmem:[#allocation5 + $0x5e4] sm:$0xf]
    %v1775 = vld [vmem:[#allocation5 + $0x5e8] sm:$0xf]
    %v1776 = vld [vmem:[#allocation5 + $0x5ec] sm:$0xf]
    %v1777 = vld [vmem:[#allocation5 + $0x5f0] sm:$0xf]
    %v1778 = vld [vmem:[#allocation5 + $0x5f4] sm:$0xf]
    %v1779 = vld [vmem:[#allocation5 + $0x5f8] sm:$0xf]
    %v1780 = vld [vmem:[#allocation5 + $0x5fc] sm:$0xf]
    %v1909 = vunpack.c.l.b16 %v1653
    %v1910 = vunpack.c.l.b16 %v1654
    %v1911 = vunpack.c.l.b16 %v1655
    %v1912 = vunpack.c.l.b16 %v1656
    %v1913 = vunpack.c.l.b16 %v1657
    %v1914 = vunpack.c.l.b16 %v1658
    %v1915 = vunpack.c.l.b16 %v1659
    %v1916 = vunpack.c.l.b16 %v1660
    %v1917 = vunpack.c.l.b16 %v1661
    %v1918 = vunpack.c.l.b16 %v1662
    %v1919 = vunpack.c.l.b16 %v1663
    %v1920 = vunpack.c.l.b16 %v1664
    %v1921 = vunpack.c.l.b16 %v1665
    %v1922 = vunpack.c.l.b16 %v1666
    %v1923 = vunpack.c.l.b16 %v1667
    %v1924 = vunpack.c.l.b16 %v1668
    %v1925 = vunpack.c.l.b16 %v1669
    %v1926 = vunpack.c.l.b16 %v1670
    %v1927 = vunpack.c.l.b16 %v1671
    %v1928 = vunpack.c.l.b16 %v1672
    %v1929 = vunpack.c.l.b16 %v1673
    %v1930 = vunpack.c.l.b16 %v1674
    %v1931 = vunpack.c.l.b16 %v1675
    %v1932 = vunpack.c.l.b16 %v1676
    %v1933 = vunpack.c.l.b16 %v1677
    %v1934 = vunpack.c.l.b16 %v1678
    %v1935 = vunpack.c.l.b16 %v1679
    %v1936 = vunpack.c.l.b16 %v1680
    %v1937 = vunpack.c.l.b16 %v1681
    %v1938 = vunpack.c.l.b16 %v1682
    %v1939 = vunpack.c.l.b16 %v1683
    %v1940 = vunpack.c.l.b16 %v1684
    %v1941 = vunpack.c.l.b16 %v1685
    %v1942 = vunpack.c.l.b16 %v1686
    %v1943 = vunpack.c.l.b16 %v1687
    %v1944 = vunpack.c.l.b16 %v1688
    %v1945 = vunpack.c.l.b16 %v1689
    %v1946 = vunpack.c.l.b16 %v1690
    %v1947 = vunpack.c.l.b16 %v1691
    %v1948 = vunpack.c.l.b16 %v1692
    %v1949 = vunpack.c.l.b16 %v1693
    %v1950 = vunpack.c.l.b16 %v1694
    %v1951 = vunpack.c.l.b16 %v1695
    %v1952 = vunpack.c.l.b16 %v1696
    %v1953 = vunpack.c.l.b16 %v1697
    %v1954 = vunpack.c.l.b16 %v1698
    %v1955 = vunpack.c.l.b16 %v1699
    %v1956 = vunpack.c.l.b16 %v1700
    %v1957 = vunpack.c.l.b16 %v1701
    %v1958 = vunpack.c.l.b16 %v1702
    %v1959 = vunpack.c.l.b16 %v1703
    %v1960 = vunpack.c.l.b16 %v1704
    %v1961 = vunpack.c.l.b16 %v1705
    %v1962 = vunpack.c.l.b16 %v1706
    %v1963 = vunpack.c.l.b16 %v1707
    %v1964 = vunpack.c.l.b16 %v1708
    %v1965 = vunpack.c.l.b16 %v1709
    %v1966 = vunpack.c.l.b16 %v1710
    %v1967 = vunpack.c.l.b16 %v1711
    %v1968 = vunpack.c.l.b16 %v1712
    %v1969 = vunpack.c.l.b16 %v1713
    %v1970 = vunpack.c.l.b16 %v1714
    %v1971 = vunpack.c.l.b16 %v1715
    %v1972 = vunpack.c.l.b16 %v1716
    %v1973 = vunpack.c.l.b16 %v1717
    %v1974 = vunpack.c.l.b16 %v1718
    %v1975 = vunpack.c.l.b16 %v1719
    %v1976 = vunpack.c.l.b16 %v1720
    %v1977 = vunpack.c.l.b16 %v1721
    %v1978 = vunpack.c.l.b16 %v1722
    %v1979 = vunpack.c.l.b16 %v1723
    %v1980 = vunpack.c.l.b16 %v1724
    %v1981 = vunpack.c.l.b16 %v1725
    %v1982 = vunpack.c.l.b16 %v1726
    %v1983 = vunpack.c.l.b16 %v1727
    %v1984 = vunpack.c.l.b16 %v1728
    %v1985 = vunpack.c.l.b16 %v1729
    %v1986 = vunpack.c.l.b16 %v1730
    %v1987 = vunpack.c.l.b16 %v1731
    %v1988 = vunpack.c.l.b16 %v1732
    %v1989 = vunpack.c.l.b16 %v1733
    %v1990 = vunpack.c.l.b16 %v1734
    %v1991 = vunpack.c.l.b16 %v1735
    %v1992 = vunpack.c.l.b16 %v1736
    %v1993 = vunpack.c.l.b16 %v1737
    %v1994 = vunpack.c.l.b16 %v1738
    %v1995 = vunpack.c.l.b16 %v1739
    %v1996 = vunpack.c.l.b16 %v1740
    %v1997 = vunpack.c.l.b16 %v1741
    %v1998 = vunpack.c.l.b16 %v1742
    %v1999 = vunpack.c.l.b16 %v1743
    %v2000 = vunpack.c.l.b16 %v1744
    %v2001 = vunpack.c.l.b16 %v1745
    %v2002 = vunpack.c.l.b16 %v1746
    %v2003 = vunpack.c.l.b16 %v1747
    %v2004 = vunpack.c.l.b16 %v1748
    %v2005 = vunpack.c.l.b16 %v1749
    %v2006 = vunpack.c.l.b16 %v1750
    %v2007 = vunpack.c.l.b16 %v1751
    %v2008 = vunpack.c.l.b16 %v1752
    %v2009 = vunpack.c.l.b16 %v1753
    %v2010 = vunpack.c.l.b16 %v1754
    %v2011 = vunpack.c.l.b16 %v1755
    %v2012 = vunpack.c.l.b16 %v1756
    %v2013 = vunpack.c.l.b16 %v1757
    %v2014 = vunpack.c.l.b16 %v1758
    %v2015 = vunpack.c.l.b16 %v1759
    %v2016 = vunpack.c.l.b16 %v1760
    %v2017 = vunpack.c.l.b16 %v1761
    %v2018 = vunpack.c.l.b16 %v1762
    %v2019 = vunpack.c.l.b16 %v1763
    %v2020 = vunpack.c.l.b16 %v1764
    %v2021 = vunpack.c.l.b16 %v1765
    %v2022 = vunpack.c.l.b16 %v1766
    %v2023 = vunpack.c.l.b16 %v1767
    %v2024 = vunpack.c.l.b16 %v1768
    %v2025 = vunpack.c.l.b16 %v1769
    %v2026 = vunpack.c.l.b16 %v1770
    %v2027 = vunpack.c.l.b16 %v1771
    %v2028 = vunpack.c.l.b16 %v1772
    %v2029 = vunpack.c.l.b16 %v1773
    %v2030 = vunpack.c.l.b16 %v1774
    %v2031 = vunpack.c.l.b16 %v1775
    %v2032 = vunpack.c.l.b16 %v1776
    %v2033 = vunpack.c.l.b16 %v1777
    %v2034 = vunpack.c.l.b16 %v1778
    %v2035 = vunpack.c.l.b16 %v1779
    %v2036 = vunpack.c.l.b16 %v1780
    %v2037 = vpack.c.b16 %v1910, %v1909
    %v2038 = vpack.c.b16 %v1912, %v1911
    %v2039 = vpack.c.b16 %v1914, %v1913
    %v2040 = vpack.c.b16 %v1916, %v1915
    %v2041 = vpack.c.b16 %v1918, %v1917
    %v2042 = vpack.c.b16 %v1920, %v1919
    %v2043 = vpack.c.b16 %v1922, %v1921
    %v2044 = vpack.c.b16 %v1924, %v1923
    %v2045 = vpack.c.b16 %v1926, %v1925
    %v2046 = vpack.c.b16 %v1928, %v1927
    %v2047 = vpack.c.b16 %v1930, %v1929
    %v2048 = vpack.c.b16 %v1932, %v1931
    %v2049 = vpack.c.b16 %v1934, %v1933
    %v2050 = vpack.c.b16 %v1936, %v1935
    %v2051 = vpack.c.b16 %v1938, %v1937
    %v2052 = vpack.c.b16 %v1940, %v1939
    %v2053 = vpack.c.b16 %v1942, %v1941
    %v2054 = vpack.c.b16 %v1944, %v1943
    %v2055 = vpack.c.b16 %v1946, %v1945
    %v2056 = vpack.c.b16 %v1948, %v1947
    %v2057 = vpack.c.b16 %v1950, %v1949
    %v2058 = vpack.c.b16 %v1952, %v1951
    %v2059 = vpack.c.b16 %v1954, %v1953
    %v2060 = vpack.c.b16 %v1956, %v1955
    %v2061 = vpack.c.b16 %v1958, %v1957
    %v2062 = vpack.c.b16 %v1960, %v1959
    %v2063 = vpack.c.b16 %v1962, %v1961
    %v2064 = vpack.c.b16 %v1964, %v1963
    %v2065 = vpack.c.b16 %v1966, %v1965
    %v2066 = vpack.c.b16 %v1968, %v1967
    %v2067 = vpack.c.b16 %v1970, %v1969
    %v2068 = vpack.c.b16 %v1972, %v1971
    %v2069 = vpack.c.b16 %v1974, %v1973
    %v2070 = vpack.c.b16 %v1976, %v1975
    %v2071 = vpack.c.b16 %v1978, %v1977
    %v2072 = vpack.c.b16 %v1980, %v1979
    %v2073 = vpack.c.b16 %v1982, %v1981
    %v2074 = vpack.c.b16 %v1984, %v1983
    %v2075 = vpack.c.b16 %v1986, %v1985
    %v2076 = vpack.c.b16 %v1988, %v1987
    %v2077 = vpack.c.b16 %v1990, %v1989
    %v2078 = vpack.c.b16 %v1992, %v1991
    %v2079 = vpack.c.b16 %v1994, %v1993
    %v2080 = vpack.c.b16 %v1996, %v1995
    %v2081 = vpack.c.b16 %v1998, %v1997
    %v2082 = vpack.c.b16 %v2000, %v1999
    %v2083 = vpack.c.b16 %v2002, %v2001
    %v2084 = vpack.c.b16 %v2004, %v2003
    %v2085 = vpack.c.b16 %v2006, %v2005
    %v2086 = vpack.c.b16 %v2008, %v2007
    %v2087 = vpack.c.b16 %v2010, %v2009
    %v2088 = vpack.c.b16 %v2012, %v2011
    %v2089 = vpack.c.b16 %v2014, %v2013
    %v2090 = vpack.c.b16 %v2016, %v2015
    %v2091 = vpack.c.b16 %v2018, %v2017
    %v2092 = vpack.c.b16 %v2020, %v2019
    %v2093 = vpack.c.b16 %v2022, %v2021
    %v2094 = vpack.c.b16 %v2024, %v2023
    %v2095 = vpack.c.b16 %v2026, %v2025
    %v2096 = vpack.c.b16 %v2028, %v2027
    %v2097 = vpack.c.b16 %v2030, %v2029
    %v2098 = vpack.c.b16 %v2032, %v2031
    %v2099 = vpack.c.b16 %v2034, %v2033
    %v2100 = vpack.c.b16 %v2036, %v2035
    %2165 = vmatprep.subr.bf16.mxu0 0
    %2166 = vmatpush1.bf16.msra.mxu0 %v2037
    %2167 = vmatprep.subr.bf16.mxu0 0
    %2168 = vmatpush1.bf16.msra.mxu0 %v2038
    %2169 = vmatprep.subr.bf16.mxu0 0
    %2170 = vmatpush1.bf16.msra.mxu0 %v2039
    %2171 = vmatprep.subr.bf16.mxu0 0
    %2172 = vmatpush1.bf16.msra.mxu0 %v2040
    %2173 = vmatprep.subr.bf16.mxu0 0
    %2174 = vmatpush1.bf16.msra.mxu0 %v2041
    %2175 = vmatprep.subr.bf16.mxu0 0
    %2176 = vmatpush1.bf16.msra.mxu0 %v2042
    %2177 = vmatprep.subr.bf16.mxu0 0
    %2178 = vmatpush1.bf16.msra.mxu0 %v2043
    %2179 = vmatprep.subr.bf16.mxu0 0
    %2180 = vmatpush1.bf16.msra.mxu0 %v2044
    %2181 = vmatprep.subr.bf16.mxu0 0
    %2182 = vmatpush1.bf16.msra.mxu0 %v2045
    %2183 = vmatprep.subr.bf16.mxu0 0
    %2184 = vmatpush1.bf16.msra.mxu0 %v2046
    %2185 = vmatprep.subr.bf16.mxu0 0
    %2186 = vmatpush1.bf16.msra.mxu0 %v2047
    %2187 = vmatprep.subr.bf16.mxu0 0
    %2188 = vmatpush1.bf16.msra.mxu0 %v2048
    %2189 = vmatprep.subr.bf16.mxu0 0
    %2190 = vmatpush1.bf16.msra.mxu0 %v2049
    %2191 = vmatprep.subr.bf16.mxu0 0
    %2192 = vmatpush1.bf16.msra.mxu0 %v2050
    %2193 = vmatprep.subr.bf16.mxu0 0
    %2194 = vmatpush1.bf16.msra.mxu0 %v2051
    %2195 = vmatprep.subr.bf16.mxu0 0
    %2196 = vmatpush1.bf16.msra.mxu0 %v2052
    %2197 = vmatprep.mubr.bf16.mxu0 %v1646
    %2198 = vmatmul.mubr.bf16.gmra.mrb[0].mxu0 %v1645
    %v2199 = vpop.f32.mrb[0].mxu0
    %v2200 = vadd.f32 0.0, %v2199
    %v2201 = vpop.f32.mrb[0].mxu0
    %v2202 = vpop.f32.mrb[0].mxu0
    %v2203 = vpop.f32.mrb[0].mxu0
    %2204 = vdwg.mxu0
    %2205 = vmatprep.subr.bf16.mxu0 0
    %2206 = vmatpush1.bf16.msra.mxu0 %v2053
    %2207 = vmatprep.subr.bf16.mxu0 0
    %2208 = vmatpush1.bf16.msra.mxu0 %v2054
    %2209 = vmatprep.subr.bf16.mxu0 0
    %2210 = vmatpush1.bf16.msra.mxu0 %v2055
    %2211 = vmatprep.subr.bf16.mxu0 0
    %2212 = vmatpush1.bf16.msra.mxu0 %v2056
    %2213 = vmatprep.subr.bf16.mxu0 0
    %2214 = vmatpush1.bf16.msra.mxu0 %v2057
    %2215 = vmatprep.subr.bf16.mxu0 0
    %2216 = vmatpush1.bf16.msra.mxu0 %v2058
    %2217 = vmatprep.subr.bf16.mxu0 0
    %2218 = vmatpush1.bf16.msra.mxu0 %v2059
    %2219 = vmatprep.subr.bf16.mxu0 0
    %2220 = vmatpush1.bf16.msra.mxu0 %v2060
    %2221 = vmatprep.subr.bf16.mxu0 0
    %2222 = vmatpush1.bf16.msra.mxu0 %v2061
    %2223 = vmatprep.subr.bf16.mxu0 0
    %2224 = vmatpush1.bf16.msra.mxu0 %v2062
    %2225 = vmatprep.subr.bf16.mxu0 0
    %2226 = vmatpush1.bf16.msra.mxu0 %v2063
    %2227 = vmatprep.subr.bf16.mxu0 0
    %2228 = vmatpush1.bf16.msra.mxu0 %v2064
    %2229 = vmatprep.subr.bf16.mxu0 0
    %2230 = vmatpush1.bf16.msra.mxu0 %v2065
    %2231 = vmatprep.subr.bf16.mxu0 0
    %2232 = vmatpush1.bf16.msra.mxu0 %v2066
    %2233 = vmatprep.subr.bf16.mxu0 0
    %2234 = vmatpush1.bf16.msra.mxu0 %v2067
    %2235 = vmatprep.subr.bf16.mxu0 0
    %2236 = vmatpush1.bf16.msra.mxu0 %v2068
    %2237 = vmatprep.mubr.bf16.mxu0 %v1648
    %2238 = vmatmul.mubr.bf16.gmra.mrb[0].mxu0 %v1647
    %v2239 = vpop.f32.mrb[0].mxu0
    %v2240 = vadd.f32 %v2200, %v2239
    %v2241 = vpop.f32.mrb[0].mxu0
    %v2242 = vpop.f32.mrb[0].mxu0
    %v2243 = vpop.f32.mrb[0].mxu0
    %2244 = vdwg.mxu0
    %2245 = vmatprep.subr.bf16.mxu0 0
    %2246 = vmatpush1.bf16.msra.mxu0 %v2069
    %2247 = vmatprep.subr.bf16.mxu0 0
    %2248 = vmatpush1.bf16.msra.mxu0 %v2070
    %2249 = vmatprep.subr.bf16.mxu0 0
    %2250 = vmatpush1.bf16.msra.mxu0 %v2071
    %2251 = vmatprep.subr.bf16.mxu0 0
    %2252 = vmatpush1.bf16.msra.mxu0 %v2072
    %2253 = vmatprep.subr.bf16.mxu0 0
    %2254 = vmatpush1.bf16.msra.mxu0 %v2073
    %2255 = vmatprep.subr.bf16.mxu0 0
    %2256 = vmatpush1.bf16.msra.mxu0 %v2074
    %2257 = vmatprep.subr.bf16.mxu0 0
    %2258 = vmatpush1.bf16.msra.mxu0 %v2075
    %2259 = vmatprep.subr.bf16.mxu0 0
    %2260 = vmatpush1.bf16.msra.mxu0 %v2076
    %2261 = vmatprep.subr.bf16.mxu0 0
    %2262 = vmatpush1.bf16.msra.mxu0 %v2077
    %2263 = vmatprep.subr.bf16.mxu0 0
    %2264 = vmatpush1.bf16.msra.mxu0 %v2078
    %2265 = vmatprep.subr.bf16.mxu0 0
    %2266 = vmatpush1.bf16.msra.mxu0 %v2079
    %2267 = vmatprep.subr.bf16.mxu0 0
    %2268 = vmatpush1.bf16.msra.mxu0 %v2080
    %2269 = vmatprep.subr.bf16.mxu0 0
    %2270 = vmatpush1.bf16.msra.mxu0 %v2081
    %2271 = vmatprep.subr.bf16.mxu0 0
    %2272 = vmatpush1.bf16.msra.mxu0 %v2082
    %2273 = vmatprep.subr.bf16.mxu0 0
    %2274 = vmatpush1.bf16.msra.mxu0 %v2083
    %2275 = vmatprep.subr.bf16.mxu0 0
    %2276 = vmatpush1.bf16.msra.mxu0 %v2084
    %2277 = vmatprep.mubr.bf16.mxu0 %v1650
    %2278 = vmatmul.mubr.bf16.gmra.mrb[0].mxu0 %v1649
    %v2279 = vpop.f32.mrb[0].mxu0
    %v2280 = vadd.f32 %v2240, %v2279
    %v2281 = vpop.f32.mrb[0].mxu0
    %v2282 = vpop.f32.mrb[0].mxu0
    %v2283 = vpop.f32.mrb[0].mxu0
    %2284 = vdwg.mxu0
    %2285 = vmatprep.subr.bf16.mxu0 0
    %2286 = vmatpush1.bf16.msra.mxu0 %v2085
    %2287 = vmatprep.subr.bf16.mxu0 0
    %2288 = vmatpush1.bf16.msra.mxu0 %v2086
    %2289 = vmatprep.subr.bf16.mxu0 0
    %2290 = vmatpush1.bf16.msra.mxu0 %v2087
    %2291 = vmatprep.subr.bf16.mxu0 0
    %2292 = vmatpush1.bf16.msra.mxu0 %v2088
    %2293 = vmatprep.subr.bf16.mxu0 0
    %2294 = vmatpush1.bf16.msra.mxu0 %v2089
    %2295 = vmatprep.subr.bf16.mxu0 0
    %2296 = vmatpush1.bf16.msra.mxu0 %v2090
    %2297 = vmatprep.subr.bf16.mxu0 0
    %2298 = vmatpush1.bf16.msra.mxu0 %v2091
    %2299 = vmatprep.subr.bf16.mxu0 0
    %2300 = vmatpush1.bf16.msra.mxu0 %v2092
    %2301 = vmatprep.subr.bf16.mxu0 0
    %2302 = vmatpush1.bf16.msra.mxu0 %v2093
    %2303 = vmatprep.subr.bf16.mxu0 0
    %2304 = vmatpush1.bf16.msra.mxu0 %v2094
    %2305 = vmatprep.subr.bf16.mxu0 0
    %2306 = vmatpush1.bf16.msra.mxu0 %v2095
    %2307 = vmatprep.subr.bf16.mxu0 0
    %2308 = vmatpush1.bf16.msra.mxu0 %v2096
    %2309 = vmatprep.subr.bf16.mxu0 0
    %2310 = vmatpush1.bf16.msra.mxu0 %v2097
    %2311 = vmatprep.subr.bf16.mxu0 0
    %2312 = vmatpush1.bf16.msra.mxu0 %v2098
    %2313 = vmatprep.subr.bf16.mxu0 0
    %2314 = vmatpush1.bf16.msra.mxu0 %v2099
    %2315 = vmatprep.subr.bf16.mxu0 0
    %2316 = vmatpush1.bf16.msra.mxu0 %v2100
    %2317 = vmatprep.mubr.bf16.mxu0 %v1652
    %2318 = vmatmul.mubr.bf16.gmra.mrb[0].mxu0 %v1651
    %v2319 = vpop.f32.mrb[0].mxu0
    %v2320 = vadd.f32 %v2280, %v2319
    %v2321 = vpop.f32.mrb[0].mxu0
    %v2322 = vpop.f32.mrb[0].mxu0
    %v2323 = vpop.f32.mrb[0].mxu0
    %2324 = vdwg.mxu0
    %v2325 = vadd.f32 %v1596, %v2320
    %v2326 = vmul.f32 %v383, 3.0
    %v2327 = vmul.f32 %v384, 3.0
    %v2328 = vmul.f32 %v2326, %v383
    %v2329 = vmul.f32 %v2327, %v384
    %v2330 = vsub.f32 %v2328, 1.0
    %v2331 = vsub.f32 %v2329, 1.0
    %v2332 = vmul.f32 %v2330, 0.5
    %v2333 = vmul.f32 %v2331, 0.5
    %v2336 = vcombine.high %v2332, %v2332
    %v2338 = vunpack.c.l.s4 1983009808
    %v2339 = vunpack.c.0.s8 %v2338
    %v2340 = vlaneseq
    %v2341 = vshrl.u32 %v2340, 7
    %v2342 = vsub.s32 %v2339, %v2341
    %v2343 = vrot.slane %v2332, %v2342
    %v2345 = vunpack.c.l.s4 1983009808
    %v2346 = vunpack.c.0.s8 %v2345
    %v2347 = vlaneseq
    %v2348 = vshrl.u32 %v2347, 7
    %v2349 = vsub.s32 %v2346, %v2348
    %v2350 = vrot.slane %v2336, %v2349
    %v2351 = vcombine.high %v2343, %v2343
    %v2352 = vcombine.high %v2350, %v2350
    %v2353 = vcombine.high %v2333, %v2333
    %v2355 = vunpack.c.l.s4 1983009808
    %v2356 = vunpack.c.0.s8 %v2355
    %v2357 = vlaneseq
    %v2358 = vshrl.u32 %v2357, 7
    %v2359 = vsub.s32 %v2356, %v2358
    %v2360 = vrot.slane %v2333, %v2359
    %v2362 = vunpack.c.l.s4 1983009808
    %v2363 = vunpack.c.0.s8 %v2362
    %v2364 = vlaneseq
    %v2365 = vshrl.u32 %v2364, 7
    %v2366 = vsub.s32 %v2363, %v2365
    %v2367 = vrot.slane %v2353, %v2366
    %v2368 = vcombine.high %v2360, %v2360
    %v2369 = vcombine.high %v2367, %v2367
    %v2378 = vpack.c.bf16 %v2343, %v2343
    %v2379 = vpack.c.bf16 %v2351, %v2351
    %v2380 = vpack.c.bf16 %v2350, %v2350
    %v2381 = vpack.c.bf16 %v2352, %v2352
    %v2382 = vpack.c.bf16 %v2360, %v2360
    %v2383 = vpack.c.bf16 %v2368, %v2368
    %v2384 = vpack.c.bf16 %v2367, %v2367
    %v2385 = vpack.c.bf16 %v2369, %v2369
    %v2386 = vld [vmem:[#allocation5 + $0x600] sm:$0xf]
    %v2387 = vld [vmem:[#allocation5 + $0x604] sm:$0xf]
    %v2388 = vld [vmem:[#allocation5 + $0x608] sm:$0xf]
    %v2389 = vld [vmem:[#allocation5 + $0x60c] sm:$0xf]
    %v2390 = vld [vmem:[#allocation5 + $0x610] sm:$0xf]
    %v2391 = vld [vmem:[#allocation5 + $0x614] sm:$0xf]
    %v2392 = vld [vmem:[#allocation5 + $0x618] sm:$0xf]
    %v2393 = vld [vmem:[#allocation5 + $0x61c] sm:$0xf]
    %v2394 = vld [vmem:[#allocation5 + $0x620] sm:$0xf]
    %v2395 = vld [vmem:[#allocation5 + $0x624] sm:$0xf]
    %v2396 = vld [vmem:[#allocation5 + $0x628] sm:$0xf]
    %v2397 = vld [vmem:[#allocation5 + $0x62c] sm:$0xf]
    %v2398 = vld [vmem:[#allocation5 + $0x630] sm:$0xf]
    %v2399 = vld [vmem:[#allocation5 + $0x634] sm:$0xf]
    %v2400 = vld [vmem:[#allocation5 + $0x638] sm:$0xf]
    %v2401 = vld [vmem:[#allocation5 + $0x63c] sm:$0xf]
    %v2402 = vld [vmem:[#allocation5 + $0x640] sm:$0xf]
    %v2403 = vld [vmem:[#allocation5 + $0x644] sm:$0xf]
    %v2404 = vld [vmem:[#allocation5 + $0x648] sm:$0xf]
    %v2405 = vld [vmem:[#allocation5 + $0x64c] sm:$0xf]
    %v2406 = vld [vmem:[#allocation5 + $0x650] sm:$0xf]
    %v2407 = vld [vmem:[#allocation5 + $0x654] sm:$0xf]
    %v2408 = vld [vmem:[#allocation5 + $0x658] sm:$0xf]
    %v2409 = vld [vmem:[#allocation5 + $0x65c] sm:$0xf]
    %v2410 = vld [vmem:[#allocation5 + $0x660] sm:$0xf]
    %v2411 = vld [vmem:[#allocation5 + $0x664] sm:$0xf]
    %v2412 = vld [vmem:[#allocation5 + $0x668] sm:$0xf]
    %v2413 = vld [vmem:[#allocation5 + $0x66c] sm:$0xf]
    %v2414 = vld [vmem:[#allocation5 + $0x670] sm:$0xf]
    %v2415 = vld [vmem:[#allocation5 + $0x674] sm:$0xf]
    %v2416 = vld [vmem:[#allocation5 + $0x678] sm:$0xf]
    %v2417 = vld [vmem:[#allocation5 + $0x67c] sm:$0xf]
    %v2418 = vld [vmem:[#allocation5 + $0x680] sm:$0xf]
    %v2419 = vld [vmem:[#allocation5 + $0x684] sm:$0xf]
    %v2420 = vld [vmem:[#allocation5 + $0x688] sm:$0xf]
    %v2421 = vld [vmem:[#allocation5 + $0x68c] sm:$0xf]
    %v2422 = vld [vmem:[#allocation5 + $0x690] sm:$0xf]
    %v2423 = vld [vmem:[#allocation5 + $0x694] sm:$0xf]
    %v2424 = vld [vmem:[#allocation5 + $0x698] sm:$0xf]
    %v2425 = vld [vmem:[#allocation5 + $0x69c] sm:$0xf]
    %v2426 = vld [vmem:[#allocation5 + $0x6a0] sm:$0xf]
    %v2427 = vld [vmem:[#allocation5 + $0x6a4] sm:$0xf]
    %v2428 = vld [vmem:[#allocation5 + $0x6a8] sm:$0xf]
    %v2429 = vld [vmem:[#allocation5 + $0x6ac] sm:$0xf]
    %v2430 = vld [vmem:[#allocation5 + $0x6b0] sm:$0xf]
    %v2431 = vld [vmem:[#allocation5 + $0x6b4] sm:$0xf]
    %v2432 = vld [vmem:[#allocation5 + $0x6b8] sm:$0xf]
    %v2433 = vld [vmem:[#allocation5 + $0x6bc] sm:$0xf]
    %v2434 = vld [vmem:[#allocation5 + $0x6c0] sm:$0xf]
    %v2435 = vld [vmem:[#allocation5 + $0x6c4] sm:$0xf]
    %v2436 = vld [vmem:[#allocation5 + $0x6c8] sm:$0xf]
    %v2437 = vld [vmem:[#allocation5 + $0x6cc] sm:$0xf]
    %v2438 = vld [vmem:[#allocation5 + $0x6d0] sm:$0xf]
    %v2439 = vld [vmem:[#allocation5 + $0x6d4] sm:$0xf]
    %v2440 = vld [vmem:[#allocation5 + $0x6d8] sm:$0xf]
    %v2441 = vld [vmem:[#allocation5 + $0x6dc] sm:$0xf]
    %v2442 = vld [vmem:[#allocation5 + $0x6e0] sm:$0xf]
    %v2443 = vld [vmem:[#allocation5 + $0x6e4] sm:$0xf]
    %v2444 = vld [vmem:[#allocation5 + $0x6e8] sm:$0xf]
    %v2445 = vld [vmem:[#allocation5 + $0x6ec] sm:$0xf]
    %v2446 = vld [vmem:[#allocation5 + $0x6f0] sm:$0xf]
    %v2447 = vld [vmem:[#allocation5 + $0x6f4] sm:$0xf]
    %v2448 = vld [vmem:[#allocation5 + $0x6f8] sm:$0xf]
    %v2449 = vld [vmem:[#allocation5 + $0x6fc] sm:$0xf]
    %v2450 = vld [vmem:[#allocation5 + $0x700] sm:$0xf]
    %v2451 = vld [vmem:[#allocation5 + $0x704] sm:$0xf]
    %v2452 = vld [vmem:[#allocation5 + $0x708] sm:$0xf]
    %v2453 = vld [vmem:[#allocation5 + $0x70c] sm:$0xf]
    %v2454 = vld [vmem:[#allocation5 + $0x710] sm:$0xf]
    %v2455 = vld [vmem:[#allocation5 + $0x714] sm:$0xf]
    %v2456 = vld [vmem:[#allocation5 + $0x718] sm:$0xf]
    %v2457 = vld [vmem:[#allocation5 + $0x71c] sm:$0xf]
    %v2458 = vld [vmem:[#allocation5 + $0x720] sm:$0xf]
    %v2459 = vld [vmem:[#allocation5 + $0x724] sm:$0xf]
    %v2460 = vld [vmem:[#allocation5 + $0x728] sm:$0xf]
    %v2461 = vld [vmem:[#allocation5 + $0x72c] sm:$0xf]
    %v2462 = vld [vmem:[#allocation5 + $0x730] sm:$0xf]
    %v2463 = vld [vmem:[#allocation5 + $0x734] sm:$0xf]
    %v2464 = vld [vmem:[#allocation5 + $0x738] sm:$0xf]
    %v2465 = vld [vmem:[#allocation5 + $0x73c] sm:$0xf]
    %v2466 = vld [vmem:[#allocation5 + $0x740] sm:$0xf]
    %v2467 = vld [vmem:[#allocation5 + $0x744] sm:$0xf]
    %v2468 = vld [vmem:[#allocation5 + $0x748] sm:$0xf]
    %v2469 = vld [vmem:[#allocation5 + $0x74c] sm:$0xf]
    %v2470 = vld [vmem:[#allocation5 + $0x750] sm:$0xf]
    %v2471 = vld [vmem:[#allocation5 + $0x754] sm:$0xf]
    %v2472 = vld [vmem:[#allocation5 + $0x758] sm:$0xf]
    %v2473 = vld [vmem:[#allocation5 + $0x75c] sm:$0xf]
    %v2474 = vld [vmem:[#allocation5 + $0x760] sm:$0xf]
    %v2475 = vld [vmem:[#allocation5 + $0x764] sm:$0xf]
    %v2476 = vld [vmem:[#allocation5 + $0x768] sm:$0xf]
    %v2477 = vld [vmem:[#allocation5 + $0x76c] sm:$0xf]
    %v2478 = vld [vmem:[#allocation5 + $0x770] sm:$0xf]
    %v2479 = vld [vmem:[#allocation5 + $0x774] sm:$0xf]
    %v2480 = vld [vmem:[#allocation5 + $0x778] sm:$0xf]
    %v2481 = vld [vmem:[#allocation5 + $0x77c] sm:$0xf]
    %v2482 = vld [vmem:[#allocation5 + $0x780] sm:$0xf]
    %v2483 = vld [vmem:[#allocation5 + $0x784] sm:$0xf]
    %v2484 = vld [vmem:[#allocation5 + $0x788] sm:$0xf]
    %v2485 = vld [vmem:[#allocation5 + $0x78c] sm:$0xf]
    %v2486 = vld [vmem:[#allocation5 + $0x790] sm:$0xf]
    %v2487 = vld [vmem:[#allocation5 + $0x794] sm:$0xf]
    %v2488 = vld [vmem:[#allocation5 + $0x798] sm:$0xf]
    %v2489 = vld [vmem:[#allocation5 + $0x79c] sm:$0xf]
    %v2490 = vld [vmem:[#allocation5 + $0x7a0] sm:$0xf]
    %v2491 = vld [vmem:[#allocation5 + $0x7a4] sm:$0xf]
    %v2492 = vld [vmem:[#allocation5 + $0x7a8] sm:$0xf]
    %v2493 = vld [vmem:[#allocation5 + $0x7ac] sm:$0xf]
    %v2494 = vld [vmem:[#allocation5 + $0x7b0] sm:$0xf]
    %v2495 = vld [vmem:[#allocation5 + $0x7b4] sm:$0xf]
    %v2496 = vld [vmem:[#allocation5 + $0x7b8] sm:$0xf]
    %v2497 = vld [vmem:[#allocation5 + $0x7bc] sm:$0xf]
    %v2498 = vld [vmem:[#allocation5 + $0x7c0] sm:$0xf]
    %v2499 = vld [vmem:[#allocation5 + $0x7c4] sm:$0xf]
    %v2500 = vld [vmem:[#allocation5 + $0x7c8] sm:$0xf]
    %v2501 = vld [vmem:[#allocation5 + $0x7cc] sm:$0xf]
    %v2502 = vld [vmem:[#allocation5 + $0x7d0] sm:$0xf]
    %v2503 = vld [vmem:[#allocation5 + $0x7d4] sm:$0xf]
    %v2504 = vld [vmem:[#allocation5 + $0x7d8] sm:$0xf]
    %v2505 = vld [vmem:[#allocation5 + $0x7dc] sm:$0xf]
    %v2506 = vld [vmem:[#allocation5 + $0x7e0] sm:$0xf]
    %v2507 = vld [vmem:[#allocation5 + $0x7e4] sm:$0xf]
    %v2508 = vld [vmem:[#allocation5 + $0x7e8] sm:$0xf]
    %v2509 = vld [vmem:[#allocation5 + $0x7ec] sm:$0xf]
    %v2510 = vld [vmem:[#allocation5 + $0x7f0] sm:$0xf]
    %v2511 = vld [vmem:[#allocation5 + $0x7f4] sm:$0xf]
    %v2512 = vld [vmem:[#allocation5 + $0x7f8] sm:$0xf]
    %v2513 = vld [vmem:[#allocation5 + $0x7fc] sm:$0xf]
    %v2642 = vunpack.c.l.b16 %v2386
    %v2643 = vunpack.c.l.b16 %v2387
    %v2644 = vunpack.c.l.b16 %v2388
    %v2645 = vunpack.c.l.b16 %v2389
    %v2646 = vunpack.c.l.b16 %v2390
    %v2647 = vunpack.c.l.b16 %v2391
    %v2648 = vunpack.c.l.b16 %v2392
    %v2649 = vunpack.c.l.b16 %v2393
    %v2650 = vunpack.c.l.b16 %v2394
    %v2651 = vunpack.c.l.b16 %v2395
    %v2652 = vunpack.c.l.b16 %v2396
    %v2653 = vunpack.c.l.b16 %v2397
    %v2654 = vunpack.c.l.b16 %v2398
    %v2655 = vunpack.c.l.b16 %v2399
    %v2656 = vunpack.c.l.b16 %v2400
    %v2657 = vunpack.c.l.b16 %v2401
    %v2658 = vunpack.c.l.b16 %v2402
    %v2659 = vunpack.c.l.b16 %v2403
    %v2660 = vunpack.c.l.b16 %v2404
    %v2661 = vunpack.c.l.b16 %v2405
    %v2662 = vunpack.c.l.b16 %v2406
    %v2663 = vunpack.c.l.b16 %v2407
    %v2664 = vunpack.c.l.b16 %v2408
    %v2665 = vunpack.c.l.b16 %v2409
    %v2666 = vunpack.c.l.b16 %v2410
    %v2667 = vunpack.c.l.b16 %v2411
    %v2668 = vunpack.c.l.b16 %v2412
    %v2669 = vunpack.c.l.b16 %v2413
    %v2670 = vunpack.c.l.b16 %v2414
    %v2671 = vunpack.c.l.b16 %v2415
    %v2672 = vunpack.c.l.b16 %v2416
    %v2673 = vunpack.c.l.b16 %v2417
    %v2674 = vunpack.c.l.b16 %v2418
    %v2675 = vunpack.c.l.b16 %v2419
    %v2676 = vunpack.c.l.b16 %v2420
    %v2677 = vunpack.c.l.b16 %v2421
    %v2678 = vunpack.c.l.b16 %v2422
    %v2679 = vunpack.c.l.b16 %v2423
    %v2680 = vunpack.c.l.b16 %v2424
    %v2681 = vunpack.c.l.b16 %v2425
    %v2682 = vunpack.c.l.b16 %v2426
    %v2683 = vunpack.c.l.b16 %v2427
    %v2684 = vunpack.c.l.b16 %v2428
    %v2685 = vunpack.c.l.b16 %v2429
    %v2686 = vunpack.c.l.b16 %v2430
    %v2687 = vunpack.c.l.b16 %v2431
    %v2688 = vunpack.c.l.b16 %v2432
    %v2689 = vunpack.c.l.b16 %v2433
    %v2690 = vunpack.c.l.b16 %v2434
    %v2691 = vunpack.c.l.b16 %v2435
    %v2692 = vunpack.c.l.b16 %v2436
    %v2693 = vunpack.c.l.b16 %v2437
    %v2694 = vunpack.c.l.b16 %v2438
    %v2695 = vunpack.c.l.b16 %v2439
    %v2696 = vunpack.c.l.b16 %v2440
    %v2697 = vunpack.c.l.b16 %v2441
    %v2698 = vunpack.c.l.b16 %v2442
    %v2699 = vunpack.c.l.b16 %v2443
    %v2700 = vunpack.c.l.b16 %v2444
    %v2701 = vunpack.c.l.b16 %v2445
    %v2702 = vunpack.c.l.b16 %v2446
    %v2703 = vunpack.c.l.b16 %v2447
    %v2704 = vunpack.c.l.b16 %v2448
    %v2705 = vunpack.c.l.b16 %v2449
    %v2706 = vunpack.c.l.b16 %v2450
    %v2707 = vunpack.c.l.b16 %v2451
    %v2708 = vunpack.c.l.b16 %v2452
    %v2709 = vunpack.c.l.b16 %v2453
    %v2710 = vunpack.c.l.b16 %v2454
    %v2711 = vunpack.c.l.b16 %v2455
    %v2712 = vunpack.c.l.b16 %v2456
    %v2713 = vunpack.c.l.b16 %v2457
    %v2714 = vunpack.c.l.b16 %v2458
    %v2715 = vunpack.c.l.b16 %v2459
    %v2716 = vunpack.c.l.b16 %v2460
    %v2717 = vunpack.c.l.b16 %v2461
    %v2718 = vunpack.c.l.b16 %v2462
    %v2719 = vunpack.c.l.b16 %v2463
    %v2720 = vunpack.c.l.b16 %v2464
    %v2721 = vunpack.c.l.b16 %v2465
    %v2722 = vunpack.c.l.b16 %v2466
    %v2723 = vunpack.c.l.b16 %v2467
    %v2724 = vunpack.c.l.b16 %v2468
    %v2725 = vunpack.c.l.b16 %v2469
    %v2726 = vunpack.c.l.b16 %v2470
    %v2727 = vunpack.c.l.b16 %v2471
    %v2728 = vunpack.c.l.b16 %v2472
    %v2729 = vunpack.c.l.b16 %v2473
    %v2730 = vunpack.c.l.b16 %v2474
    %v2731 = vunpack.c.l.b16 %v2475
    %v2732 = vunpack.c.l.b16 %v2476
    %v2733 = vunpack.c.l.b16 %v2477
    %v2734 = vunpack.c.l.b16 %v2478
    %v2735 = vunpack.c.l.b16 %v2479
    %v2736 = vunpack.c.l.b16 %v2480
    %v2737 = vunpack.c.l.b16 %v2481
    %v2738 = vunpack.c.l.b16 %v2482
    %v2739 = vunpack.c.l.b16 %v2483
    %v2740 = vunpack.c.l.b16 %v2484
    %v2741 = vunpack.c.l.b16 %v2485
    %v2742 = vunpack.c.l.b16 %v2486
    %v2743 = vunpack.c.l.b16 %v2487
    %v2744 = vunpack.c.l.b16 %v2488
    %v2745 = vunpack.c.l.b16 %v2489
    %v2746 = vunpack.c.l.b16 %v2490
    %v2747 = vunpack.c.l.b16 %v2491
    %v2748 = vunpack.c.l.b16 %v2492
    %v2749 = vunpack.c.l.b16 %v2493
    %v2750 = vunpack.c.l.b16 %v2494
    %v2751 = vunpack.c.l.b16 %v2495
    %v2752 = vunpack.c.l.b16 %v2496
    %v2753 = vunpack.c.l.b16 %v2497
    %v2754 = vunpack.c.l.b16 %v2498
    %v2755 = vunpack.c.l.b16 %v2499
    %v2756 = vunpack.c.l.b16 %v2500
    %v2757 = vunpack.c.l.b16 %v2501
    %v2758 = vunpack.c.l.b16 %v2502
    %v2759 = vunpack.c.l.b16 %v2503
    %v2760 = vunpack.c.l.b16 %v2504
    %v2761 = vunpack.c.l.b16 %v2505
    %v2762 = vunpack.c.l.b16 %v2506
    %v2763 = vunpack.c.l.b16 %v2507
    %v2764 = vunpack.c.l.b16 %v2508
    %v2765 = vunpack.c.l.b16 %v2509
    %v2766 = vunpack.c.l.b16 %v2510
    %v2767 = vunpack.c.l.b16 %v2511
    %v2768 = vunpack.c.l.b16 %v2512
    %v2769 = vunpack.c.l.b16 %v2513
    %v2770 = vpack.c.b16 %v2643, %v2642
    %v2771 = vpack.c.b16 %v2645, %v2644
    %v2772 = vpack.c.b16 %v2647, %v2646
    %v2773 = vpack.c.b16 %v2649, %v2648
    %v2774 = vpack.c.b16 %v2651, %v2650
    %v2775 = vpack.c.b16 %v2653, %v2652
    %v2776 = vpack.c.b16 %v2655, %v2654
    %v2777 = vpack.c.b16 %v2657, %v2656
    %v2778 = vpack.c.b16 %v2659, %v2658
    %v2779 = vpack.c.b16 %v2661, %v2660
    %v2780 = vpack.c.b16 %v2663, %v2662
    %v2781 = vpack.c.b16 %v2665, %v2664
    %v2782 = vpack.c.b16 %v2667, %v2666
    %v2783 = vpack.c.b16 %v2669, %v2668
    %v2784 = vpack.c.b16 %v2671, %v2670
    %v2785 = vpack.c.b16 %v2673, %v2672
    %v2786 = vpack.c.b16 %v2675, %v2674
    %v2787 = vpack.c.b16 %v2677, %v2676
    %v2788 = vpack.c.b16 %v2679, %v2678
    %v2789 = vpack.c.b16 %v2681, %v2680
    %v2790 = vpack.c.b16 %v2683, %v2682
    %v2791 = vpack.c.b16 %v2685, %v2684
    %v2792 = vpack.c.b16 %v2687, %v2686
    %v2793 = vpack.c.b16 %v2689, %v2688
    %v2794 = vpack.c.b16 %v2691, %v2690
    %v2795 = vpack.c.b16 %v2693, %v2692
    %v2796 = vpack.c.b16 %v2695, %v2694
    %v2797 = vpack.c.b16 %v2697, %v2696
    %v2798 = vpack.c.b16 %v2699, %v2698
    %v2799 = vpack.c.b16 %v2701, %v2700
    %v2800 = vpack.c.b16 %v2703, %v2702
    %v2801 = vpack.c.b16 %v2705, %v2704
    %v2802 = vpack.c.b16 %v2707, %v2706
    %v2803 = vpack.c.b16 %v2709, %v2708
    %v2804 = vpack.c.b16 %v2711, %v2710
    %v2805 = vpack.c.b16 %v2713, %v2712
    %v2806 = vpack.c.b16 %v2715, %v2714
    %v2807 = vpack.c.b16 %v2717, %v2716
    %v2808 = vpack.c.b16 %v2719, %v2718
    %v2809 = vpack.c.b16 %v2721, %v2720
    %v2810 = vpack.c.b16 %v2723, %v2722
    %v2811 = vpack.c.b16 %v2725, %v2724
    %v2812 = vpack.c.b16 %v2727, %v2726
    %v2813 = vpack.c.b16 %v2729, %v2728
    %v2814 = vpack.c.b16 %v2731, %v2730
    %v2815 = vpack.c.b16 %v2733, %v2732
    %v2816 = vpack.c.b16 %v2735, %v2734
    %v2817 = vpack.c.b16 %v2737, %v2736
    %v2818 = vpack.c.b16 %v2739, %v2738
    %v2819 = vpack.c.b16 %v2741, %v2740
    %v2820 = vpack.c.b16 %v2743, %v2742
    %v2821 = vpack.c.b16 %v2745, %v2744
    %v2822 = vpack.c.b16 %v2747, %v2746
    %v2823 = vpack.c.b16 %v2749, %v2748
    %v2824 = vpack.c.b16 %v2751, %v2750
    %v2825 = vpack.c.b16 %v2753, %v2752
    %v2826 = vpack.c.b16 %v2755, %v2754
    %v2827 = vpack.c.b16 %v2757, %v2756
    %v2828 = vpack.c.b16 %v2759, %v2758
    %v2829 = vpack.c.b16 %v2761, %v2760
    %v2830 = vpack.c.b16 %v2763, %v2762
    %v2831 = vpack.c.b16 %v2765, %v2764
    %v2832 = vpack.c.b16 %v2767, %v2766
    %v2833 = vpack.c.b16 %v2769, %v2768
    %2898 = vmatprep.subr.bf16.mxu0 0
    %2899 = vmatpush1.bf16.msra.mxu0 %v2770
    %2900 = vmatprep.subr.bf16.mxu0 0
    %2901 = vmatpush1.bf16.msra.mxu0 %v2771
    %2902 = vmatprep.subr.bf16.mxu0 0
    %2903 = vmatpush1.bf16.msra.mxu0 %v2772
    %2904 = vmatprep.subr.bf16.mxu0 0
    %2905 = vmatpush1.bf16.msra.mxu0 %v2773
    %2906 = vmatprep.subr.bf16.mxu0 0
    %2907 = vmatpush1.bf16.msra.mxu0 %v2774
    %2908 = vmatprep.subr.bf16.mxu0 0
    %2909 = vmatpush1.bf16.msra.mxu0 %v2775
    %2910 = vmatprep.subr.bf16.mxu0 0
    %2911 = vmatpush1.bf16.msra.mxu0 %v2776
    %2912 = vmatprep.subr.bf16.mxu0 0
    %2913 = vmatpush1.bf16.msra.mxu0 %v2777
    %2914 = vmatprep.subr.bf16.mxu0 0
    %2915 = vmatpush1.bf16.msra.mxu0 %v2778
    %2916 = vmatprep.subr.bf16.mxu0 0
    %2917 = vmatpush1.bf16.msra.mxu0 %v2779
    %2918 = vmatprep.subr.bf16.mxu0 0
    %2919 = vmatpush1.bf16.msra.mxu0 %v2780
    %2920 = vmatprep.subr.bf16.mxu0 0
    %2921 = vmatpush1.bf16.msra.mxu0 %v2781
    %2922 = vmatprep.subr.bf16.mxu0 0
    %2923 = vmatpush1.bf16.msra.mxu0 %v2782
    %2924 = vmatprep.subr.bf16.mxu0 0
    %2925 = vmatpush1.bf16.msra.mxu0 %v2783
    %2926 = vmatprep.subr.bf16.mxu0 0
    %2927 = vmatpush1.bf16.msra.mxu0 %v2784
    %2928 = vmatprep.subr.bf16.mxu0 0
    %2929 = vmatpush1.bf16.msra.mxu0 %v2785
    %2930 = vmatprep.mubr.bf16.mxu0 %v2379
    %2931 = vmatmul.mubr.bf16.gmra.mrb[0].mxu0 %v2378
    %v2932 = vpop.f32.mrb[0].mxu0
    %v2933 = vadd.f32 0.0, %v2932
    %v2934 = vpop.f32.mrb[0].mxu0
    %v2935 = vpop.f32.mrb[0].mxu0
    %v2936 = vpop.f32.mrb[0].mxu0
    %2937 = vdwg.mxu0
    %2938 = vmatprep.subr.bf16.mxu0 0
    %2939 = vmatpush1.bf16.msra.mxu0 %v2786
    %2940 = vmatprep.subr.bf16.mxu0 0
    %2941 = vmatpush1.bf16.msra.mxu0 %v2787
    %2942 = vmatprep.subr.bf16.mxu0 0
    %2943 = vmatpush1.bf16.msra.mxu0 %v2788
    %2944 = vmatprep.subr.bf16.mxu0 0
    %2945 = vmatpush1.bf16.msra.mxu0 %v2789
    %2946 = vmatprep.subr.bf16.mxu0 0
    %2947 = vmatpush1.bf16.msra.mxu0 %v2790
    %2948 = vmatprep.subr.bf16.mxu0 0
    %2949 = vmatpush1.bf16.msra.mxu0 %v2791
    %2950 = vmatprep.subr.bf16.mxu0 0
    %2951 = vmatpush1.bf16.msra.mxu0 %v2792
    %2952 = vmatprep.subr.bf16.mxu0 0
    %2953 = vmatpush1.bf16.msra.mxu0 %v2793
    %2954 = vmatprep.subr.bf16.mxu0 0
    %2955 = vmatpush1.bf16.msra.mxu0 %v2794
    %2956 = vmatprep.subr.bf16.mxu0 0
    %2957 = vmatpush1.bf16.msra.mxu0 %v2795
    %2958 = vmatprep.subr.bf16.mxu0 0
    %2959 = vmatpush1.bf16.msra.mxu0 %v2796
    %2960 = vmatprep.subr.bf16.mxu0 0
    %2961 = vmatpush1.bf16.msra.mxu0 %v2797
    %2962 = vmatprep.subr.bf16.mxu0 0
    %2963 = vmatpush1.bf16.msra.mxu0 %v2798
    %2964 = vmatprep.subr.bf16.mxu0 0
    %2965 = vmatpush1.bf16.msra.mxu0 %v2799
    %2966 = vmatprep.subr.bf16.mxu0 0
    %2967 = vmatpush1.bf16.msra.mxu0 %v2800
    %2968 = vmatprep.subr.bf16.mxu0 0
    %2969 = vmatpush1.bf16.msra.mxu0 %v2801
    %2970 = vmatprep.mubr.bf16.mxu0 %v2381
    %2971 = vmatmul.mubr.bf16.gmra.mrb[0].mxu0 %v2380
    %v2972 = vpop.f32.mrb[0].mxu0
    %v2973 = vadd.f32 %v2933, %v2972
    %v2974 = vpop.f32.mrb[0].mxu0
    %v2975 = vpop.f32.mrb[0].mxu0
    %v2976 = vpop.f32.mrb[0].mxu0
    %2977 = vdwg.mxu0
    %2978 = vmatprep.subr.bf16.mxu0 0
    %2979 = vmatpush1.bf16.msra.mxu0 %v2802
    %2980 = vmatprep.subr.bf16.mxu0 0
    %2981 = vmatpush1.bf16.msra.mxu0 %v2803
    %2982 = vmatprep.subr.bf16.mxu0 0
    %2983 = vmatpush1.bf16.msra.mxu0 %v2804
    %2984 = vmatprep.subr.bf16.mxu0 0
    %2985 = vmatpush1.bf16.msra.mxu0 %v2805
    %2986 = vmatprep.subr.bf16.mxu0 0
    %2987 = vmatpush1.bf16.msra.mxu0 %v2806
    %2988 = vmatprep.subr.bf16.mxu0 0
    %2989 = vmatpush1.bf16.msra.mxu0 %v2807
    %2990 = vmatprep.subr.bf16.mxu0 0
    %2991 = vmatpush1.bf16.msra.mxu0 %v2808
    %2992 = vmatprep.subr.bf16.mxu0 0
    %2993 = vmatpush1.bf16.msra.mxu0 %v2809
    %2994 = vmatprep.subr.bf16.mxu0 0
    %2995 = vmatpush1.bf16.msra.mxu0 %v2810
    %2996 = vmatprep.subr.bf16.mxu0 0
    %2997 = vmatpush1.bf16.msra.mxu0 %v2811
    %2998 = vmatprep.subr.bf16.mxu0 0
    %2999 = vmatpush1.bf16.msra.mxu0 %v2812
    %3000 = vmatprep.subr.bf16.mxu0 0
    %3001 = vmatpush1.bf16.msra.mxu0 %v2813
    %3002 = vmatprep.subr.bf16.mxu0 0
    %3003 = vmatpush1.bf16.msra.mxu0 %v2814
    %3004 = vmatprep.subr.bf16.mxu0 0
    %3005 = vmatpush1.bf16.msra.mxu0 %v2815
    %3006 = vmatprep.subr.bf16.mxu0 0
    %3007 = vmatpush1.bf16.msra.mxu0 %v2816
    %3008 = vmatprep.subr.bf16.mxu0 0
    %3009 = vmatpush1.bf16.msra.mxu0 %v2817
    %3010 = vmatprep.mubr.bf16.mxu0 %v2383
    %3011 = vmatmul.mubr.bf16.gmra.mrb[0].mxu0 %v2382
    %v3012 = vpop.f32.mrb[0].mxu0
    %v3013 = vadd.f32 %v2973, %v3012
    %v3014 = vpop.f32.mrb[0].mxu0
    %v3015 = vpop.f32.mrb[0].mxu0
    %v3016 = vpop.f32.mrb[0].mxu0
    %3017 = vdwg.mxu0
    %3018 = vmatprep.subr.bf16.mxu0 0
    %3019 = vmatpush1.bf16.msra.mxu0 %v2818
    %3020 = vmatprep.subr.bf16.mxu0 0
    %3021 = vmatpush1.bf16.msra.mxu0 %v2819
    %3022 = vmatprep.subr.bf16.mxu0 0
    %3023 = vmatpush1.bf16.msra.mxu0 %v2820
    %3024 = vmatprep.subr.bf16.mxu0 0
    %3025 = vmatpush1.bf16.msra.mxu0 %v2821
    %3026 = vmatprep.subr.bf16.mxu0 0
    %3027 = vmatpush1.bf16.msra.mxu0 %v2822
    %3028 = vmatprep.subr.bf16.mxu0 0
    %3029 = vmatpush1.bf16.msra.mxu0 %v2823
    %3030 = vmatprep.subr.bf16.mxu0 0
    %3031 = vmatpush1.bf16.msra.mxu0 %v2824
    %3032 = vmatprep.subr.bf16.mxu0 0
    %3033 = vmatpush1.bf16.msra.mxu0 %v2825
    %3034 = vmatprep.subr.bf16.mxu0 0
    %3035 = vmatpush1.bf16.msra.mxu0 %v2826
    %3036 = vmatprep.subr.bf16.mxu0 0
    %3037 = vmatpush1.bf16.msra.mxu0 %v2827
    %3038 = vmatprep.subr.bf16.mxu0 0
    %3039 = vmatpush1.bf16.msra.mxu0 %v2828
    %3040 = vmatprep.subr.bf16.mxu0 0
    %3041 = vmatpush1.bf16.msra.mxu0 %v2829
    %3042 = vmatprep.subr.bf16.mxu0 0
    %3043 = vmatpush1.bf16.msra.mxu0 %v2830
    %3044 = vmatprep.subr.bf16.mxu0 0
    %3045 = vmatpush1.bf16.msra.mxu0 %v2831
    %3046 = vmatprep.subr.bf16.mxu0 0
    %3047 = vmatpush1.bf16.msra.mxu0 %v2832
    %3048 = vmatprep.subr.bf16.mxu0 0
    %3049 = vmatpush1.bf16.msra.mxu0 %v2833
    %3050 = vmatprep.mubr.bf16.mxu0 %v2385
    %3051 = vmatmul.mubr.bf16.gmra.mrb[0].mxu0 %v2384
    %v3052 = vpop.f32.mrb[0].mxu0
    %v3053 = vadd.f32 %v3013, %v3052
    %v3054 = vpop.f32.mrb[0].mxu0
    %v3055 = vpop.f32.mrb[0].mxu0
    %v3056 = vpop.f32.mrb[0].mxu0
    %3057 = vdwg.mxu0
    %v3058 = vadd.f32 %v2325, %v3053
    %v3059 = vmul.f32 %v383, 5.0
    %v3060 = vmul.f32 %v384, 5.0
    %v3061 = vmul.f32 %v3059, %v2332
    %v3062 = vmul.f32 %v3060, %v2333
    %v3063 = vmul.f32 %v383, 2.0
    %v3064 = vmul.f32 %v384, 2.0
    %v3065 = vsub.f32 %v3061, %v3063
    %v3066 = vsub.f32 %v3062, %v3064
    %v3067 = vmul.f32 %v3065, 0.33333334
    %v3068 = vmul.f32 %v3066, 0.33333334
    %v3071 = vcombine.high %v3067, %v3067
    %v3073 = vunpack.c.l.s4 1983009808
    %v3074 = vunpack.c.0.s8 %v3073
    %v3075 = vlaneseq
    %v3076 = vshrl.u32 %v3075, 7
    %v3077 = vsub.s32 %v3074, %v3076
    %v3078 = vrot.slane %v3067, %v3077
    %v3080 = vunpack.c.l.s4 1983009808
    %v3081 = vunpack.c.0.s8 %v3080
    %v3082 = vlaneseq
    %v3083 = vshrl.u32 %v3082, 7
    %v3084 = vsub.s32 %v3081, %v3083
    %v3085 = vrot.slane %v3071, %v3084
    %v3086 = vcombine.high %v3078, %v3078
    %v3087 = vcombine.high %v3085, %v3085
    %v3088 = vcombine.high %v3068, %v3068
    %v3090 = vunpack.c.l.s4 1983009808
    %v3091 = vunpack.c.0.s8 %v3090
    %v3092 = vlaneseq
    %v3093 = vshrl.u32 %v3092, 7
    %v3094 = vsub.s32 %v3091, %v3093
    %v3095 = vrot.slane %v3068, %v3094
    %v3097 = vunpack.c.l.s4 1983009808
    %v3098 = vunpack.c.0.s8 %v3097
    %v3099 = vlaneseq
    %v3100 = vshrl.u32 %v3099, 7
    %v3101 = vsub.s32 %v3098, %v3100
    %v3102 = vrot.slane %v3088, %v3101
    %v3103 = vcombine.high %v3095, %v3095
    %v3104 = vcombine.high %v3102, %v3102
    %v3113 = vpack.c.bf16 %v3078, %v3078
    %v3114 = vpack.c.bf16 %v3086, %v3086
    %v3115 = vpack.c.bf16 %v3085, %v3085
    %v3116 = vpack.c.bf16 %v3087, %v3087
    %v3117 = vpack.c.bf16 %v3095, %v3095
    %v3118 = vpack.c.bf16 %v3103, %v3103
    %v3119 = vpack.c.bf16 %v3102, %v3102
    %v3120 = vpack.c.bf16 %v3104, %v3104
    %v3121 = vld [vmem:[#allocation5 + $0x800] sm:$0xf]
    %v3122 = vld [vmem:[#allocation5 + $0x804] sm:$0xf]
    %v3123 = vld [vmem:[#allocation5 + $0x808] sm:$0xf]
    %v3124 = vld [vmem:[#allocation5 + $0x80c] sm:$0xf]
    %v3125 = vld [vmem:[#allocation5 + $0x810] sm:$0xf]
    %v3126 = vld [vmem:[#allocation5 + $0x814] sm:$0xf]
    %v3127 = vld [vmem:[#allocation5 + $0x818] sm:$0xf]
    %v3128 = vld [vmem:[#allocation5 + $0x81c] sm:$0xf]
    %v3129 = vld [vmem:[#allocation5 + $0x820] sm:$0xf]
    %v3130 = vld [vmem:[#allocation5 + $0x824] sm:$0xf]
    %v3131 = vld [vmem:[#allocation5 + $0x828] sm:$0xf]
    %v3132 = vld [vmem:[#allocation5 + $0x82c] sm:$0xf]
    %v3133 = vld [vmem:[#allocation5 + $0x830] sm:$0xf]
    %v3134 = vld [vmem:[#allocation5 + $0x834] sm:$0xf]
    %v3135 = vld [vmem:[#allocation5 + $0x838] sm:$0xf]
    %v3136 = vld [vmem:[#allocation5 + $0x83c] sm:$0xf]
    %v3137 = vld [vmem:[#allocation5 + $0x840] sm:$0xf]
    %v3138 = vld [vmem:[#allocation5 + $0x844] sm:$0xf]
    %v3139 = vld [vmem:[#allocation5 + $0x848] sm:$0xf]
    %v3140 = vld [vmem:[#allocation5 + $0x84c] sm:$0xf]
    %v3141 = vld [vmem:[#allocation5 + $0x850] sm:$0xf]
    %v3142 = vld [vmem:[#allocation5 + $0x854] sm:$0xf]
    %v3143 = vld [vmem:[#allocation5 + $0x858] sm:$0xf]
    %v3144 = vld [vmem:[#allocation5 + $0x85c] sm:$0xf]
    %v3145 = vld [vmem:[#allocation5 + $0x860] sm:$0xf]
    %v3146 = vld [vmem:[#allocation5 + $0x864] sm:$0xf]
    %v3147 = vld [vmem:[#allocation5 + $0x868] sm:$0xf]
    %v3148 = vld [vmem:[#allocation5 + $0x86c] sm:$0xf]
    %v3149 = vld [vmem:[#allocation5 + $0x870] sm:$0xf]
    %v3150 = vld [vmem:[#allocation5 + $0x874] sm:$0xf]
    %v3151 = vld [vmem:[#allocation5 + $0x878] sm:$0xf]
    %v3152 = vld [vmem:[#allocation5 + $0x87c] sm:$0xf]
    %v3153 = vld [vmem:[#allocation5 + $0x880] sm:$0xf]
    %v3154 = vld [vmem:[#allocation5 + $0x884] sm:$0xf]
    %v3155 = vld [vmem:[#allocation5 + $0x888] sm:$0xf]
    %v3156 = vld [vmem:[#allocation5 + $0x88c] sm:$0xf]
    %v3157 = vld [vmem:[#allocation5 + $0x890] sm:$0xf]
    %v3158 = vld [vmem:[#allocation5 + $0x894] sm:$0xf]
    %v3159 = vld [vmem:[#allocation5 + $0x898] sm:$0xf]
    %v3160 = vld [vmem:[#allocation5 + $0x89c] sm:$0xf]
    %v3161 = vld [vmem:[#allocation5 + $0x8a0] sm:$0xf]
    %v3162 = vld [vmem:[#allocation5 + $0x8a4] sm:$0xf]
    %v3163 = vld [vmem:[#allocation5 + $0x8a8] sm:$0xf]
    %v3164 = vld [vmem:[#allocation5 + $0x8ac] sm:$0xf]
    %v3165 = vld [vmem:[#allocation5 + $0x8b0] sm:$0xf]
    %v3166 = vld [vmem:[#allocation5 + $0x8b4] sm:$0xf]
    %v3167 = vld [vmem:[#allocation5 + $0x8b8] sm:$0xf]
    %v3168 = vld [vmem:[#allocation5 + $0x8bc] sm:$0xf]
    %v3169 = vld [vmem:[#allocation5 + $0x8c0] sm:$0xf]
    %v3170 = vld [vmem:[#allocation5 + $0x8c4] sm:$0xf]
    %v3171 = vld [vmem:[#allocation5 + $0x8c8] sm:$0xf]
    %v3172 = vld [vmem:[#allocation5 + $0x8cc] sm:$0xf]
    %v3173 = vld [vmem:[#allocation5 + $0x8d0] sm:$0xf]
    %v3174 = vld [vmem:[#allocation5 + $0x8d4] sm:$0xf]
    %v3175 = vld [vmem:[#allocation5 + $0x8d8] sm:$0xf]
    %v3176 = vld [vmem:[#allocation5 + $0x8dc] sm:$0xf]
    %v3177 = vld [vmem:[#allocation5 + $0x8e0] sm:$0xf]
    %v3178 = vld [vmem:[#allocation5 + $0x8e4] sm:$0xf]
    %v3179 = vld [vmem:[#allocation5 + $0x8e8] sm:$0xf]
    %v3180 = vld [vmem:[#allocation5 + $0x8ec] sm:$0xf]
    %v3181 = vld [vmem:[#allocation5 + $0x8f0] sm:$0xf]
    %v3182 = vld [vmem:[#allocation5 + $0x8f4] sm:$0xf]
    %v3183 = vld [vmem:[#allocation5 + $0x8f8] sm:$0xf]
    %v3184 = vld [vmem:[#allocation5 + $0x8fc] sm:$0xf]
    %v3185 = vld [vmem:[#allocation5 + $0x900] sm:$0xf]
    %v3186 = vld [vmem:[#allocation5 + $0x904] sm:$0xf]
    %v3187 = vld [vmem:[#allocation5 + $0x908] sm:$0xf]
    %v3188 = vld [vmem:[#allocation5 + $0x90c] sm:$0xf]
    %v3189 = vld [vmem:[#allocation5 + $0x910] sm:$0xf]
    %v3190 = vld [vmem:[#allocation5 + $0x914] sm:$0xf]
    %v3191 = vld [vmem:[#allocation5 + $0x918] sm:$0xf]
    %v3192 = vld [vmem:[#allocation5 + $0x91c] sm:$0xf]
    %v3193 = vld [vmem:[#allocation5 + $0x920] sm:$0xf]
    %v3194 = vld [vmem:[#allocation5 + $0x924] sm:$0xf]
    %v3195 = vld [vmem:[#allocation5 + $0x928] sm:$0xf]
    %v3196 = vld [vmem:[#allocation5 + $0x92c] sm:$0xf]
    %v3197 = vld [vmem:[#allocation5 + $0x930] sm:$0xf]
    %v3198 = vld [vmem:[#allocation5 + $0x934] sm:$0xf]
    %v3199 = vld [vmem:[#allocation5 + $0x938] sm:$0xf]
    %v3200 = vld [vmem:[#allocation5 + $0x93c] sm:$0xf]
    %v3201 = vld [vmem:[#allocation5 + $0x940] sm:$0xf]
    %v3202 = vld [vmem:[#allocation5 + $0x944] sm:$0xf]
    %v3203 = vld [vmem:[#allocation5 + $0x948] sm:$0xf]
    %v3204 = vld [vmem:[#allocation5 + $0x94c] sm:$0xf]
    %v3205 = vld [vmem:[#allocation5 + $0x950] sm:$0xf]
    %v3206 = vld [vmem:[#allocation5 + $0x954] sm:$0xf]
    %v3207 = vld [vmem:[#allocation5 + $0x958] sm:$0xf]
    %v3208 = vld [vmem:[#allocation5 + $0x95c] sm:$0xf]
    %v3209 = vld [vmem:[#allocation5 + $0x960] sm:$0xf]
    %v3210 = vld [vmem:[#allocation5 + $0x964] sm:$0xf]
    %v3211 = vld [vmem:[#allocation5 + $0x968] sm:$0xf]
    %v3212 = vld [vmem:[#allocation5 + $0x96c] sm:$0xf]
    %v3213 = vld [vmem:[#allocation5 + $0x970] sm:$0xf]
    %v3214 = vld [vmem:[#allocation5 + $0x974] sm:$0xf]
    %v3215 = vld [vmem:[#allocation5 + $0x978] sm:$0xf]
    %v3216 = vld [vmem:[#allocation5 + $0x97c] sm:$0xf]
    %v3217 = vld [vmem:[#allocation5 + $0x980] sm:$0xf]
    %v3218 = vld [vmem:[#allocation5 + $0x984] sm:$0xf]
    %v3219 = vld [vmem:[#allocation5 + $0x988] sm:$0xf]
    %v3220 = vld [vmem:[#allocation5 + $0x98c] sm:$0xf]
    %v3221 = vld [vmem:[#allocation5 + $0x990] sm:$0xf]
    %v3222 = vld [vmem:[#allocation5 + $0x994] sm:$0xf]
    %v3223 = vld [vmem:[#allocation5 + $0x998] sm:$0xf]
    %v3224 = vld [vmem:[#allocation5 + $0x99c] sm:$0xf]
    %v3225 = vld [vmem:[#allocation5 + $0x9a0] sm:$0xf]
    %v3226 = vld [vmem:[#allocation5 + $0x9a4] sm:$0xf]
    %v3227 = vld [vmem:[#allocation5 + $0x9a8] sm:$0xf]
    %v3228 = vld [vmem:[#allocation5 + $0x9ac] sm:$0xf]
    %v3229 = vld [vmem:[#allocation5 + $0x9b0] sm:$0xf]
    %v3230 = vld [vmem:[#allocation5 + $0x9b4] sm:$0xf]
    %v3231 = vld [vmem:[#allocation5 + $0x9b8] sm:$0xf]
    %v3232 = vld [vmem:[#allocation5 + $0x9bc] sm:$0xf]
    %v3233 = vld [vmem:[#allocation5 + $0x9c0] sm:$0xf]
    %v3234 = vld [vmem:[#allocation5 + $0x9c4] sm:$0xf]
    %v3235 = vld [vmem:[#allocation5 + $0x9c8] sm:$0xf]
    %v3236 = vld [vmem:[#allocation5 + $0x9cc] sm:$0xf]
    %v3237 = vld [vmem:[#allocation5 + $0x9d0] sm:$0xf]
    %v3238 = vld [vmem:[#allocation5 + $0x9d4] sm:$0xf]
    %v3239 = vld [vmem:[#allocation5 + $0x9d8] sm:$0xf]
    %v3240 = vld [vmem:[#allocation5 + $0x9dc] sm:$0xf]
    %v3241 = vld [vmem:[#allocation5 + $0x9e0] sm:$0xf]
    %v3242 = vld [vmem:[#allocation5 + $0x9e4] sm:$0xf]
    %v3243 = vld [vmem:[#allocation5 + $0x9e8] sm:$0xf]
    %v3244 = vld [vmem:[#allocation5 + $0x9ec] sm:$0xf]
    %v3245 = vld [vmem:[#allocation5 + $0x9f0] sm:$0xf]
    %v3246 = vld [vmem:[#allocation5 + $0x9f4] sm:$0xf]
    %v3247 = vld [vmem:[#allocation5 + $0x9f8] sm:$0xf]
    %v3248 = vld [vmem:[#allocation5 + $0x9fc] sm:$0xf]
    %v3377 = vunpack.c.l.b16 %v3121
    %v3378 = vunpack.c.l.b16 %v3122
    %v3379 = vunpack.c.l.b16 %v3123
    %v3380 = vunpack.c.l.b16 %v3124
    %v3381 = vunpack.c.l.b16 %v3125
    %v3382 = vunpack.c.l.b16 %v3126
    %v3383 = vunpack.c.l.b16 %v3127
    %v3384 = vunpack.c.l.b16 %v3128
    %v3385 = vunpack.c.l.b16 %v3129
    %v3386 = vunpack.c.l.b16 %v3130
    %v3387 = vunpack.c.l.b16 %v3131
    %v3388 = vunpack.c.l.b16 %v3132
    %v3389 = vunpack.c.l.b16 %v3133
    %v3390 = vunpack.c.l.b16 %v3134
    %v3391 = vunpack.c.l.b16 %v3135
    %v3392 = vunpack.c.l.b16 %v3136
    %v3393 = vunpack.c.l.b16 %v3137
    %v3394 = vunpack.c.l.b16 %v3138
    %v3395 = vunpack.c.l.b16 %v3139
    %v3396 = vunpack.c.l.b16 %v3140
    %v3397 = vunpack.c.l.b16 %v3141
    %v3398 = vunpack.c.l.b16 %v3142
    %v3399 = vunpack.c.l.b16 %v3143
    %v3400 = vunpack.c.l.b16 %v3144
    %v3401 = vunpack.c.l.b16 %v3145
    %v3402 = vunpack.c.l.b16 %v3146
    %v3403 = vunpack.c.l.b16 %v3147
    %v3404 = vunpack.c.l.b16 %v3148
    %v3405 = vunpack.c.l.b16 %v3149
    %v3406 = vunpack.c.l.b16 %v3150
    %v3407 = vunpack.c.l.b16 %v3151
    %v3408 = vunpack.c.l.b16 %v3152
    %v3409 = vunpack.c.l.b16 %v3153
    %v3410 = vunpack.c.l.b16 %v3154
    %v3411 = vunpack.c.l.b16 %v3155
    %v3412 = vunpack.c.l.b16 %v3156
    %v3413 = vunpack.c.l.b16 %v3157
    %v3414 = vunpack.c.l.b16 %v3158
    %v3415 = vunpack.c.l.b16 %v3159
    %v3416 = vunpack.c.l.b16 %v3160
    %v3417 = vunpack.c.l.b16 %v3161
    %v3418 = vunpack.c.l.b16 %v3162
    %v3419 = vunpack.c.l.b16 %v3163
    %v3420 = vunpack.c.l.b16 %v3164
    %v3421 = vunpack.c.l.b16 %v3165
    %v3422 = vunpack.c.l.b16 %v3166
    %v3423 = vunpack.c.l.b16 %v3167
    %v3424 = vunpack.c.l.b16 %v3168
    %v3425 = vunpack.c.l.b16 %v3169
    %v3426 = vunpack.c.l.b16 %v3170
    %v3427 = vunpack.c.l.b16 %v3171
    %v3428 = vunpack.c.l.b16 %v3172
    %v3429 = vunpack.c.l.b16 %v3173
    %v3430 = vunpack.c.l.b16 %v3174
    %v3431 = vunpack.c.l.b16 %v3175
    %v3432 = vunpack.c.l.b16 %v3176
    %v3433 = vunpack.c.l.b16 %v3177
    %v3434 = vunpack.c.l.b16 %v3178
    %v3435 = vunpack.c.l.b16 %v3179
    %v3436 = vunpack.c.l.b16 %v3180
    %v3437 = vunpack.c.l.b16 %v3181
    %v3438 = vunpack.c.l.b16 %v3182
    %v3439 = vunpack.c.l.b16 %v3183
    %v3440 = vunpack.c.l.b16 %v3184
    %v3441 = vunpack.c.l.b16 %v3185
    %v3442 = vunpack.c.l.b16 %v3186
    %v3443 = vunpack.c.l.b16 %v3187
    %v3444 = vunpack.c.l.b16 %v3188
    %v3445 = vunpack.c.l.b16 %v3189
    %v3446 = vunpack.c.l.b16 %v3190
    %v3447 = vunpack.c.l.b16 %v3191
    %v3448 = vunpack.c.l.b16 %v3192
    %v3449 = vunpack.c.l.b16 %v3193
    %v3450 = vunpack.c.l.b16 %v3194
    %v3451 = vunpack.c.l.b16 %v3195
    %v3452 = vunpack.c.l.b16 %v3196
    %v3453 = vunpack.c.l.b16 %v3197
    %v3454 = vunpack.c.l.b16 %v3198
    %v3455 = vunpack.c.l.b16 %v3199
    %v3456 = vunpack.c.l.b16 %v3200
    %v3457 = vunpack.c.l.b16 %v3201
    %v3458 = vunpack.c.l.b16 %v3202
    %v3459 = vunpack.c.l.b16 %v3203
    %v3460 = vunpack.c.l.b16 %v3204
    %v3461 = vunpack.c.l.b16 %v3205
    %v3462 = vunpack.c.l.b16 %v3206
    %v3463 = vunpack.c.l.b16 %v3207
    %v3464 = vunpack.c.l.b16 %v3208
    %v3465 = vunpack.c.l.b16 %v3209
    %v3466 = vunpack.c.l.b16 %v3210
    %v3467 = vunpack.c.l.b16 %v3211
    %v3468 = vunpack.c.l.b16 %v3212
    %v3469 = vunpack.c.l.b16 %v3213
    %v3470 = vunpack.c.l.b16 %v3214
    %v3471 = vunpack.c.l.b16 %v3215
    %v3472 = vunpack.c.l.b16 %v3216
    %v3473 = vunpack.c.l.b16 %v3217
    %v3474 = vunpack.c.l.b16 %v3218
    %v3475 = vunpack.c.l.b16 %v3219
    %v3476 = vunpack.c.l.b16 %v3220
    %v3477 = vunpack.c.l.b16 %v3221
    %v3478 = vunpack.c.l.b16 %v3222
    %v3479 = vunpack.c.l.b16 %v3223
    %v3480 = vunpack.c.l.b16 %v3224
    %v3481 = vunpack.c.l.b16 %v3225
    %v3482 = vunpack.c.l.b16 %v3226
    %v3483 = vunpack.c.l.b16 %v3227
    %v3484 = vunpack.c.l.b16 %v3228
    %v3485 = vunpack.c.l.b16 %v3229
    %v3486 = vunpack.c.l.b16 %v3230
    %v3487 = vunpack.c.l.b16 %v3231
    %v3488 = vunpack.c.l.b16 %v3232
    %v3489 = vunpack.c.l.b16 %v3233
    %v3490 = vunpack.c.l.b16 %v3234
    %v3491 = vunpack.c.l.b16 %v3235
    %v3492 = vunpack.c.l.b16 %v3236
    %v3493 = vunpack.c.l.b16 %v3237
    %v3494 = vunpack.c.l.b16 %v3238
    %v3495 = vunpack.c.l.b16 %v3239
    %v3496 = vunpack.c.l.b16 %v3240
    %v3497 = vunpack.c.l.b16 %v3241
    %v3498 = vunpack.c.l.b16 %v3242
    %v3499 = vunpack.c.l.b16 %v3243
    %v3500 = vunpack.c.l.b16 %v3244
    %v3501 = vunpack.c.l.b16 %v3245
    %v3502 = vunpack.c.l.b16 %v3246
    %v3503 = vunpack.c.l.b16 %v3247
    %v3504 = vunpack.c.l.b16 %v3248
    %v3505 = vpack.c.b16 %v3378, %v3377
    %v3506 = vpack.c.b16 %v3380, %v3379
    %v3507 = vpack.c.b16 %v3382, %v3381
    %v3508 = vpack.c.b16 %v3384, %v3383
    %v3509 = vpack.c.b16 %v3386, %v3385
    %v3510 = vpack.c.b16 %v3388, %v3387
    %v3511 = vpack.c.b16 %v3390, %v3389
    %v3512 = vpack.c.b16 %v3392, %v3391
    %v3513 = vpack.c.b16 %v3394, %v3393
    %v3514 = vpack.c.b16 %v3396, %v3395
    %v3515 = vpack.c.b16 %v3398, %v3397
    %v3516 = vpack.c.b16 %v3400, %v3399
    %v3517 = vpack.c.b16 %v3402, %v3401
    %v3518 = vpack.c.b16 %v3404, %v3403
    %v3519 = vpack.c.b16 %v3406, %v3405
    %v3520 = vpack.c.b16 %v3408, %v3407
    %v3521 = vpack.c.b16 %v3410, %v3409
    %v3522 = vpack.c.b16 %v3412, %v3411
    %v3523 = vpack.c.b16 %v3414, %v3413
    %v3524 = vpack.c.b16 %v3416, %v3415
    %v3525 = vpack.c.b16 %v3418, %v3417
    %v3526 = vpack.c.b16 %v3420, %v3419
    %v3527 = vpack.c.b16 %v3422, %v3421
    %v3528 = vpack.c.b16 %v3424, %v3423
    %v3529 = vpack.c.b16 %v3426, %v3425
    %v3530 = vpack.c.b16 %v3428, %v3427
    %v3531 = vpack.c.b16 %v3430, %v3429
    %v3532 = vpack.c.b16 %v3432, %v3431
    %v3533 = vpack.c.b16 %v3434, %v3433
    %v3534 = vpack.c.b16 %v3436, %v3435
    %v3535 = vpack.c.b16 %v3438, %v3437
    %v3536 = vpack.c.b16 %v3440, %v3439
    %v3537 = vpack.c.b16 %v3442, %v3441
    %v3538 = vpack.c.b16 %v3444, %v3443
    %v3539 = vpack.c.b16 %v3446, %v3445
    %v3540 = vpack.c.b16 %v3448, %v3447
    %v3541 = vpack.c.b16 %v3450, %v3449
    %v3542 = vpack.c.b16 %v3452, %v3451
    %v3543 = vpack.c.b16 %v3454, %v3453
    %v3544 = vpack.c.b16 %v3456, %v3455
    %v3545 = vpack.c.b16 %v3458, %v3457
    %v3546 = vpack.c.b16 %v3460, %v3459
    %v3547 = vpack.c.b16 %v3462, %v3461
    %v3548 = vpack.c.b16 %v3464, %v3463
    %v3549 = vpack.c.b16 %v3466, %v3465
    %v3550 = vpack.c.b16 %v3468, %v3467
    %v3551 = vpack.c.b16 %v3470, %v3469
    %v3552 = vpack.c.b16 %v3472, %v3471
    %v3553 = vpack.c.b16 %v3474, %v3473
    %v3554 = vpack.c.b16 %v3476, %v3475
    %v3555 = vpack.c.b16 %v3478, %v3477
    %v3556 = vpack.c.b16 %v3480, %v3479
    %v3557 = vpack.c.b16 %v3482, %v3481
    %v3558 = vpack.c.b16 %v3484, %v3483
    %v3559 = vpack.c.b16 %v3486, %v3485
    %v3560 = vpack.c.b16 %v3488, %v3487
    %v3561 = vpack.c.b16 %v3490, %v3489
    %v3562 = vpack.c.b16 %v3492, %v3491
    %v3563 = vpack.c.b16 %v3494, %v3493
    %v3564 = vpack.c.b16 %v3496, %v3495
    %v3565 = vpack.c.b16 %v3498, %v3497
    %v3566 = vpack.c.b16 %v3500, %v3499
    %v3567 = vpack.c.b16 %v3502, %v3501
    %v3568 = vpack.c.b16 %v3504, %v3503
    %3633 = vmatprep.subr.bf16.mxu0 0
    %3634 = vmatpush1.bf16.msra.mxu0 %v3505
    %3635 = vmatprep.subr.bf16.mxu0 0
    %3636 = vmatpush1.bf16.msra.mxu0 %v3506
    %3637 = vmatprep.subr.bf16.mxu0 0
    %3638 = vmatpush1.bf16.msra.mxu0 %v3507
    %3639 = vmatprep.subr.bf16.mxu0 0
    %3640 = vmatpush1.bf16.msra.mxu0 %v3508
    %3641 = vmatprep.subr.bf16.mxu0 0
    %3642 = vmatpush1.bf16.msra.mxu0 %v3509
    %3643 = vmatprep.subr.bf16.mxu0 0
    %3644 = vmatpush1.bf16.msra.mxu0 %v3510
    %3645 = vmatprep.subr.bf16.mxu0 0
    %3646 = vmatpush1.bf16.msra.mxu0 %v3511
    %3647 = vmatprep.subr.bf16.mxu0 0
    %3648 = vmatpush1.bf16.msra.mxu0 %v3512
    %3649 = vmatprep.subr.bf16.mxu0 0
    %3650 = vmatpush1.bf16.msra.mxu0 %v3513
    %3651 = vmatprep.subr.bf16.mxu0 0
    %3652 = vmatpush1.bf16.msra.mxu0 %v3514
    %3653 = vmatprep.subr.bf16.mxu0 0
    %3654 = vmatpush1.bf16.msra.mxu0 %v3515
    %3655 = vmatprep.subr.bf16.mxu0 0
    %3656 = vmatpush1.bf16.msra.mxu0 %v3516
    %3657 = vmatprep.subr.bf16.mxu0 0
    %3658 = vmatpush1.bf16.msra.mxu0 %v3517
    %3659 = vmatprep.subr.bf16.mxu0 0
    %3660 = vmatpush1.bf16.msra.mxu0 %v3518
    %3661 = vmatprep.subr.bf16.mxu0 0
    %3662 = vmatpush1.bf16.msra.mxu0 %v3519
    %3663 = vmatprep.subr.bf16.mxu0 0
    %3664 = vmatpush1.bf16.msra.mxu0 %v3520
    %3665 = vmatprep.mubr.bf16.mxu0 %v3114
    %3666 = vmatmul.mubr.bf16.gmra.mrb[0].mxu0 %v3113
    %v3667 = vpop.f32.mrb[0].mxu0
    %v3668 = vadd.f32 0.0, %v3667
    %v3669 = vpop.f32.mrb[0].mxu0
    %v3670 = vpop.f32.mrb[0].mxu0
    %v3671 = vpop.f32.mrb[0].mxu0
    %3672 = vdwg.mxu0
    %3673 = vmatprep.subr.bf16.mxu0 0
    %3674 = vmatpush1.bf16.msra.mxu0 %v3521
    %3675 = vmatprep.subr.bf16.mxu0 0
    %3676 = vmatpush1.bf16.msra.mxu0 %v3522
    %3677 = vmatprep.subr.bf16.mxu0 0
    %3678 = vmatpush1.bf16.msra.mxu0 %v3523
    %3679 = vmatprep.subr.bf16.mxu0 0
    %3680 = vmatpush1.bf16.msra.mxu0 %v3524
    %3681 = vmatprep.subr.bf16.mxu0 0
    %3682 = vmatpush1.bf16.msra.mxu0 %v3525
    %3683 = vmatprep.subr.bf16.mxu0 0
    %3684 = vmatpush1.bf16.msra.mxu0 %v3526
    %3685 = vmatprep.subr.bf16.mxu0 0
    %3686 = vmatpush1.bf16.msra.mxu0 %v3527
    %3687 = vmatprep.subr.bf16.mxu0 0
    %3688 = vmatpush1.bf16.msra.mxu0 %v3528
    %3689 = vmatprep.subr.bf16.mxu0 0
    %3690 = vmatpush1.bf16.msra.mxu0 %v3529
    %3691 = vmatprep.subr.bf16.mxu0 0
    %3692 = vmatpush1.bf16.msra.mxu0 %v3530
    %3693 = vmatprep.subr.bf16.mxu0 0
    %3694 = vmatpush1.bf16.msra.mxu0 %v3531
    %3695 = vmatprep.subr.bf16.mxu0 0
    %3696 = vmatpush1.bf16.msra.mxu0 %v3532
    %3697 = vmatprep.subr.bf16.mxu0 0
    %3698 = vmatpush1.bf16.msra.mxu0 %v3533
    %3699 = vmatprep.subr.bf16.mxu0 0
    %3700 = vmatpush1.bf16.msra.mxu0 %v3534
    %3701 = vmatprep.subr.bf16.mxu0 0
    %3702 = vmatpush1.bf16.msra.mxu0 %v3535
    %3703 = vmatprep.subr.bf16.mxu0 0
    %3704 = vmatpush1.bf16.msra.mxu0 %v3536
    %3705 = vmatprep.mubr.bf16.mxu0 %v3116
    %3706 = vmatmul.mubr.bf16.gmra.mrb[0].mxu0 %v3115
    %v3707 = vpop.f32.mrb[0].mxu0
    %v3708 = vadd.f32 %v3668, %v3707
    %v3709 = vpop.f32.mrb[0].mxu0
    %v3710 = vpop.f32.mrb[0].mxu0
    %v3711 = vpop.f32.mrb[0].mxu0
    %3712 = vdwg.mxu0
    %3713 = vmatprep.subr.bf16.mxu0 0
    %3714 = vmatpush1.bf16.msra.mxu0 %v3537
    %3715 = vmatprep.subr.bf16.mxu0 0
    %3716 = vmatpush1.bf16.msra.mxu0 %v3538
    %3717 = vmatprep.subr.bf16.mxu0 0
    %3718 = vmatpush1.bf16.msra.mxu0 %v3539
    %3719 = vmatprep.subr.bf16.mxu0 0
    %3720 = vmatpush1.bf16.msra.mxu0 %v3540
    %3721 = vmatprep.subr.bf16.mxu0 0
    %3722 = vmatpush1.bf16.msra.mxu0 %v3541
    %3723 = vmatprep.subr.bf16.mxu0 0
    %3724 = vmatpush1.bf16.msra.mxu0 %v3542
    %3725 = vmatprep.subr.bf16.mxu0 0
    %3726 = vmatpush1.bf16.msra.mxu0 %v3543
    %3727 = vmatprep.subr.bf16.mxu0 0
    %3728 = vmatpush1.bf16.msra.mxu0 %v3544
    %3729 = vmatprep.subr.bf16.mxu0 0
    %3730 = vmatpush1.bf16.msra.mxu0 %v3545
    %3731 = vmatprep.subr.bf16.mxu0 0
    %3732 = vmatpush1.bf16.msra.mxu0 %v3546
    %3733 = vmatprep.subr.bf16.mxu0 0
    %3734 = vmatpush1.bf16.msra.mxu0 %v3547
    %3735 = vmatprep.subr.bf16.mxu0 0
    %3736 = vmatpush1.bf16.msra.mxu0 %v3548
    %3737 = vmatprep.subr.bf16.mxu0 0
    %3738 = vmatpush1.bf16.msra.mxu0 %v3549
    %3739 = vmatprep.subr.bf16.mxu0 0
    %3740 = vmatpush1.bf16.msra.mxu0 %v3550
    %3741 = vmatprep.subr.bf16.mxu0 0
    %3742 = vmatpush1.bf16.msra.mxu0 %v3551
    %3743 = vmatprep.subr.bf16.mxu0 0
    %3744 = vmatpush1.bf16.msra.mxu0 %v3552
    %3745 = vmatprep.mubr.bf16.mxu0 %v3118
    %3746 = vmatmul.mubr.bf16.gmra.mrb[0].mxu0 %v3117
    %v3747 = vpop.f32.mrb[0].mxu0
    %v3748 = vadd.f32 %v3708, %v3747
    %v3749 = vpop.f32.mrb[0].mxu0
    %v3750 = vpop.f32.mrb[0].mxu0
    %v3751 = vpop.f32.mrb[0].mxu0
    %3752 = vdwg.mxu0
    %3753 = vmatprep.subr.bf16.mxu0 0
    %3754 = vmatpush1.bf16.msra.mxu0 %v3553
    %3755 = vmatprep.subr.bf16.mxu0 0
    %3756 = vmatpush1.bf16.msra.mxu0 %v3554
    %3757 = vmatprep.subr.bf16.mxu0 0
    %3758 = vmatpush1.bf16.msra.mxu0 %v3555
    %3759 = vmatprep.subr.bf16.mxu0 0
    %3760 = vmatpush1.bf16.msra.mxu0 %v3556
    %3761 = vmatprep.subr.bf16.mxu0 0
    %3762 = vmatpush1.bf16.msra.mxu0 %v3557
    %3763 = vmatprep.subr.bf16.mxu0 0
    %3764 = vmatpush1.bf16.msra.mxu0 %v3558
    %3765 = vmatprep.subr.bf16.mxu0 0
    %3766 = vmatpush1.bf16.msra.mxu0 %v3559
    %3767 = vmatprep.subr.bf16.mxu0 0
    %3768 = vmatpush1.bf16.msra.mxu0 %v3560
    %3769 = vmatprep.subr.bf16.mxu0 0
    %3770 = vmatpush1.bf16.msra.mxu0 %v3561
    %3771 = vmatprep.subr.bf16.mxu0 0
    %3772 = vmatpush1.bf16.msra.mxu0 %v3562
    %3773 = vmatprep.subr.bf16.mxu0 0
    %3774 = vmatpush1.bf16.msra.mxu0 %v3563
    %3775 = vmatprep.subr.bf16.mxu0 0
    %3776 = vmatpush1.bf16.msra.mxu0 %v3564
    %3777 = vmatprep.subr.bf16.mxu0 0
    %3778 = vmatpush1.bf16.msra.mxu0 %v3565
    %3779 = vmatprep.subr.bf16.mxu0 0
    %3780 = vmatpush1.bf16.msra.mxu0 %v3566
    %3781 = vmatprep.subr.bf16.mxu0 0
    %3782 = vmatpush1.bf16.msra.mxu0 %v3567
    %3783 = vmatprep.subr.bf16.mxu0 0
    %3784 = vmatpush1.bf16.msra.mxu0 %v3568
    %3785 = vmatprep.mubr.bf16.mxu0 %v3120
    %3786 = vmatmul.mubr.bf16.gmra.mrb[0].mxu0 %v3119
    %v3787 = vpop.f32.mrb[0].mxu0
    %v3788 = vadd.f32 %v3748, %v3787
    %v3789 = vpop.f32.mrb[0].mxu0
    %v3790 = vpop.f32.mrb[0].mxu0
    %v3791 = vpop.f32.mrb[0].mxu0
    %3792 = vdwg.mxu0
    %v3793 = vadd.f32 %v3058, %v3788
    %v3794 = vsel %vm325, %v3793, 0.0
    %3795 = vadd.xlane.f32.xlu0 %v3794
    %v3796 = vpop.xlane.xlu0 %3795
    %v3797 = vmul.f32 %v3796, 0.015625
    %v3798 = vlaneseq
    %v3799 = vand.u32 %v3798, 127
    %vm3800 = vcmp.lt.s32.totalorder %v3799, 64
    %v3801 = vsub.f32 %v3793, %v3797
    %v3802 = vsel %vm3800, %v3801, 0.0
    %v3803 = vmul.f32 %v3802, %v3802
    %v3804 = vsel %vm325, %v3803, 0.0
    %3805 = vadd.xlane.f32.xlu0 %v3804
    %v3806 = vpop.xlane.xlu0 %3805
    %v3807 = vmul.f32 %v3806, 0.015625
    %v3808 = vadd.f32 %v3807, 1e-05
    %v3809 = vrsqrt.pop %v3808
    %v3810 = vmul.f32 %v3801, %v3809
    %v3811 = vld [vmem:[#allocation7] sm:$0x1]
    %v3812 = vlaneseq
    %v3813 = vshrl.u32 %v3812, 7
    %v3814 = vsub.s32 0, %v3813
    %v3815 = vrot.slane %v3811, %v3814
    %v3816 = vmul.f32 %v3810, %v3815
    %v3817 = vld [vmem:[#allocation7 + $0x1] sm:$0x1]
    %v3818 = vlaneseq
    %v3819 = vshrl.u32 %v3818, 7
    %v3820 = vsub.s32 0, %v3819
    %v3821 = vrot.slane %v3817, %v3820
    %v3822 = vadd.f32 %v3816, %v3821
    %v3823 = vxor.u32 %v3822, 2147483648
    %v3824 = vmul.f32 %v3823, 1.442695
    %v3825 = vpow.pop %v3824
    %v3826 = vadd.f32 %v3825, 1.0
    %v3827 = vrcp.pop %v3826
    %v3828 = vmul.f32 1.0, %v3827
    %v3829 = vmul.f32 %v3822, %v3828
    %v3830 = vxor.u32 %v3829, 2147483648
    %v3831 = vmul.f32 %v3830, 1.442695
    %v3832 = vpow.pop %v3831
    %v3833 = vadd.f32 %v3832, 1.0
    %v3834 = vrcp.pop %v3833
    %v3835 = vmul.f32 1.0, %v3834
    %v3836 = vmul.f32 %v3829, %v3835
    %v3837 = vpack.c.bf16 %v3836, %v3836
    %v3838 = vld [vmem:[#allocation8] sm:$0xf]
    %v3839 = vld [vmem:[#allocation8 + $0x4] sm:$0xf]
    %v3840 = vld [vmem:[#allocation8 + $0x8] sm:$0xf]
    %v3841 = vld [vmem:[#allocation8 + $0xc] sm:$0xf]
    %v3842 = vld [vmem:[#allocation8 + $0x10] sm:$0xf]
    %v3843 = vld [vmem:[#allocation8 + $0x14] sm:$0xf]
    %v3844 = vld [vmem:[#allocation8 + $0x18] sm:$0xf]
    %v3845 = vld [vmem:[#allocation8 + $0x1c] sm:$0xf]
    %v3846 = vld [vmem:[#allocation8 + $0x20] sm:$0xf]
    %v3847 = vld [vmem:[#allocation8 + $0x24] sm:$0xf]
    %v3848 = vld [vmem:[#allocation8 + $0x28] sm:$0xf]
    %v3849 = vld [vmem:[#allocation8 + $0x2c] sm:$0xf]
    %v3850 = vld [vmem:[#allocation8 + $0x30] sm:$0xf]
    %v3851 = vld [vmem:[#allocation8 + $0x34] sm:$0xf]
    %v3852 = vld [vmem:[#allocation8 + $0x38] sm:$0xf]
    %v3853 = vld [vmem:[#allocation8 + $0x3c] sm:$0xf]
    %v3854 = vsel %vm3800, %v3829, inf
    %v3855 = vsel %vm325, %v3854, inf
    %3856 = vmin.xlane.f32.xlu0 %v3855
    %v3857 = vpop.xlane.xlu0 %3856
    %v3858 = vrot.slane %v3857, 4
    %v3859 = vmin.f32 %v3857, %v3858
    %v3860 = vrot.slane %v3859, 2
    %v3861 = vmin.f32 %v3859, %v3860
    %v3862 = vrot.slane %v3861, 1
    %v3863 = vmin.f32 %v3861, %v3862
    %s3864 = vtos %v3863
    %v3865 = vstv %s3864
    %v3866 = vsel %vm3800, %v3829, -inf
    %v3867 = vsel %vm325, %v3866, -inf
    %3868 = vmax.xlane.f32.xlu0 %v3867
    %v3869 = vpop.xlane.xlu0 %3868
    %v3870 = vrot.slane %v3869, 4
    %v3871 = vmax.f32 %v3869, %v3870
    %v3872 = vrot.slane %v3871, 2
    %v3873 = vmax.f32 %v3871, %v3872
    %v3874 = vrot.slane %v3873, 1
    %v3875 = vmax.f32 %v3873, %v3874
    %s3876 = vtos %v3875
    %v3877 = vstv %s3876
    %v3878 = vsub.f32 %v3877, %v3865
    %v3879 = vrcp.pop %v3878
    %v3880 = vsub.f32 %v3829, %v3865
    %v3881 = vmul.f32 %v3879, 2.0
    %v3882 = vmul.f32 %v3880, %v3881
    %v3883 = vsub.f32 %v3882, 1.0
    %v3884 = vld [vmem:[#allocation8 + $0x40] sm:$0xf]
    %v3885 = vld [vmem:[#allocation8 + $0x44] sm:$0xf]
    %v3886 = vld [vmem:[#allocation8 + $0x48] sm:$0xf]
    %v3887 = vld [vmem:[#allocation8 + $0x4c] sm:$0xf]
    %v3888 = vld [vmem:[#allocation8 + $0x50] sm:$0xf]
    %v3889 = vld [vmem:[#allocation8 + $0x54] sm:$0xf]
    %v3890 = vld [vmem:[#allocation8 + $0x58] sm:$0xf]
    %v3891 = vld [vmem:[#allocation8 + $0x5c] sm:$0xf]
    %v3892 = vld [vmem:[#allocation8 + $0x60] sm:$0xf]
    %v3893 = vld [vmem:[#allocation8 + $0x64] sm:$0xf]
    %v3894 = vld [vmem:[#allocation8 + $0x68] sm:$0xf]
    %v3895 = vld [vmem:[#allocation8 + $0x6c] sm:$0xf]
    %v3896 = vld [vmem:[#allocation8 + $0x70] sm:$0xf]
    %v3897 = vld [vmem:[#allocation8 + $0x74] sm:$0xf]
    %v3898 = vld [vmem:[#allocation8 + $0x78] sm:$0xf]
    %v3899 = vld [vmem:[#allocation8 + $0x7c] sm:$0xf]
    %v3916 = vunpack.c.l.b16 %v3884
    %v3917 = vunpack.c.l.b16 %v3885
    %v3918 = vunpack.c.l.b16 %v3886
    %v3919 = vunpack.c.l.b16 %v3887
    %v3920 = vunpack.c.l.b16 %v3888
    %v3921 = vunpack.c.l.b16 %v3889
    %v3922 = vunpack.c.l.b16 %v3890
    %v3923 = vunpack.c.l.b16 %v3891
    %v3924 = vunpack.c.l.b16 %v3892
    %v3925 = vunpack.c.l.b16 %v3893
    %v3926 = vunpack.c.l.b16 %v3894
    %v3927 = vunpack.c.l.b16 %v3895
    %v3928 = vunpack.c.l.b16 %v3896
    %v3929 = vunpack.c.l.b16 %v3897
    %v3930 = vunpack.c.l.b16 %v3898
    %v3931 = vunpack.c.l.b16 %v3899
    %v3932 = vpack.c.b16 %v3917, %v3916
    %v3933 = vpack.c.b16 %v3919, %v3918
    %v3934 = vpack.c.b16 %v3921, %v3920
    %v3935 = vpack.c.b16 %v3923, %v3922
    %v3936 = vpack.c.b16 %v3925, %v3924
    %v3937 = vpack.c.b16 %v3927, %v3926
    %v3938 = vpack.c.b16 %v3929, %v3928
    %v3939 = vpack.c.b16 %v3931, %v3930
    %3948 = vmatprep.subr.bf16.mxu0 0
    %3949 = vmatpush1.bf16.msra.mxu0 %v3932
    %3950 = vmatprep.subr.bf16.mxu0 0
    %3951 = vmatpush1.bf16.msra.mxu0 %v3933
    %3952 = vmatprep.subr.bf16.mxu0 0
    %3953 = vmatpush1.bf16.msra.mxu0 %v3934
    %3954 = vmatprep.subr.bf16.mxu0 0
    %3955 = vmatpush1.bf16.msra.mxu0 %v3935
    %3956 = vmatprep.subr.bf16.mxu0 0
    %3957 = vmatpush1.bf16.msra.mxu0 %v3936
    %3958 = vmatprep.subr.bf16.mxu0 0
    %3959 = vmatpush1.bf16.msra.mxu0 %v3937
    %3960 = vmatprep.subr.bf16.mxu0 0
    %3961 = vmatpush1.bf16.msra.mxu0 %v3938
    %3962 = vmatprep.subr.bf16.mxu0 0
    %3963 = vmatpush1.bf16.msra.mxu0 %v3939
    %3964 = vmatprep.subr.bf16.mxu0 0
    %3965 = vmatpush1.bf16.msra.mxu0 0
    %3966 = vmatprep.subr.bf16.mxu0 0
    %3967 = vmatpush1.bf16.msra.mxu0 0
    %3968 = vmatprep.subr.bf16.mxu0 0
    %3969 = vmatpush1.bf16.msra.mxu0 0
    %3970 = vmatprep.subr.bf16.mxu0 0
    %3971 = vmatpush1.bf16.msra.mxu0 0
    %3972 = vmatprep.subr.bf16.mxu0 0
    %3973 = vmatpush1.bf16.msra.mxu0 0
    %3974 = vmatprep.subr.bf16.mxu0 0
    %3975 = vmatpush1.bf16.msra.mxu0 0
    %3976 = vmatprep.subr.bf16.mxu0 0
    %3977 = vmatpush1.bf16.msra.mxu0 0
    %3978 = vmatprep.subr.bf16.mxu0 0
    %3979 = vmatpush1.bf16.msra.mxu0 0
    %3980 = vmatprep.mubr.bf16.mxu0 0
    %3981 = vmatmul.mubr.bf16.gmra.mrb[0].mxu0 1065369472
    %v3982 = vpop.f32.mrb[0].mxu0
    %v3983 = vadd.f32 0.0, %v3982
    %v3984 = vpop.f32.mrb[0].mxu0
    %v3985 = vpop.f32.mrb[0].mxu0
    %v3986 = vpop.f32.mrb[0].mxu0
    %3987 = vdwg.mxu0
    %v4004 = vunpack.c.l.b16 %v3838
    %v4005 = vunpack.c.l.b16 %v3839
    %v4006 = vunpack.c.l.b16 %v3840
    %v4007 = vunpack.c.l.b16 %v3841
    %v4008 = vunpack.c.l.b16 %v3842
    %v4009 = vunpack.c.l.b16 %v3843
    %v4010 = vunpack.c.l.b16 %v3844
    %v4011 = vunpack.c.l.b16 %v3845
    %v4012 = vunpack.c.l.b16 %v3846
    %v4013 = vunpack.c.l.b16 %v3847
    %v4014 = vunpack.c.l.b16 %v3848
    %v4015 = vunpack.c.l.b16 %v3849
    %v4016 = vunpack.c.l.b16 %v3850
    %v4017 = vunpack.c.l.b16 %v3851
    %v4018 = vunpack.c.l.b16 %v3852
    %v4019 = vunpack.c.l.b16 %v3853
    %v4020 = vpack.c.b16 %v4005, %v4004
    %v4021 = vpack.c.b16 %v4007, %v4006
    %v4022 = vpack.c.b16 %v4009, %v4008
    %v4023 = vpack.c.b16 %v4011, %v4010
    %v4024 = vpack.c.b16 %v4013, %v4012
    %v4025 = vpack.c.b16 %v4015, %v4014
    %v4026 = vpack.c.b16 %v4017, %v4016
    %v4027 = vpack.c.b16 %v4019, %v4018
    %4036 = vmatprep.subr.bf16.mxu0 0
    %4037 = vmatpush1.bf16.msra.mxu0 %v4020
    %4038 = vmatprep.subr.bf16.mxu0 0
    %4039 = vmatpush1.bf16.msra.mxu0 %v4021
    %4040 = vmatprep.subr.bf16.mxu0 0
    %4041 = vmatpush1.bf16.msra.mxu0 %v4022
    %4042 = vmatprep.subr.bf16.mxu0 0
    %4043 = vmatpush1.bf16.msra.mxu0 %v4023
    %4044 = vmatprep.subr.bf16.mxu0 0
    %4045 = vmatpush1.bf16.msra.mxu0 %v4024
    %4046 = vmatprep.subr.bf16.mxu0 0
    %4047 = vmatpush1.bf16.msra.mxu0 %v4025
    %4048 = vmatprep.subr.bf16.mxu0 0
    %4049 = vmatpush1.bf16.msra.mxu0 %v4026
    %4050 = vmatprep.subr.bf16.mxu0 0
    %4051 = vmatpush1.bf16.msra.mxu0 %v4027
    %4052 = vmatprep.subr.bf16.mxu0 0
    %4053 = vmatpush1.bf16.msra.mxu0 0
    %4054 = vmatprep.subr.bf16.mxu0 0
    %4055 = vmatpush1.bf16.msra.mxu0 0
    %4056 = vmatprep.subr.bf16.mxu0 0
    %4057 = vmatpush1.bf16.msra.mxu0 0
    %4058 = vmatprep.subr.bf16.mxu0 0
    %4059 = vmatpush1.bf16.msra.mxu0 0
    %4060 = vmatprep.subr.bf16.mxu0 0
    %4061 = vmatpush1.bf16.msra.mxu0 0
    %4062 = vmatprep.subr.bf16.mxu0 0
    %4063 = vmatpush1.bf16.msra.mxu0 0
    %4064 = vmatprep.subr.bf16.mxu0 0
    %4065 = vmatpush1.bf16.msra.mxu0 0
    %4066 = vmatprep.subr.bf16.mxu0 0
    %4067 = vmatpush1.bf16.msra.mxu0 0
    %4068 = vmatprep.mubr.bf16.mxu0 0
    %4069 = vmatmul.mubr.bf16.gmra.mrb[0].mxu0 %v3837
    %v4070 = vpop.f32.mrb[0].mxu0
    %v4071 = vadd.f32 %v3983, %v4070
    %v4072 = vpop.f32.mrb[0].mxu0
    %v4073 = vpop.f32.mrb[0].mxu0
    %v4074 = vpop.f32.mrb[0].mxu0
    %4075 = vdwg.mxu0
    %v4076 = vpack.c.bf16 %v3883, %v3883
    %v4077 = vld [vmem:[#allocation8 + $0x80] sm:$0xf]
    %v4078 = vld [vmem:[#allocation8 + $0x84] sm:$0xf]
    %v4079 = vld [vmem:[#allocation8 + $0x88] sm:$0xf]
    %v4080 = vld [vmem:[#allocation8 + $0x8c] sm:$0xf]
    %v4081 = vld [vmem:[#allocation8 + $0x90] sm:$0xf]
    %v4082 = vld [vmem:[#allocation8 + $0x94] sm:$0xf]
    %v4083 = vld [vmem:[#allocation8 + $0x98] sm:$0xf]
    %v4084 = vld [vmem:[#allocation8 + $0x9c] sm:$0xf]
    %v4085 = vld [vmem:[#allocation8 + $0xa0] sm:$0xf]
    %v4086 = vld [vmem:[#allocation8 + $0xa4] sm:$0xf]
    %v4087 = vld [vmem:[#allocation8 + $0xa8] sm:$0xf]
    %v4088 = vld [vmem:[#allocation8 + $0xac] sm:$0xf]
    %v4089 = vld [vmem:[#allocation8 + $0xb0] sm:$0xf]
    %v4090 = vld [vmem:[#allocation8 + $0xb4] sm:$0xf]
    %v4091 = vld [vmem:[#allocation8 + $0xb8] sm:$0xf]
    %v4092 = vld [vmem:[#allocation8 + $0xbc] sm:$0xf]
    %v4109 = vunpack.c.l.b16 %v4077
    %v4110 = vunpack.c.l.b16 %v4078
    %v4111 = vunpack.c.l.b16 %v4079
    %v4112 = vunpack.c.l.b16 %v4080
    %v4113 = vunpack.c.l.b16 %v4081
    %v4114 = vunpack.c.l.b16 %v4082
    %v4115 = vunpack.c.l.b16 %v4083
    %v4116 = vunpack.c.l.b16 %v4084
    %v4117 = vunpack.c.l.b16 %v4085
    %v4118 = vunpack.c.l.b16 %v4086
    %v4119 = vunpack.c.l.b16 %v4087
    %v4120 = vunpack.c.l.b16 %v4088
    %v4121 = vunpack.c.l.b16 %v4089
    %v4122 = vunpack.c.l.b16 %v4090
    %v4123 = vunpack.c.l.b16 %v4091
    %v4124 = vunpack.c.l.b16 %v4092
    %v4125 = vpack.c.b16 %v4110, %v4109
    %v4126 = vpack.c.b16 %v4112, %v4111
    %v4127 = vpack.c.b16 %v4114, %v4113
    %v4128 = vpack.c.b16 %v4116, %v4115
    %v4129 = vpack.c.b16 %v4118, %v4117
    %v4130 = vpack.c.b16 %v4120, %v4119
    %v4131 = vpack.c.b16 %v4122, %v4121
    %v4132 = vpack.c.b16 %v4124, %v4123
    %4141 = vmatprep.subr.bf16.mxu0 0
    %4142 = vmatpush1.bf16.msra.mxu0 %v4125
    %4143 = vmatprep.subr.bf16.mxu0 0
    %4144 = vmatpush1.bf16.msra.mxu0 %v4126
    %4145 = vmatprep.subr.bf16.mxu0 0
    %4146 = vmatpush1.bf16.msra.mxu0 %v4127
    %4147 = vmatprep.subr.bf16.mxu0 0
    %4148 = vmatpush1.bf16.msra.mxu0 %v4128
    %4149 = vmatprep.subr.bf16.mxu0 0
    %4150 = vmatpush1.bf16.msra.mxu0 %v4129
    %4151 = vmatprep.subr.bf16.mxu0 0
    %4152 = vmatpush1.bf16.msra.mxu0 %v4130
    %4153 = vmatprep.subr.bf16.mxu0 0
    %4154 = vmatpush1.bf16.msra.mxu0 %v4131
    %4155 = vmatprep.subr.bf16.mxu0 0
    %4156 = vmatpush1.bf16.msra.mxu0 %v4132
    %4157 = vmatprep.subr.bf16.mxu0 0
    %4158 = vmatpush1.bf16.msra.mxu0 0
    %4159 = vmatprep.subr.bf16.mxu0 0
    %4160 = vmatpush1.bf16.msra.mxu0 0
    %4161 = vmatprep.subr.bf16.mxu0 0
    %4162 = vmatpush1.bf16.msra.mxu0 0
    %4163 = vmatprep.subr.bf16.mxu0 0
    %4164 = vmatpush1.bf16.msra.mxu0 0
    %4165 = vmatprep.subr.bf16.mxu0 0
    %4166 = vmatpush1.bf16.msra.mxu0 0
    %4167 = vmatprep.subr.bf16.mxu0 0
    %4168 = vmatpush1.bf16.msra.mxu0 0
    %4169 = vmatprep.subr.bf16.mxu0 0
    %4170 = vmatpush1.bf16.msra.mxu0 0
    %4171 = vmatprep.subr.bf16.mxu0 0
    %4172 = vmatpush1.bf16.msra.mxu0 0
    %4173 = vmatprep.mubr.bf16.mxu0 0
    %4174 = vmatmul.mubr.bf16.gmra.mrb[0].mxu0 %v4076
    %v4175 = vpop.f32.mrb[0].mxu0
    %v4176 = vadd.f32 0.0, %v4175
    %v4177 = vpop.f32.mrb[0].mxu0
    %v4178 = vpop.f32.mrb[0].mxu0
    %v4179 = vpop.f32.mrb[0].mxu0
    %4180 = vdwg.mxu0
    %v4181 = vadd.f32 %v4071, %v4176
    %v4182 = vmul.f32 %v3883, 3.0
    %v4183 = vmul.f32 %v4182, %v3883
    %v4184 = vsub.f32 %v4183, 1.0
    %v4185 = vmul.f32 %v4184, 0.5
    %v4186 = vpack.c.bf16 %v4185, %v4185
    %v4187 = vld [vmem:[#allocation8 + $0xc0] sm:$0xf]
    %v4188 = vld [vmem:[#allocation8 + $0xc4] sm:$0xf]
    %v4189 = vld [vmem:[#allocation8 + $0xc8] sm:$0xf]
    %v4190 = vld [vmem:[#allocation8 + $0xcc] sm:$0xf]
    %v4191 = vld [vmem:[#allocation8 + $0xd0] sm:$0xf]
    %v4192 = vld [vmem:[#allocation8 + $0xd4] sm:$0xf]
    %v4193 = vld [vmem:[#allocation8 + $0xd8] sm:$0xf]
    %v4194 = vld [vmem:[#allocation8 + $0xdc] sm:$0xf]
    %v4195 = vld [vmem:[#allocation8 + $0xe0] sm:$0xf]
    %v4196 = vld [vmem:[#allocation8 + $0xe4] sm:$0xf]
    %v4197 = vld [vmem:[#allocation8 + $0xe8] sm:$0xf]
    %v4198 = vld [vmem:[#allocation8 + $0xec] sm:$0xf]
    %v4199 = vld [vmem:[#allocation8 + $0xf0] sm:$0xf]
    %v4200 = vld [vmem:[#allocation8 + $0xf4] sm:$0xf]
    %v4201 = vld [vmem:[#allocation8 + $0xf8] sm:$0xf]
    %v4202 = vld [vmem:[#allocation8 + $0xfc] sm:$0xf]
    %v4219 = vunpack.c.l.b16 %v4187
    %v4220 = vunpack.c.l.b16 %v4188
    %v4221 = vunpack.c.l.b16 %v4189
    %v4222 = vunpack.c.l.b16 %v4190
    %v4223 = vunpack.c.l.b16 %v4191
    %v4224 = vunpack.c.l.b16 %v4192
    %v4225 = vunpack.c.l.b16 %v4193
    %v4226 = vunpack.c.l.b16 %v4194
    %v4227 = vunpack.c.l.b16 %v4195
    %v4228 = vunpack.c.l.b16 %v4196
    %v4229 = vunpack.c.l.b16 %v4197
    %v4230 = vunpack.c.l.b16 %v4198
    %v4231 = vunpack.c.l.b16 %v4199
    %v4232 = vunpack.c.l.b16 %v4200
    %v4233 = vunpack.c.l.b16 %v4201
    %v4234 = vunpack.c.l.b16 %v4202
    %v4235 = vpack.c.b16 %v4220, %v4219
    %v4236 = vpack.c.b16 %v4222, %v4221
    %v4237 = vpack.c.b16 %v4224, %v4223
    %v4238 = vpack.c.b16 %v4226, %v4225
    %v4239 = vpack.c.b16 %v4228, %v4227
    %v4240 = vpack.c.b16 %v4230, %v4229
    %v4241 = vpack.c.b16 %v4232, %v4231
    %v4242 = vpack.c.b16 %v4234, %v4233
    %4251 = vmatprep.subr.bf16.mxu0 0
    %4252 = vmatpush1.bf16.msra.mxu0 %v4235
    %4253 = vmatprep.subr.bf16.mxu0 0
    %4254 = vmatpush1.bf16.msra.mxu0 %v4236
    %4255 = vmatprep.subr.bf16.mxu0 0
    %4256 = vmatpush1.bf16.msra.mxu0 %v4237
    %4257 = vmatprep.subr.bf16.mxu0 0
    %4258 = vmatpush1.bf16.msra.mxu0 %v4238
    %4259 = vmatprep.subr.bf16.mxu0 0
    %4260 = vmatpush1.bf16.msra.mxu0 %v4239
    %4261 = vmatprep.subr.bf16.mxu0 0
    %4262 = vmatpush1.bf16.msra.mxu0 %v4240
    %4263 = vmatprep.subr.bf16.mxu0 0
    %4264 = vmatpush1.bf16.msra.mxu0 %v4241
    %4265 = vmatprep.subr.bf16.mxu0 0
    %4266 = vmatpush1.bf16.msra.mxu0 %v4242
    %4267 = vmatprep.subr.bf16.mxu0 0
    %4268 = vmatpush1.bf16.msra.mxu0 0
    %4269 = vmatprep.subr.bf16.mxu0 0
    %4270 = vmatpush1.bf16.msra.mxu0 0
    %4271 = vmatprep.subr.bf16.mxu0 0
    %4272 = vmatpush1.bf16.msra.mxu0 0
    %4273 = vmatprep.subr.bf16.mxu0 0
    %4274 = vmatpush1.bf16.msra.mxu0 0
    %4275 = vmatprep.subr.bf16.mxu0 0
    %4276 = vmatpush1.bf16.msra.mxu0 0
    %4277 = vmatprep.subr.bf16.mxu0 0
    %4278 = vmatpush1.bf16.msra.mxu0 0
    %4279 = vmatprep.subr.bf16.mxu0 0
    %4280 = vmatpush1.bf16.msra.mxu0 0
    %4281 = vmatprep.subr.bf16.mxu0 0
    %4282 = vmatpush1.bf16.msra.mxu0 0
    %4283 = vmatprep.mubr.bf16.mxu0 0
    %4284 = vmatmul.mubr.bf16.gmra.mrb[0].mxu0 %v4186
    %v4285 = vpop.f32.mrb[0].mxu0
    %v4286 = vadd.f32 0.0, %v4285
    %v4287 = vpop.f32.mrb[0].mxu0
    %v4288 = vpop.f32.mrb[0].mxu0
    %v4289 = vpop.f32.mrb[0].mxu0
    %4290 = vdwg.mxu0
    %v4291 = vadd.f32 %v4181, %v4286
    %v4292 = vmul.f32 %v3883, 5.0
    %v4293 = vmul.f32 %v4292, %v4185
    %v4294 = vmul.f32 %v3883, 2.0
    %v4295 = vsub.f32 %v4293, %v4294
    %v4296 = vmul.f32 %v4295, 0.33333334
    %v4297 = vpack.c.bf16 %v4296, %v4296
    %v4298 = vld [vmem:[#allocation8 + $0x100] sm:$0xf]
    %v4299 = vld [vmem:[#allocation8 + $0x104] sm:$0xf]
    %v4300 = vld [vmem:[#allocation8 + $0x108] sm:$0xf]
    %v4301 = vld [vmem:[#allocation8 + $0x10c] sm:$0xf]
    %v4302 = vld [vmem:[#allocation8 + $0x110] sm:$0xf]
    %v4303 = vld [vmem:[#allocation8 + $0x114] sm:$0xf]
    %v4304 = vld [vmem:[#allocation8 + $0x118] sm:$0xf]
    %v4305 = vld [vmem:[#allocation8 + $0x11c] sm:$0xf]
    %v4306 = vld [vmem:[#allocation8 + $0x120] sm:$0xf]
    %v4307 = vld [vmem:[#allocation8 + $0x124] sm:$0xf]
    %v4308 = vld [vmem:[#allocation8 + $0x128] sm:$0xf]
    %v4309 = vld [vmem:[#allocation8 + $0x12c] sm:$0xf]
    %v4310 = vld [vmem:[#allocation8 + $0x130] sm:$0xf]
    %v4311 = vld [vmem:[#allocation8 + $0x134] sm:$0xf]
    %v4312 = vld [vmem:[#allocation8 + $0x138] sm:$0xf]
    %v4313 = vld [vmem:[#allocation8 + $0x13c] sm:$0xf]
    %v4330 = vunpack.c.l.b16 %v4298
    %v4331 = vunpack.c.l.b16 %v4299
    %v4332 = vunpack.c.l.b16 %v4300
    %v4333 = vunpack.c.l.b16 %v4301
    %v4334 = vunpack.c.l.b16 %v4302
    %v4335 = vunpack.c.l.b16 %v4303
    %v4336 = vunpack.c.l.b16 %v4304
    %v4337 = vunpack.c.l.b16 %v4305
    %v4338 = vunpack.c.l.b16 %v4306
    %v4339 = vunpack.c.l.b16 %v4307
    %v4340 = vunpack.c.l.b16 %v4308
    %v4341 = vunpack.c.l.b16 %v4309
    %v4342 = vunpack.c.l.b16 %v4310
    %v4343 = vunpack.c.l.b16 %v4311
    %v4344 = vunpack.c.l.b16 %v4312
    %v4345 = vunpack.c.l.b16 %v4313
    %v4346 = vpack.c.b16 %v4331, %v4330
    %v4347 = vpack.c.b16 %v4333, %v4332
    %v4348 = vpack.c.b16 %v4335, %v4334
    %v4349 = vpack.c.b16 %v4337, %v4336
    %v4350 = vpack.c.b16 %v4339, %v4338
    %v4351 = vpack.c.b16 %v4341, %v4340
    %v4352 = vpack.c.b16 %v4343, %v4342
    %v4353 = vpack.c.b16 %v4345, %v4344
    %4362 = vmatprep.subr.bf16.mxu0 0
    %4363 = vmatpush1.bf16.msra.mxu0 %v4346
    %4364 = vmatprep.subr.bf16.mxu0 0
    %4365 = vmatpush1.bf16.msra.mxu0 %v4347
    %4366 = vmatprep.subr.bf16.mxu0 0
    %4367 = vmatpush1.bf16.msra.mxu0 %v4348
    %4368 = vmatprep.subr.bf16.mxu0 0
    %4369 = vmatpush1.bf16.msra.mxu0 %v4349
    %4370 = vmatprep.subr.bf16.mxu0 0
    %4371 = vmatpush1.bf16.msra.mxu0 %v4350
    %4372 = vmatprep.subr.bf16.mxu0 0
    %4373 = vmatpush1.bf16.msra.mxu0 %v4351
    %4374 = vmatprep.subr.bf16.mxu0 0
    %4375 = vmatpush1.bf16.msra.mxu0 %v4352
    %4376 = vmatprep.subr.bf16.mxu0 0
    %4377 = vmatpush1.bf16.msra.mxu0 %v4353
    %4378 = vmatprep.subr.bf16.mxu0 0
    %4379 = vmatpush1.bf16.msra.mxu0 0
    %4380 = vmatprep.subr.bf16.mxu0 0
    %4381 = vmatpush1.bf16.msra.mxu0 0
    %4382 = vmatprep.subr.bf16.mxu0 0
    %4383 = vmatpush1.bf16.msra.mxu0 0
    %4384 = vmatprep.subr.bf16.mxu0 0
    %4385 = vmatpush1.bf16.msra.mxu0 0
    %4386 = vmatprep.subr.bf16.mxu0 0
    %4387 = vmatpush1.bf16.msra.mxu0 0
    %4388 = vmatprep.subr.bf16.mxu0 0
    %4389 = vmatpush1.bf16.msra.mxu0 0
    %4390 = vmatprep.subr.bf16.mxu0 0
    %4391 = vmatpush1.bf16.msra.mxu0 0
    %4392 = vmatprep.subr.bf16.mxu0 0
    %4393 = vmatpush1.bf16.msra.mxu0 0
    %4394 = vmatprep.mubr.bf16.mxu0 0
    %4395 = vmatmul.mubr.bf16.gmra.mrb[0].mxu0 %v4297
    %v4396 = vpop.f32.mrb[0].mxu0
    %v4397 = vadd.f32 0.0, %v4396
    %v4398 = vpop.f32.mrb[0].mxu0
    %v4399 = vpop.f32.mrb[0].mxu0
    %v4400 = vpop.f32.mrb[0].mxu0
    %4401 = vdwg.mxu0
    %v4402 = vadd.f32 %v4291, %v4397
    %v4403 = vsel %vm325, %v4402, 0.0
    %4404 = vadd.xlane.f32.xlu0 %v4403
    %v4405 = vpop.xlane.xlu0 %4404
    %v4406 = vmul.f32 %v4405, 0.03125
    %vm4407 = vcmp.lt.s32.totalorder %v3799, 32
    %v4408 = vsub.f32 %v4402, %v4406
    %v4409 = vsel %vm4407, %v4408, 0.0
    %v4410 = vmul.f32 %v4409, %v4409
    %v4411 = vsel %vm325, %v4410, 0.0
    %4412 = vadd.xlane.f32.xlu0 %v4411
    %v4413 = vpop.xlane.xlu0 %4412
    %v4414 = vmul.f32 %v4413, 0.03125
    %v4415 = vadd.f32 %v4414, 1e-05
    %v4416 = vrsqrt.pop %v4415
    %v4417 = vmul.f32 %v4408, %v4416
    %v4418 = vld [vmem:[#allocation10] sm:$0x1]
    %v4419 = vlaneseq
    %v4420 = vshrl.u32 %v4419, 7
    %v4421 = vsub.s32 0, %v4420
    %v4422 = vrot.slane %v4418, %v4421
    %v4423 = vmul.f32 %v4417, %v4422
    %v4424 = vld [vmem:[#allocation10 + $0x1] sm:$0x1]
    %v4425 = vlaneseq
    %v4426 = vshrl.u32 %v4425, 7
    %v4427 = vsub.s32 0, %v4426
    %v4428 = vrot.slane %v4424, %v4427
    %v4429 = vadd.f32 %v4423, %v4428
    %v4430 = vxor.u32 %v4429, 2147483648
    %v4431 = vmul.f32 %v4430, 1.442695
    %v4432 = vpow.pop %v4431
    %v4433 = vadd.f32 %v4432, 1.0
    %v4434 = vrcp.pop %v4433
    %v4435 = vmul.f32 1.0, %v4434
    %v4436 = vmul.f32 %v4429, %v4435
    %4437 = vst [vmem:[#allocation11] sm:$0x3] %v4436
    // Predicated region
    $region42: #{tpu_custom_call.1} parent=1 // pred_check
      _
    $region43: #{tpu_custom_call.1} parent=1 // pred_check_branch
      %4439 = sbr.rel (0) target = $region45
    $region44: #{tpu_custom_call.1} parent=1 // pred_region
      %s4441 = ssub.s32 32, 32
      %4442 = vsyncadd [#allocation4], %s4441
      %s4444 = sshll.u32 [#allocation11], 4
      %s4445 = int_to_ptr.vmem [resolvable:$true] %s4444
      %4447 = dma.vmem_to_hbm [thread:$0]  %s4445, 32, %s5, [#allocation4]
    $region45: #{tpu_custom_call.1} parent=1 // pred_fallthru
      _
    // Predicated region
    $region46: #{tpu_custom_call.1} parent=1 // pred_check
      _
    $region47: #{tpu_custom_call.1} parent=1 // pred_check_branch
      %4449 = sbr.rel (0) target = $region49
    $region48: #{tpu_custom_call.1} parent=1 // pred_region
      %4450 = dma.done [#allocation4], 32
    $region49: #{tpu_custom_call.1} parent=1 // pred_fallthru
      _
    %4451 = vsyncpa [#allocation3], 1
    %4452 = vsyncpa [#allocation6], 1
    %4453 = vsyncpa [#allocation9], 1
    %4454 = vsyncpa [#allocation4], 1

</llo_original>
